<compile_context>
chip_gen: v6e
topology: v6e:2x2x1
jax: 0.10.0
libtpu: 0.0.40
codegen_flags: <defaults>
</compile_context>

<pallas_src>
import functools

import jax
import jax.numpy as jnp
from jax.experimental import pallas as pl
from jax.experimental.pallas import tpu as pltpu


# ----------------------------------------------------------------------------
# Fused Pallas kernel: stem conv + conv_head + global-avg-pool + classifier
# ----------------------------------------------------------------------------
def _silu(x):
    # SiLU via the tanh form of sigmoid: sigmoid(x) = 0.5 * (1 + tanh(x/2)).
    # One EUP op per element instead of exp + reciprocal (EUP is the hot slot).
    return x * (0.5 * jnp.tanh(0.5 * x) + 0.5)


def _fused_kernel(p_ref, ws_ref, bs_ref, wh_ref, bh_ref, wc_ref, bc_ref,
                  o_ref, acc_ref, *, inv_s, feat_chunk):
    s = pl.program_id(1)

    @pl.when(s == 0)
    def _init():
        acc_ref[...] = jnp.zeros_like(acc_ref)

    # --- stem conv 3x3 / s2 (im2col form, folded BN) + SiLU ------------------
    p = p_ref[...]                                                   # (TS, 9) bf16
    stem = jnp.dot(p, ws_ref[...], preferred_element_type=jnp.float32)
    stem = _silu(stem + bs_ref[...])                                 # (TS, 32) f32
    stem_bf = stem.astype(jnp.bfloat16)

    ts = p.shape[0]
    feat = wh_ref.shape[1]
    n_chunks = feat // feat_chunk

    # --- conv_head 1x1 (+folded BN) + SiLU + partial global-avg-pool ---------
    # Chunked over the 1280-wide feature dim so each matmul->bias->SiLU->reduce
    # stays near vreg scale instead of a (TS,1280) f32 slab round-tripping VMEM.
    for c in range(n_chunks):                          # static unroll (5 chunks)
        lo, hi = c * feat_chunk, (c + 1) * feat_chunk
        f = jnp.dot(stem_bf, wh_ref[:, lo:hi],
                    preferred_element_type=jnp.float32)              # (TS, FC) f32
        f = _silu(f + bh_ref[:, lo:hi])
        # per-sublane partial sums: pure VPU vreg adds, unmasked (8, FC) stores
        acc_ref[:, lo:hi] += jnp.sum(f.reshape(ts // 8, 8, feat_chunk), axis=0)

    # --- finalize: AdaptiveAvgPool2d(1) + Linear classifier ------------------
    @pl.when(s == pl.num_programs(1) - 1)
    def _finalize():
        pooled = jnp.sum(acc_ref[...], axis=0, keepdims=True) * inv_s   # (1, 1280)
        logits = jnp.dot(pooled.astype(jnp.bfloat16), wc_ref[...],
                         preferred_element_type=jnp.float32) + bc_ref[...]
        # 8-row broadcast keeps the output block sublane-aligned; at n_pad=128
        # this is a single f32 vreg store per batch (row 0 holds the result).
        o_ref[...] = jnp.broadcast_to(logits, o_ref.shape)


def _choose_spatial_tile(S, cap=1024):
    """Largest tile <= cap that divides S (all candidates are multiples of 8)."""
    for ts in (1024, 512, 256, 128, 64, 32, 16, 8):
        if ts <= cap and ts <= S and S % ts == 0:
            return ts
    raise ValueError(f"spatial size {S} must be a multiple of 8")


def fused_forward(patches, w_stem, b_stem, w_head, b_head, w_cls, b_cls,
                  *, feat_chunk=256):
    """patches: (B, S, 9) bf16.  Returns (B, n_pad) f32 logits (padded classes)."""
    B, S, K9 = patches.shape
    c_stem = w_stem.shape[1]
    feat = w_head.shape[1]
    n_pad = w_cls.shape[1]
    assert S % 8 == 0, "spatial size must be a multiple of 8"
    assert feat % feat_chunk == 0
    ts = _choose_spatial_tile(S)
    grid = (B, S // ts)

    cost = pl.CostEstimate(
        flops=int(2 * B * S * K9 * c_stem + 2 * B * S * c_stem * feat
                  + 2 * B * feat * n_pad),
        transcendentals=int(B * S * (c_stem + feat)),   # one tanh per activation
        bytes_accessed=int(patches.size * 2 + w_stem.size * 2 + w_head.size * 2
                           + w_cls.size * 2
                           + (b_stem.size + b_head.size + b_cls.size) * 4
                           + B * 8 * n_pad * 4),
    )

    out = pl.pallas_call(
        functools.partial(_fused_kernel, inv_s=1.0 / S, feat_chunk=feat_chunk),
        out_shape=jax.ShapeDtypeStruct((B, 8, n_pad), jnp.float32),
        grid_spec=pltpu.PrefetchScalarGridSpec(
            num_scalar_prefetch=0,
            grid=grid,
            in_specs=[
                pl.BlockSpec((None, ts, K9), lambda b, s: (b, s, 0)),  # patches tile (bf16)
                pl.BlockSpec((K9, c_stem), lambda b, s: (0, 0)),       # w_stem (bf16)
                pl.BlockSpec((1, c_stem), lambda b, s: (0, 0)),        # b_stem (f32)
                pl.BlockSpec((c_stem, feat), lambda b, s: (0, 0)),     # w_head (bf16)
                pl.BlockSpec((1, feat), lambda b, s: (0, 0)),          # b_head (f32)
                pl.BlockSpec((feat, n_pad), lambda b, s: (0, 0)),      # w_cls (bf16)
                pl.BlockSpec((1, n_pad), lambda b, s: (0, 0)),         # b_cls (f32)
            ],
            out_specs=pl.BlockSpec((None, 8, n_pad), lambda b, s: (b, 0, 0)),
            scratch_shapes=[pltpu.VMEM((8, feat), jnp.float32)],       # pooled accumulator
        ),
        compiler_params=pltpu.CompilerParams(
            dimension_semantics=("parallel", "arbitrary"),
            vmem_limit_bytes=32 * 1024 * 1024,
        ),
        cost_estimate=cost,
    )(patches, w_stem, b_stem, w_head, b_head, w_cls, b_cls)
    return out[:, 0, :]                                               # (B, n_pad)


# ----------------------------------------------------------------------------
# Glue: im2col for the 3x3 / stride-2 / pad-1 stem conv (NHWC, channels-last)
# ----------------------------------------------------------------------------
def im2col_3x3_s2(x_nhwc):
    B, H, W, Cin = x_nhwc.shape
    Ho = (H + 2 - 3) // 2 + 1
    Wo = (W + 2 - 3) // 2 + 1
    xp = jnp.pad(x_nhwc, ((0, 0), (1, 1), (1, 1), (0, 0)))
    cols = []
    for di in range(3):
        for dj in range(3):
            cols.append(xp[:, di:di + 2 * Ho:2, dj:dj + 2 * Wo:2, :])  # (B,Ho,Wo,Cin)
    patches = jnp.concatenate(cols, axis=-1)                           # (B,Ho,Wo,9*Cin)
    return patches.reshape(B, Ho * Wo, 9 * Cin), (B, Ho, Wo)


# ----------------------------------------------------------------------------
# Model wrapper: deterministic synthetic parameters (BN at default init is the
# identity, so it is folded away).
# ----------------------------------------------------------------------------
class BirdCLEFModelPallas:
    STEM_CH = 32      # efficientnet_b0 stem width
    FEAT_DIM = 1280   # efficientnet_b0 classifier.in_features

    def __init__(self, num_classes, key):
        k0, k1, k2 = jax.random.split(key, 3)
        self.num_classes = num_classes
        self.n_pad = ((num_classes + 127) // 128) * 128   # lane-dense classifier width

        # stem conv weight in im2col form: (3*3*in_chans, 32), bf16 for the MXU
        self.w_stem = (0.1 * jax.random.normal(k0, (9, self.STEM_CH))).astype(jnp.bfloat16)
        self.b_stem = jnp.zeros((1, self.STEM_CH), jnp.float32)
        # conv_head 1x1: 32 -> 1280, bf16 inputs, f32 accumulate in-kernel
        self.w_head = (0.05 * jax.random.normal(k1, (self.STEM_CH, self.FEAT_DIM))).astype(jnp.bfloat16)
        self.b_head = jnp.zeros((1, self.FEAT_DIM), jnp.float32)
        # classifier: Linear(1280, num_classes), zero-padded to n_pad columns, bf16
        w_cls = 0.02 * jax.random.normal(k2, (self.FEAT_DIM, num_classes))
        self.w_cls = (jnp.zeros((self.FEAT_DIM, self.n_pad), jnp.float32)
                      .at[:, :num_classes].set(w_cls)).astype(jnp.bfloat16)
        self.b_cls = jnp.zeros((1, self.n_pad), jnp.float32)

    def __call__(self, x_nchw):
        x_nhwc = jnp.transpose(x_nchw.astype(jnp.float32), (0, 2, 3, 1))   # NCHW -> NHWC
        patches, _ = im2col_3x3_s2(x_nhwc)                                 # (B, S, 9)
        logits_pad = fused_forward(patches.astype(jnp.bfloat16),
                                   self.w_stem, self.b_stem,
                                   self.w_head, self.b_head,
                                   self.w_cls, self.b_cls)                 # (B, n_pad)
        return logits_pad[:, :self.num_classes]

    def reference(self, x_nchw):
        """Pure-JAX reference (same bf16-rounded weights, f32 activations)."""
        x_nhwc = jnp.transpose(x_nchw.astype(jnp.float32), (0, 2, 3, 1))
        patches, _ = im2col_3x3_s2(x_nhwc)
        silu = lambda v: v * jax.nn.sigmoid(v)
        stem = silu(patches @ self.w_stem.astype(jnp.float32) + self.b_stem)
        feats = silu(stem @ self.w_head.astype(jnp.float32) + self.b_head)
        pooled = feats.mean(axis=1)
        logits = pooled @ self.w_cls.astype(jnp.float32) + self.b_cls
        return logits[:, :self.num_classes]


# ----------------------------------------------------------------------------
if __name__ == "__main__":
    key = jax.random.PRNGKey(0)
    k_param, k_in = jax.random.split(key)

    B, C_IN, H, W = 2, 1, 32, 32       # small stand-in for (B, 1, 256, 256) mel spectrograms
    NUM_CLASSES = 16

    model = BirdCLEFModelPallas(NUM_CLASSES, k_param)
    x = jax.random.normal(k_in, (B, C_IN, H, W), dtype=jnp.float32)

    logits = jax.block_until_ready(jax.jit(model.__call__)(x))
    assert logits.shape == (B, NUM_CLASSES)
    assert bool(jnp.all(jnp.isfinite(logits)))

    # correctness check vs pure-JAX reference (bf16 activation casts allowed for)
    ref = model.reference(x)
    max_err = float(jnp.max(jnp.abs(logits - ref)))
    assert bool(jnp.allclose(logits, ref, rtol=5e-2, atol=5e-3)), max_err

    print("KERNEL_OK")
</pallas_src>

<mosaic_0001>
module attributes {stable_mosaic.version = 11 : i64} {
  func.func @_fused_kernel(%arg0: i32, %arg1: i32, %arg2: memref<1x256x9xbf16, #tpu.memory_space<vmem>>, %arg3: memref<9x32xbf16, #tpu.memory_space<vmem>>, %arg4: memref<1x32xf32, #tpu.memory_space<vmem>>, %arg5: memref<32x1280xbf16, #tpu.memory_space<vmem>>, %arg6: memref<1x1280xf32, #tpu.memory_space<vmem>>, %arg7: memref<1280x128xbf16, #tpu.memory_space<vmem>>, %arg8: memref<1x128xf32, #tpu.memory_space<vmem>>, %arg9: memref<1x8x128xf32, #tpu.memory_space<vmem>>, %arg10: memref<8x1280xf32, #tpu.memory_space<vmem>>) attributes {dimension_semantics = [#tpu.dimension_semantics<parallel>, #tpu.dimension_semantics<arbitrary>], iteration_bounds = array<i64: 2, 1>, scalar_prefetch = 0 : i64, scratch_operands = 1 : i64, tpu.core_type = #tpu.core_type<tc>, window_params = [{transform_indices = @transform_0, window_bounds = array<i64: 1, 256, 9>}, {pipeline_mode = #tpu.pipeline_mode<synchronous>, transform_indices = @transform_1, window_bounds = array<i64: 9, 32>}, {pipeline_mode = #tpu.pipeline_mode<synchronous>, transform_indices = @transform_2, window_bounds = array<i64: 1, 32>}, {pipeline_mode = #tpu.pipeline_mode<synchronous>, transform_indices = @transform_3, window_bounds = array<i64: 32, 1280>}, {pipeline_mode = #tpu.pipeline_mode<synchronous>, transform_indices = @transform_4, window_bounds = array<i64: 1, 1280>}, {pipeline_mode = #tpu.pipeline_mode<synchronous>, transform_indices = @transform_5, window_bounds = array<i64: 1280, 128>}, {pipeline_mode = #tpu.pipeline_mode<synchronous>, transform_indices = @transform_6, window_bounds = array<i64: 1, 128>}, {transform_indices = @transform_7, window_bounds = array<i64: 1, 8, 128>}]} {
    %c0_i32 = arith.constant 0 : i32
    %0 = arith.cmpi eq, %arg1, %c0_i32 : i32
    %1 = arith.extui %0 : i1 to i32
    %c0_i32_0 = arith.constant 0 : i32
    %2 = arith.cmpi ne, %1, %c0_i32_0 : i32
    scf.if %2 {
      %cst_73 = arith.constant 0.000000e+00 : f32
      %112 = vector.broadcast %cst_73 : f32 to vector<8x1280xf32>
      %c0_74 = arith.constant 0 : index
      %c0_75 = arith.constant 0 : index
      %113 = vector.load %arg10[%c0_74, %c0_75] : memref<8x1280xf32, #tpu.memory_space<vmem>>, vector<8x1280xf32>
      tpu.vector_store %arg10[%c0_74, %c0_75], %112 {strides = array<i32>} : memref<8x1280xf32, #tpu.memory_space<vmem>>, vector<8x1280xf32>,
    } else {
    }
    %c0 = arith.constant 0 : index
    %c0_1 = arith.constant 0 : index
    %c0_2 = arith.constant 0 : index
    %3 = vector.load %arg2[%c0, %c0_1, %c0_2] : memref<1x256x9xbf16, #tpu.memory_space<vmem>>, vector<1x256x9xbf16>
    %4 = vector.shape_cast %3 : vector<1x256x9xbf16> to vector<256x9xbf16>
    %c0_3 = arith.constant 0 : index
    %c0_4 = arith.constant 0 : index
    %5 = vector.load %arg3[%c0_3, %c0_4] : memref<9x32xbf16, #tpu.memory_space<vmem>>, vector<9x32xbf16>
    %cst = arith.constant dense<0.000000e+00> : vector<256x32xf32>
    %6 = tpu.matmul %4, %5, %cst {dimension_numbers = #tpu.dot_dimension_numbers<[1], [0], [0], [1], [0, 0, 1, 1], [], []>} : vector<256x9xbf16>, vector<9x32xbf16>, vector<256x32xf32> -> vector<256x32xf32>
    %c0_5 = arith.constant 0 : index
    %c0_6 = arith.constant 0 : index
    %7 = vector.load %arg4[%c0_5, %c0_6] : memref<1x32xf32, #tpu.memory_space<vmem>>, vector<1x32xf32>
    %8 = vector.broadcast %7 : vector<1x32xf32> to vector<256x32xf32>
    %9 = arith.addf %6, %8 : vector<256x32xf32>
    %cst_7 = arith.constant 5.000000e-01 : f32
    %10 = vector.broadcast %cst_7 : f32 to vector<256x32xf32>
    %11 = arith.mulf %10, %9 : vector<256x32xf32>
    %12 = math.tanh %11 : vector<256x32xf32>
    %cst_8 = arith.constant 5.000000e-01 : f32
    %13 = vector.broadcast %cst_8 : f32 to vector<256x32xf32>
    %14 = arith.mulf %13, %12 : vector<256x32xf32>
    %cst_9 = arith.constant 5.000000e-01 : f32
    %15 = vector.broadcast %cst_9 : f32 to vector<256x32xf32>
    %16 = arith.addf %14, %15 : vector<256x32xf32>
    %17 = arith.mulf %9, %16 : vector<256x32xf32>
    %18 = arith.truncf %17 : vector<256x32xf32> to vector<256x32xbf16>
    %c0_10 = arith.constant 0 : index
    %c0_11 = arith.constant 0 : index
    %19 = vector.load %arg5[%c0_10, %c0_11] : memref<32x1280xbf16, #tpu.memory_space<vmem>>, vector<32x256xbf16>
    %cst_12 = arith.constant dense<0.000000e+00> : vector<256x256xf32>
    %20 = tpu.matmul %18, %19, %cst_12 {dimension_numbers = #tpu.dot_dimension_numbers<[1], [0], [0], [1], [0, 0, 1, 1], [], []>} : vector<256x32xbf16>, vector<32x256xbf16>, vector<256x256xf32> -> vector<256x256xf32>
    %c0_13 = arith.constant 0 : index
    %c0_14 = arith.constant 0 : index
    %21 = vector.load %arg6[%c0_13, %c0_14] : memref<1x1280xf32, #tpu.memory_space<vmem>>, vector<1x256xf32>
    %22 = vector.broadcast %21 : vector<1x256xf32> to vector<256x256xf32>
    %23 = arith.addf %20, %22 : vector<256x256xf32>
    %cst_15 = arith.constant 5.000000e-01 : f32
    %24 = vector.broadcast %cst_15 : f32 to vector<256x256xf32>
    %25 = arith.mulf %24, %23 : vector<256x256xf32>
    %26 = math.tanh %25 : vector<256x256xf32>
    %cst_16 = arith.constant 5.000000e-01 : f32
    %27 = vector.broadcast %cst_16 : f32 to vector<256x256xf32>
    %28 = arith.mulf %27, %26 : vector<256x256xf32>
    %cst_17 = arith.constant 5.000000e-01 : f32
    %29 = vector.broadcast %cst_17 : f32 to vector<256x256xf32>
    %30 = arith.addf %28, %29 : vector<256x256xf32>
    %31 = arith.mulf %23, %30 : vector<256x256xf32>
    %c0_18 = arith.constant 0 : index
    %c0_19 = arith.constant 0 : index
    %32 = vector.load %arg10[%c0_18, %c0_19] : memref<8x1280xf32, #tpu.memory_space<vmem>>, vector<8x256xf32>
    %33 = vector.shape_cast %31 : vector<256x256xf32> to vector<32x8x256xf32>
    %cst_20 = arith.constant dense<0.000000e+00> : vector<8x256xf32>
    %34 = vector.multi_reduction <add>, %33, %cst_20 [0] : vector<32x8x256xf32> to vector<8x256xf32>
    %35 = arith.addf %32, %34 : vector<8x256xf32>
    %c0_21 = arith.constant 0 : index
    %c0_22 = arith.constant 0 : index
    %36 = vector.load %arg10[%c0_21, %c0_22] : memref<8x1280xf32, #tpu.memory_space<vmem>>, vector<8x256xf32>
    tpu.vector_store %arg10[%c0_21, %c0_22], %35 {strides = array<i32>} : memref<8x1280xf32, #tpu.memory_space<vmem>>, vector<8x256xf32>,
    %c0_23 = arith.constant 0 : index
    %c256 = arith.constant 256 : index
    %37 = vector.load %arg5[%c0_23, %c256] : memref<32x1280xbf16, #tpu.memory_space<vmem>>, vector<32x256xbf16>
    %cst_24 = arith.constant dense<0.000000e+00> : vector<256x256xf32>
    %38 = tpu.matmul %18, %37, %cst_24 {dimension_numbers = #tpu.dot_dimension_numbers<[1], [0], [0], [1], [0, 0, 1, 1], [], []>} : vector<256x32xbf16>, vector<32x256xbf16>, vector<256x256xf32> -> vector<256x256xf32>
    %c0_25 = arith.constant 0 : index
    %c256_26 = arith.constant 256 : index
    %39 = vector.load %arg6[%c0_25, %c256_26] : memref<1x1280xf32, #tpu.memory_space<vmem>>, vector<1x256xf32>
    %40 = vector.broadcast %39 : vector<1x256xf32> to vector<256x256xf32>
    %41 = arith.addf %38, %40 : vector<256x256xf32>
    %cst_27 = arith.constant 5.000000e-01 : f32
    %42 = vector.broadcast %cst_27 : f32 to vector<256x256xf32>
    %43 = arith.mulf %42, %41 : vector<256x256xf32>
    %44 = math.tanh %43 : vector<256x256xf32>
    %cst_28 = arith.constant 5.000000e-01 : f32
    %45 = vector.broadcast %cst_28 : f32 to vector<256x256xf32>
    %46 = arith.mulf %45, %44 : vector<256x256xf32>
    %cst_29 = arith.constant 5.000000e-01 : f32
    %47 = vector.broadcast %cst_29 : f32 to vector<256x256xf32>
    %48 = arith.addf %46, %47 : vector<256x256xf32>
    %49 = arith.mulf %41, %48 : vector<256x256xf32>
    %c0_30 = arith.constant 0 : index
    %c256_31 = arith.constant 256 : index
    %50 = vector.load %arg10[%c0_30, %c256_31] : memref<8x1280xf32, #tpu.memory_space<vmem>>, vector<8x256xf32>
    %51 = vector.shape_cast %49 : vector<256x256xf32> to vector<32x8x256xf32>
    %cst_32 = arith.constant dense<0.000000e+00> : vector<8x256xf32>
    %52 = vector.multi_reduction <add>, %51, %cst_32 [0] : vector<32x8x256xf32> to vector<8x256xf32>
    %53 = arith.addf %50, %52 : vector<8x256xf32>
    %c0_33 = arith.constant 0 : index
    %c256_34 = arith.constant 256 : index
    %54 = vector.load %arg10[%c0_33, %c256_34] : memref<8x1280xf32, #tpu.memory_space<vmem>>, vector<8x256xf32>
    tpu.vector_store %arg10[%c0_33, %c256_34], %53 {strides = array<i32>} : memref<8x1280xf32, #tpu.memory_space<vmem>>, vector<8x256xf32>,
    %c0_35 = arith.constant 0 : index
    %c512 = arith.constant 512 : index
    %55 = vector.load %arg5[%c0_35, %c512] : memref<32x1280xbf16, #tpu.memory_space<vmem>>, vector<32x256xbf16>
    %cst_36 = arith.constant dense<0.000000e+00> : vector<256x256xf32>
    %56 = tpu.matmul %18, %55, %cst_36 {dimension_numbers = #tpu.dot_dimension_numbers<[1], [0], [0], [1], [0, 0, 1, 1], [], []>} : vector<256x32xbf16>, vector<32x256xbf16>, vector<256x256xf32> -> vector<256x256xf32>
    %c0_37 = arith.constant 0 : index
    %c512_38 = arith.constant 512 : index
    %57 = vector.load %arg6[%c0_37, %c512_38] : memref<1x1280xf32, #tpu.memory_space<vmem>>, vector<1x256xf32>
    %58 = vector.broadcast %57 : vector<1x256xf32> to vector<256x256xf32>
    %59 = arith.addf %56, %58 : vector<256x256xf32>
    %cst_39 = arith.constant 5.000000e-01 : f32
    %60 = vector.broadcast %cst_39 : f32 to vector<256x256xf32>
    %61 = arith.mulf %60, %59 : vector<256x256xf32>
    %62 = math.tanh %61 : vector<256x256xf32>
    %cst_40 = arith.constant 5.000000e-01 : f32
    %63 = vector.broadcast %cst_40 : f32 to vector<256x256xf32>
    %64 = arith.mulf %63, %62 : vector<256x256xf32>
    %cst_41 = arith.constant 5.000000e-01 : f32
    %65 = vector.broadcast %cst_41 : f32 to vector<256x256xf32>
    %66 = arith.addf %64, %65 : vector<256x256xf32>
    %67 = arith.mulf %59, %66 : vector<256x256xf32>
    %c0_42 = arith.constant 0 : index
    %c512_43 = arith.constant 512 : index
    %68 = vector.load %arg10[%c0_42, %c512_43] : memref<8x1280xf32, #tpu.memory_space<vmem>>, vector<8x256xf32>
    %69 = vector.shape_cast %67 : vector<256x256xf32> to vector<32x8x256xf32>
    %cst_44 = arith.constant dense<0.000000e+00> : vector<8x256xf32>
    %70 = vector.multi_reduction <add>, %69, %cst_44 [0] : vector<32x8x256xf32> to vector<8x256xf32>
    %71 = arith.addf %68, %70 : vector<8x256xf32>
    %c0_45 = arith.constant 0 : index
    %c512_46 = arith.constant 512 : index
    %72 = vector.load %arg10[%c0_45, %c512_46] : memref<8x1280xf32, #tpu.memory_space<vmem>>, vector<8x256xf32>
    tpu.vector_store %arg10[%c0_45, %c512_46], %71 {strides = array<i32>} : memref<8x1280xf32, #tpu.memory_space<vmem>>, vector<8x256xf32>,
    %c0_47 = arith.constant 0 : index
    %c768 = arith.constant 768 : index
    %73 = vector.load %arg5[%c0_47, %c768] : memref<32x1280xbf16, #tpu.memory_space<vmem>>, vector<32x256xbf16>
    %cst_48 = arith.constant dense<0.000000e+00> : vector<256x256xf32>
    %74 = tpu.matmul %18, %73, %cst_48 {dimension_numbers = #tpu.dot_dimension_numbers<[1], [0], [0], [1], [0, 0, 1, 1], [], []>} : vector<256x32xbf16>, vector<32x256xbf16>, vector<256x256xf32> -> vector<256x256xf32>
    %c0_49 = arith.constant 0 : index
    %c768_50 = arith.constant 768 : index
    %75 = vector.load %arg6[%c0_49, %c768_50] : memref<1x1280xf32, #tpu.memory_space<vmem>>, vector<1x256xf32>
    %76 = vector.broadcast %75 : vector<1x256xf32> to vector<256x256xf32>
    %77 = arith.addf %74, %76 : vector<256x256xf32>
    %cst_51 = arith.constant 5.000000e-01 : f32
    %78 = vector.broadcast %cst_51 : f32 to vector<256x256xf32>
    %79 = arith.mulf %78, %77 : vector<256x256xf32>
    %80 = math.tanh %79 : vector<256x256xf32>
    %cst_52 = arith.constant 5.000000e-01 : f32
    %81 = vector.broadcast %cst_52 : f32 to vector<256x256xf32>
    %82 = arith.mulf %81, %80 : vector<256x256xf32>
    %cst_53 = arith.constant 5.000000e-01 : f32
    %83 = vector.broadcast %cst_53 : f32 to vector<256x256xf32>
    %84 = arith.addf %82, %83 : vector<256x256xf32>
    %85 = arith.mulf %77, %84 : vector<256x256xf32>
    %c0_54 = arith.constant 0 : index
    %c768_55 = arith.constant 768 : index
    %86 = vector.load %arg10[%c0_54, %c768_55] : memref<8x1280xf32, #tpu.memory_space<vmem>>, vector<8x256xf32>
    %87 = vector.shape_cast %85 : vector<256x256xf32> to vector<32x8x256xf32>
    %cst_56 = arith.constant dense<0.000000e+00> : vector<8x256xf32>
    %88 = vector.multi_reduction <add>, %87, %cst_56 [0] : vector<32x8x256xf32> to vector<8x256xf32>
    %89 = arith.addf %86, %88 : vector<8x256xf32>
    %c0_57 = arith.constant 0 : index
    %c768_58 = arith.constant 768 : index
    %90 = vector.load %arg10[%c0_57, %c768_58] : memref<8x1280xf32, #tpu.memory_space<vmem>>, vector<8x256xf32>
    tpu.vector_store %arg10[%c0_57, %c768_58], %89 {strides = array<i32>} : memref<8x1280xf32, #tpu.memory_space<vmem>>, vector<8x256xf32>,
    %c0_59 = arith.constant 0 : index
    %c1024 = arith.constant 1024 : index
    %91 = vector.load %arg5[%c0_59, %c1024] : memref<32x1280xbf16, #tpu.memory_space<vmem>>, vector<32x256xbf16>
    %cst_60 = arith.constant dense<0.000000e+00> : vector<256x256xf32>
    %92 = tpu.matmul %18, %91, %cst_60 {dimension_numbers = #tpu.dot_dimension_numbers<[1], [0], [0], [1], [0, 0, 1, 1], [], []>} : vector<256x32xbf16>, vector<32x256xbf16>, vector<256x256xf32> -> vector<256x256xf32>
    %c0_61 = arith.constant 0 : index
    %c1024_62 = arith.constant 1024 : index
    %93 = vector.load %arg6[%c0_61, %c1024_62] : memref<1x1280xf32, #tpu.memory_space<vmem>>, vector<1x256xf32>
    %94 = vector.broadcast %93 : vector<1x256xf32> to vector<256x256xf32>
    %95 = arith.addf %92, %94 : vector<256x256xf32>
    %cst_63 = arith.constant 5.000000e-01 : f32
    %96 = vector.broadcast %cst_63 : f32 to vector<256x256xf32>
    %97 = arith.mulf %96, %95 : vector<256x256xf32>
    %98 = math.tanh %97 : vector<256x256xf32>
    %cst_64 = arith.constant 5.000000e-01 : f32
    %99 = vector.broadcast %cst_64 : f32 to vector<256x256xf32>
    %100 = arith.mulf %99, %98 : vector<256x256xf32>
    %cst_65 = arith.constant 5.000000e-01 : f32
    %101 = vector.broadcast %cst_65 : f32 to vector<256x256xf32>
    %102 = arith.addf %100, %101 : vector<256x256xf32>
    %103 = arith.mulf %95, %102 : vector<256x256xf32>
    %c0_66 = arith.constant 0 : index
    %c1024_67 = arith.constant 1024 : index
    %104 = vector.load %arg10[%c0_66, %c1024_67] : memref<8x1280xf32, #tpu.memory_space<vmem>>, vector<8x256xf32>
    %105 = vector.shape_cast %103 : vector<256x256xf32> to vector<32x8x256xf32>
    %cst_68 = arith.constant dense<0.000000e+00> : vector<8x256xf32>
    %106 = vector.multi_reduction <add>, %105, %cst_68 [0] : vector<32x8x256xf32> to vector<8x256xf32>
    %107 = arith.addf %104, %106 : vector<8x256xf32>
    %c0_69 = arith.constant 0 : index
    %c1024_70 = arith.constant 1024 : index
    %108 = vector.load %arg10[%c0_69, %c1024_70] : memref<8x1280xf32, #tpu.memory_space<vmem>>, vector<8x256xf32>
    tpu.vector_store %arg10[%c0_69, %c1024_70], %107 {strides = array<i32>} : memref<8x1280xf32, #tpu.memory_space<vmem>>, vector<8x256xf32>,
    %c0_i32_71 = arith.constant 0 : i32
    %109 = arith.cmpi eq, %arg1, %c0_i32_71 : i32
    %110 = arith.extui %109 : i1 to i32
    %c0_i32_72 = arith.constant 0 : i32
    %111 = arith.cmpi ne, %110, %c0_i32_72 : i32
    scf.if %111 {
      %c0_73 = arith.constant 0 : index
      %c0_74 = arith.constant 0 : index
      %112 = vector.load %arg10[%c0_73, %c0_74] : memref<8x1280xf32, #tpu.memory_space<vmem>>, vector<8x1280xf32>
      %cst_75 = arith.constant dense<0.000000e+00> : vector<1280xf32>
      %113 = vector.multi_reduction <add>, %112, %cst_75 [0] : vector<8x1280xf32> to vector<1280xf32>
      %114 = vector.shape_cast %113 : vector<1280xf32> to vector<1x1280xf32>
      %cst_76 = arith.constant 3.906250e-03 : f32
      %115 = vector.broadcast %cst_76 : f32 to vector<1x1280xf32>
      %116 = arith.mulf %114, %115 : vector<1x1280xf32>
      %117 = arith.truncf %116 : vector<1x1280xf32> to vector<1x1280xbf16>
      %c0_77 = arith.constant 0 : index
      %c0_78 = arith.constant 0 : index
      %118 = vector.load %arg7[%c0_77, %c0_78] : memref<1280x128xbf16, #tpu.memory_space<vmem>>, vector<1280x128xbf16>
      %cst_79 = arith.constant dense<0.000000e+00> : vector<1x128xf32>
      %119 = tpu.matmul %117, %118, %cst_79 {dimension_numbers = #tpu.dot_dimension_numbers<[1], [0], [0], [1], [0, 0, 1, 1], [], []>} : vector<1x1280xbf16>, vector<1280x128xbf16>, vector<1x128xf32> -> vector<1x128xf32>
      %c0_80 = arith.constant 0 : index
      %c0_81 = arith.constant 0 : index
      %120 = vector.load %arg8[%c0_80, %c0_81] : memref<1x128xf32, #tpu.memory_space<vmem>>, vector<1x128xf32>
      %121 = arith.addf %119, %120 : vector<1x128xf32>
      %122 = vector.shape_cast %121 : vector<1x128xf32> to vector<1x128xf32>
      %123 = vector.broadcast %122 : vector<1x128xf32> to vector<8x128xf32>
      %c0_82 = arith.constant 0 : index
      %c0_83 = arith.constant 0 : index
      %c0_84 = arith.constant 0 : index
      %124 = vector.load %arg9[%c0_82, %c0_83, %c0_84] : memref<1x8x128xf32, #tpu.memory_space<vmem>>, vector<1x8x128xf32>
      %125 = vector.shape_cast %124 : vector<1x8x128xf32> to vector<8x128xf32>
      %126 = vector.shape_cast %123 : vector<8x128xf32> to vector<1x8x128xf32>
      tpu.vector_store %arg9[%c0_82, %c0_83, %c0_84], %126 {strides = array<i32>} : memref<1x8x128xf32, #tpu.memory_space<vmem>>, vector<1x8x128xf32>,
    } else {
    }
    return
  }
  func.func @transform_0(%arg0: i32, %arg1: i32) -> (i32, i32, i32) {
    %c0_i32 = arith.constant 0 : i32
    %c0_i32_0 = arith.constant 0 : i32
    return %arg0, %arg1, %c0_i32 : i32, i32, i32
  }
  func.func @transform_1(%arg0: i32, %arg1: i32) -> (i32, i32) {
    %c0_i32 = arith.constant 0 : i32
    %c0_i32_0 = arith.constant 0 : i32
    %c0_i32_1 = arith.constant 0 : i32
    return %c0_i32, %c0_i32_0 : i32, i32
  }
  func.func @transform_2(%arg0: i32, %arg1: i32) -> (i32, i32) {
    %c0_i32 = arith.constant 0 : i32
    %c0_i32_0 = arith.constant 0 : i32
    %c0_i32_1 = arith.constant 0 : i32
    return %c0_i32, %c0_i32_0 : i32, i32
  }
  func.func @transform_3(%arg0: i32, %arg1: i32) -> (i32, i32) {
    %c0_i32 = arith.constant 0 : i32
    %c0_i32_0 = arith.constant 0 : i32
    %c0_i32_1 = arith.constant 0 : i32
    return %c0_i32, %c0_i32_0 : i32, i32
  }
  func.func @transform_4(%arg0: i32, %arg1: i32) -> (i32, i32) {
    %c0_i32 = arith.constant 0 : i32
    %c0_i32_0 = arith.constant 0 : i32
    %c0_i32_1 = arith.constant 0 : i32
    return %c0_i32, %c0_i32_0 : i32, i32
  }
  func.func @transform_5(%arg0: i32, %arg1: i32) -> (i32, i32) {
    %c0_i32 = arith.constant 0 : i32
    %c0_i32_0 = arith.constant 0 : i32
    %c0_i32_1 = arith.constant 0 : i32
    return %c0_i32, %c0_i32_0 : i32, i32
  }
  func.func @transform_6(%arg0: i32, %arg1: i32) -> (i32, i32) {
    %c0_i32 = arith.constant 0 : i32
    %c0_i32_0 = arith.constant 0 : i32
    %c0_i32_1 = arith.constant 0 : i32
    return %c0_i32, %c0_i32_0 : i32, i32
  }
  func.func @transform_7(%arg0: i32, %arg1: i32) -> (i32, i32, i32) {
    %c0_i32 = arith.constant 0 : i32
    %c0_i32_0 = arith.constant 0 : i32
    %c0_i32_1 = arith.constant 0 : i32
    return %arg0, %c0_i32, %c0_i32_0 : i32, i32, i32
  }
}

</mosaic_0001>

<llo_original>
// kernel: a_call__.1
$region0: #{a_call__.1}
  #allocation0 [shape = 'u32[]', space=smem, size = 0x4, offset = 0x4, fixed_abs, tag = 'smem constant byte address 0x4 - core index']
  #allocation1 [shape = 'u32[144,128]{1,0:T(1,128)}', space=vmem, size = 0x12000, scoped, tag = 'internal scratch']
  #allocation2 [shape = 'f32[8,1280]{1,0:T(8,128)}', space=vmem, size = 0xa000, scoped, tag = 'scratch operand']
  %s0 = inlined_call_operand.vmem [shape: bf16[2,256,9], index: 0, kind: input, shape index: {}]
  %s1 = inlined_call_operand.vmem [shape: bf16[9,32], index: 1, kind: input, shape index: {}]
  %s2 = inlined_call_operand.vmem [shape: f32[1,32], index: 2, kind: input, shape index: {}]
  %s3 = inlined_call_operand.vmem [shape: bf16[32,1280], index: 3, kind: input, shape index: {}]
  %s4 = inlined_call_operand.vmem [shape: f32[1,1280], index: 4, kind: input, shape index: {}]
  %s5 = inlined_call_operand.vmem [shape: bf16[1280,128], index: 5, kind: input, shape index: {}]
  %s6 = inlined_call_operand.vmem [shape: f32[1,128], index: 6, kind: input, shape index: {}]
  %s7 = inlined_call_operand.vmem [shape: f32[2,8,128], index: 7, kind: output, shape index: {}]
  %s8 = sld [smem:[#allocation0]]
  $region69: #{a_call__.1} parent=0
    _
  %s10 = ssub.s32 1, %s8
  %s11 = scalar_select 0, %s10, %s8
  loop: start=0, step=1, limit=4
  $region2: #{a_call__.1} parent=0 // loop_pre_header
    _
  $region3: #{a_call__.1} parent=0 // loop_header
    %s13 = sphi 0, %s17
    %p14 = scmp.ge.s32.totalorder %s13, 4
    %s20 = sphi 0, %s32
    %s21 = sphi 0, %s28
    %s22 = sphi 0, %s20
    %s23 = sphi 0, %s21
    %s24 = sphi 0, %s22
    %s25 = sphi 0, %s23
    %s37 = sphi 0, %s39
    %s40 = sphi 0, %s37
    %s41 = sphi 0, %s40
    %s57 = sphi 0, %s41
    %s61 = sphi 0, %s61
    %s63 = sphi 0, %s61
    %s64 = sphi 0, %s63
    %s78 = sphi 0, %s64
    %s82 = sphi 0, %s82
    %s84 = sphi 0, %s82
    %s85 = sphi 0, %s84
    %s99 = sphi 0, %s85
    %s103 = sphi 0, %s103
    %s105 = sphi 0, %s103
    %s106 = sphi 0, %s105
    %s120 = sphi 0, %s106
    %s124 = sphi 0, %s124
    %s126 = sphi 0, %s124
    %s127 = sphi 0, %s126
    %s141 = sphi 0, %s127
    %s145 = sphi 0, %s145
    %s147 = sphi 0, %s145
    %s148 = sphi 0, %s147
    %s162 = sphi 0, %s148
    %s166 = sphi 0, %s166
    %s168 = sphi 0, %s166
    %s169 = sphi 0, %s168
    %s183 = sphi 0, %s169
    %s189 = sphi 0, %s191
    %s192 = sphi 0, %s189
    %s193 = sphi 0, %s192
    %s209 = sphi 0, %s193
  $region4: #{a_call__.1} parent=0 // loop_header_branch
    %16 = sbr.rel (%p14) target = $region8
  $region5: #{a_call__.1} parent=0 // loop_body
    %s18 = ssub.s32 %s13, 1
    %s19 = ssub.s32 %s13, 2
    %s26 = sadd.s32 1, %s21
    %p27 = scmp.ge.s32.totalorder %s26, 1
    %s28 = scalar_select %p27, 0, %s26
    %s29 = sadd.s32 1, %s20
    %s30 = scalar_select %p27, %s29, %s20
    %p31 = scmp.ge.s32.totalorder %s30, 2
    %s32 = scalar_select %p31, 0, %s30
    %s33 = ssub.s32 %s20, %s32
    %s34 = ssub.s32 %s21, %s28
    %s35 = sor.u32 %s33, %s34
    %p36 = scmp.eq.s32.totalorder %s35, 0
    %s38 = sadd.s32 %s37, 1
    %s39 = scalar_select %p36, %s37, %s38
    %p42 = pneg %p36
    %p43 = scmp.eq.s32.totalorder %s13, 1
    %p44 = por %p42, %p43
    %p45 = scmp.ne.s32.totalorder %s37, %s40
    %p46 = scmp.eq.s32.totalorder %s13, 0
    %p47 = por %p45, %p46
    %p48 = scmp.ne.s32.totalorder %s37, %s40
    %p49 = scmp.eq.s32.totalorder %s18, 1
    %p50 = por %p48, %p49
    %p51 = scmp.ne.s32.totalorder %s40, %s41
    %p52 = scmp.eq.s32.totalorder %s18, 0
    %p53 = por %p51, %p52
    %p54 = scmp.ne.s32.totalorder %s40, %s41
    %p55 = scmp.eq.s32.totalorder %s19, 1
    %p56 = por %p54, %p55
    %p58 = scmp.ne.s32.totalorder %s41, %s57
    %p59 = scmp.eq.s32.totalorder %s19, 0
    %p60 = por %p58, %p59
    %s62 = sadd.s32 %s61, 1
    %p65 = scmp.eq.s32.totalorder %s13, 1
    %p66 = scmp.ne.s32.totalorder %s61, %s63
    %p67 = scmp.eq.s32.totalorder %s13, 0
    %p68 = por %p66, %p67
    %p69 = scmp.ne.s32.totalorder %s61, %s63
    %p70 = scmp.eq.s32.totalorder %s18, 1
    %p71 = por %p69, %p70
    %p72 = scmp.ne.s32.totalorder %s63, %s64
    %p73 = scmp.eq.s32.totalorder %s18, 0
    %p74 = por %p72, %p73
    %p75 = scmp.ne.s32.totalorder %s63, %s64
    %p76 = scmp.eq.s32.totalorder %s19, 1
    %p77 = por %p75, %p76
    %p79 = scmp.ne.s32.totalorder %s64, %s78
    %p80 = scmp.eq.s32.totalorder %s19, 0
    %p81 = por %p79, %p80
    %s83 = sadd.s32 %s82, 1
    %p86 = scmp.eq.s32.totalorder %s13, 1
    %p87 = scmp.ne.s32.totalorder %s82, %s84
    %p88 = scmp.eq.s32.totalorder %s13, 0
    %p89 = por %p87, %p88
    %p90 = scmp.ne.s32.totalorder %s82, %s84
    %p91 = scmp.eq.s32.totalorder %s18, 1
    %p92 = por %p90, %p91
    %p93 = scmp.ne.s32.totalorder %s84, %s85
    %p94 = scmp.eq.s32.totalorder %s18, 0
    %p95 = por %p93, %p94
    %p96 = scmp.ne.s32.totalorder %s84, %s85
    %p97 = scmp.eq.s32.totalorder %s19, 1
    %p98 = por %p96, %p97
    %p100 = scmp.ne.s32.totalorder %s85, %s99
    %p101 = scmp.eq.s32.totalorder %s19, 0
    %p102 = por %p100, %p101
    %s104 = sadd.s32 %s103, 1
    %p107 = scmp.eq.s32.totalorder %s13, 1
    %p108 = scmp.ne.s32.totalorder %s103, %s105
    %p109 = scmp.eq.s32.totalorder %s13, 0
    %p110 = por %p108, %p109
    %p111 = scmp.ne.s32.totalorder %s103, %s105
    %p112 = scmp.eq.s32.totalorder %s18, 1
    %p113 = por %p111, %p112
    %p114 = scmp.ne.s32.totalorder %s105, %s106
    %p115 = scmp.eq.s32.totalorder %s18, 0
    %p116 = por %p114, %p115
    %p117 = scmp.ne.s32.totalorder %s105, %s106
    %p118 = scmp.eq.s32.totalorder %s19, 1
    %p119 = por %p117, %p118
    %p121 = scmp.ne.s32.totalorder %s106, %s120
    %p122 = scmp.eq.s32.totalorder %s19, 0
    %p123 = por %p121, %p122
    %s125 = sadd.s32 %s124, 1
    %p128 = scmp.eq.s32.totalorder %s13, 1
    %p129 = scmp.ne.s32.totalorder %s124, %s126
    %p130 = scmp.eq.s32.totalorder %s13, 0
    %p131 = por %p129, %p130
    %p132 = scmp.ne.s32.totalorder %s124, %s126
    %p133 = scmp.eq.s32.totalorder %s18, 1
    %p134 = por %p132, %p133
    %p135 = scmp.ne.s32.totalorder %s126, %s127
    %p136 = scmp.eq.s32.totalorder %s18, 0
    %p137 = por %p135, %p136
    %p138 = scmp.ne.s32.totalorder %s126, %s127
    %p139 = scmp.eq.s32.totalorder %s19, 1
    %p140 = por %p138, %p139
    %p142 = scmp.ne.s32.totalorder %s127, %s141
    %p143 = scmp.eq.s32.totalorder %s19, 0
    %p144 = por %p142, %p143
    %s146 = sadd.s32 %s145, 1
    %p149 = scmp.eq.s32.totalorder %s13, 1
    %p150 = scmp.ne.s32.totalorder %s145, %s147
    %p151 = scmp.eq.s32.totalorder %s13, 0
    %p152 = por %p150, %p151
    %p153 = scmp.ne.s32.totalorder %s145, %s147
    %p154 = scmp.eq.s32.totalorder %s18, 1
    %p155 = por %p153, %p154
    %p156 = scmp.ne.s32.totalorder %s147, %s148
    %p157 = scmp.eq.s32.totalorder %s18, 0
    %p158 = por %p156, %p157
    %p159 = scmp.ne.s32.totalorder %s147, %s148
    %p160 = scmp.eq.s32.totalorder %s19, 1
    %p161 = por %p159, %p160
    %p163 = scmp.ne.s32.totalorder %s148, %s162
    %p164 = scmp.eq.s32.totalorder %s19, 0
    %p165 = por %p163, %p164
    %s167 = sadd.s32 %s166, 1
    %p170 = scmp.eq.s32.totalorder %s13, 1
    %p171 = scmp.ne.s32.totalorder %s166, %s168
    %p172 = scmp.eq.s32.totalorder %s13, 0
    %p173 = por %p171, %p172
    %p174 = scmp.ne.s32.totalorder %s166, %s168
    %p175 = scmp.eq.s32.totalorder %s18, 1
    %p176 = por %p174, %p175
    %p177 = scmp.ne.s32.totalorder %s168, %s169
    %p178 = scmp.eq.s32.totalorder %s18, 0
    %p179 = por %p177, %p178
    %p180 = scmp.ne.s32.totalorder %s168, %s169
    %p181 = scmp.eq.s32.totalorder %s19, 1
    %p182 = por %p180, %p181
    %p184 = scmp.ne.s32.totalorder %s169, %s183
    %p185 = scmp.eq.s32.totalorder %s19, 0
    %p186 = por %p184, %p185
    %s187 = ssub.s32 %s20, %s32
    %p188 = scmp.eq.s32.totalorder %s187, 0
    %s190 = sadd.s32 %s189, 1
    %s191 = scalar_select %p188, %s189, %s190
    %p194 = pneg %p188
    %p195 = scmp.eq.s32.totalorder %s13, 1
    %p196 = por %p194, %p195
    %p197 = scmp.ne.s32.totalorder %s189, %s192
    %p198 = scmp.eq.s32.totalorder %s13, 0
    %p199 = por %p197, %p198
    %p200 = scmp.ne.s32.totalorder %s189, %s192
    %p201 = scmp.eq.s32.totalorder %s18, 1
    %p202 = por %p200, %p201
    %p203 = scmp.ne.s32.totalorder %s192, %s193
    %p204 = scmp.eq.s32.totalorder %s18, 0
    %p205 = por %p203, %p204
    %p206 = scmp.ne.s32.totalorder %s192, %s193
    %p207 = scmp.eq.s32.totalorder %s19, 1
    %p208 = por %p206, %p207
    %p210 = scmp.ne.s32.totalorder %s193, %s209
    %p211 = scmp.eq.s32.totalorder %s19, 0
    %p212 = por %p210, %p211
    %p213 = scmp.le.s32.totalorder 1, %s13
    %p214 = scmp.lt.s32.totalorder %s13, 3
    %p215 = pnand %p213, %p214
    %p216 = pneg %p215
    // Predicated region
    $region9: #{a_call__.1} parent=5 // pred_check
      _
    $region10: #{a_call__.1} parent=5 // pred_check_branch
      %218 = sbr.rel (%p215) target = $region12
    $region11: #{a_call__.1} parent=5 // pred_region
      %s219 = ssub.s32 %s13, 1
      // Predicated region
      $region13: #{a_call__.1} parent=11 // pred_check
        %p220 = pneg %p74
      $region14: #{a_call__.1} parent=11 // pred_check_branch
        %222 = sbr.rel (%p220) target = $region16
      $region15: #{a_call__.1} parent=11 // pred_region
        _
      $region16: #{a_call__.1} parent=11 // pred_fallthru
        _
      // Predicated region
      $region17: #{a_call__.1} parent=11 // pred_check
        %p223 = pneg %p95
      $region18: #{a_call__.1} parent=11 // pred_check_branch
        %225 = sbr.rel (%p223) target = $region20
      $region19: #{a_call__.1} parent=11 // pred_region
        _
      $region20: #{a_call__.1} parent=11 // pred_fallthru
        _
      // Predicated region
      $region21: #{a_call__.1} parent=11 // pred_check
        %p226 = pneg %p116
      $region22: #{a_call__.1} parent=11 // pred_check_branch
        %228 = sbr.rel (%p226) target = $region24
      $region23: #{a_call__.1} parent=11 // pred_region
        _
      $region24: #{a_call__.1} parent=11 // pred_fallthru
        _
      // Predicated region
      $region25: #{a_call__.1} parent=11 // pred_check
        %p229 = pneg %p137
      $region26: #{a_call__.1} parent=11 // pred_check_branch
        %231 = sbr.rel (%p229) target = $region28
      $region27: #{a_call__.1} parent=11 // pred_region
        _
      $region28: #{a_call__.1} parent=11 // pred_fallthru
        _
      // Predicated region
      $region29: #{a_call__.1} parent=11 // pred_check
        %p232 = pneg %p158
      $region30: #{a_call__.1} parent=11 // pred_check_branch
        %234 = sbr.rel (%p232) target = $region32
      $region31: #{a_call__.1} parent=11 // pred_region
        _
      $region32: #{a_call__.1} parent=11 // pred_fallthru
        _
      // Predicated region
      $region33: #{a_call__.1} parent=11 // pred_check
        %p235 = pneg %p179
      $region34: #{a_call__.1} parent=11 // pred_check_branch
        %237 = sbr.rel (%p235) target = $region36
      $region35: #{a_call__.1} parent=11 // pred_region
        _
      $region36: #{a_call__.1} parent=11 // pred_fallthru
        _
    $region12: #{a_call__.1} parent=5 // pred_fallthru
      _
    %p238 = scmp.lt.s32.totalorder %s13, 2
    // Predicated region
    $region37: #{a_call__.1} parent=5 // pred_check
      %p239 = pneg %p238
    $region38: #{a_call__.1} parent=5 // pred_check_branch
      %241 = sbr.rel (%p239) target = $region40
    $region39: #{a_call__.1} parent=5 // pred_region
      // Predicated region
      $region41: #{a_call__.1} parent=39 // pred_check
        %p242 = pneg %p47
      $region42: #{a_call__.1} parent=39 // pred_check_branch
        %244 = sbr.rel (%p242) target = $region44
      $region43: #{a_call__.1} parent=39 // pred_region
        %s245 = smul.u32 32, %s21
        %p246 = scmp.lt.s32.totalorder %s20, 1
        %s247 = scalar_select %p246, %s20, 1
        %p248 = scmp.lt.s32.totalorder %s245, 31
        %s249 = scalar_select %p248, %s245, 31
        %s250 = smul.addr %s247, 32
        %s251 = sadd.s32 %s249, %s250
        %s252 = smul.addr %s251, 4
        %s253 = scalar_lea.vmem %s0, %s252
        %s254 = smul.u32 32, %s21
      $region44: #{a_call__.1} parent=39 // pred_fallthru
        _
    $region40: #{a_call__.1} parent=5 // pred_fallthru
      _
    %p255 = scmp.le.s32.totalorder 1, %s13
    %p256 = scmp.lt.s32.totalorder %s13, 3
    %p257 = pnand %p255, %p256
    %p258 = pneg %p257
    // Predicated region
    $region45: #{a_call__.1} parent=5 // pred_check
      _
    $region46: #{a_call__.1} parent=5 // pred_check_branch
      %260 = sbr.rel (%p257) target = $region48
    $region47: #{a_call__.1} parent=5 // pred_region
      %s261 = ssub.s32 %s13, 1
      %s262 = smul.u32 32, %s23
      %p263 = scmp.lt.s32.totalorder %s22, 1
      %s264 = scalar_select %p263, %s22, 1
      %p265 = scmp.lt.s32.totalorder %s262, 31
      %s266 = scalar_select %p265, %s262, 31
      %s267 = smul.addr %s264, 32
      %s268 = sadd.s32 %s266, %s267
      %s269 = smul.addr %s268, 4
      %s270 = scalar_lea.vmem %s0, %s269
      %p271 = pneg %p53
      %p272 = pneg %p50
      %p273 = pneg %p74
      %p274 = pneg %p71
      %p275 = pneg %p95
      %p276 = pneg %p92
      %p277 = pneg %p116
      %p278 = pneg %p113
      %p279 = pneg %p137
      %p280 = pneg %p134
      %p281 = pneg %p158
      %p282 = pneg %p155
      %p283 = pneg %p179
      %p284 = pneg %p176
      %p285 = pneg %p205
      %p286 = pneg %p202
      %p287 = scmp.lt.s32.totalorder %s22, 1
      %s288 = scalar_select %p287, %s22, 1
      %s289 = smul.addr %s288, 8
      %s290 = scalar_lea.vmem %s7, %s289
      %s291 = smul.u32 32, %s23
      %p292 = scmp.lt.s32.totalorder %s22, 1
      %s293 = scalar_select %p292, %s22, 1
      %p294 = scmp.lt.s32.totalorder %s291, 31
      %s295 = scalar_select %p294, %s291, 31
      %s296 = smul.addr %s293, 32
      %s297 = sadd.s32 %s295, %s296
      %s298 = smul.addr %s297, 4
      %s299 = scalar_lea.vmem %s0, %s298
      %s300 = smul.u32 32, %s23
      %p301 = scmp.lt.s32.totalorder %s22, 1
      %s302 = scalar_select %p301, %s22, 1
      %s303 = smul.addr %s302, 8
      %s304 = scalar_lea.vmem %s7, %s303
      %p306 = scmp.eq.s32.totalorder %s23, 0
      // Predicated region
      $region49: #{a_call__.1} parent=47 // pred_check
        %p307 = pneg %p306
      $region50: #{a_call__.1} parent=47 // pred_check_branch
        %309 = sbr.rel (%p307) target = $region52
      $region51: #{a_call__.1} parent=47 // pred_region
        %310 = vst [vmem:[#allocation2] sm:$0xff] 0.0
        %311 = vst [vmem:[#allocation2 + $0x8] sm:$0xff] 0.0
        %312 = vst [vmem:[#allocation2 + $0x10] sm:$0xff] 0.0
        %313 = vst [vmem:[#allocation2 + $0x18] sm:$0xff] 0.0
        %314 = vst [vmem:[#allocation2 + $0x20] sm:$0xff] 0.0
        %315 = vst [vmem:[#allocation2 + $0x28] sm:$0xff] 0.0
        %316 = vst [vmem:[#allocation2 + $0x30] sm:$0xff] 0.0
        %317 = vst [vmem:[#allocation2 + $0x38] sm:$0xff] 0.0
        %318 = vst [vmem:[#allocation2 + $0x40] sm:$0xff] 0.0
        %319 = vst [vmem:[#allocation2 + $0x48] sm:$0xff] 0.0
      $region52: #{a_call__.1} parent=47 // pred_fallthru
        _
      %v320 = vld [vmem:[%s299] sm:$0xf]
      %v321 = vld [vmem:[%s299 + $0x4] sm:$0xf]
      %v322 = vld [vmem:[%s299 + $0x8] sm:$0xf]
      %v323 = vld [vmem:[%s299 + $0xc] sm:$0xf]
      %v324 = vld [vmem:[%s299 + $0x10] sm:$0xf]
      %v325 = vld [vmem:[%s299 + $0x14] sm:$0xf]
      %v326 = vld [vmem:[%s299 + $0x18] sm:$0xf]
      %v327 = vld [vmem:[%s299 + $0x1c] sm:$0xf]
      %v328 = vld [vmem:[%s299 + $0x20] sm:$0xf]
      %v329 = vld [vmem:[%s299 + $0x24] sm:$0xf]
      %v330 = vld [vmem:[%s299 + $0x28] sm:$0xf]
      %v331 = vld [vmem:[%s299 + $0x2c] sm:$0xf]
      %v332 = vld [vmem:[%s299 + $0x30] sm:$0xf]
      %v333 = vld [vmem:[%s299 + $0x34] sm:$0xf]
      %v334 = vld [vmem:[%s299 + $0x38] sm:$0xf]
      %v335 = vld [vmem:[%s299 + $0x3c] sm:$0xf]
      %v336 = vld [vmem:[%s299 + $0x40] sm:$0xf]
      %v337 = vld [vmem:[%s299 + $0x44] sm:$0xf]
      %v338 = vld [vmem:[%s299 + $0x48] sm:$0xf]
      %v339 = vld [vmem:[%s299 + $0x4c] sm:$0xf]
      %v340 = vld [vmem:[%s299 + $0x50] sm:$0xf]
      %v341 = vld [vmem:[%s299 + $0x54] sm:$0xf]
      %v342 = vld [vmem:[%s299 + $0x58] sm:$0xf]
      %v343 = vld [vmem:[%s299 + $0x5c] sm:$0xf]
      %v344 = vld [vmem:[%s299 + $0x60] sm:$0xf]
      %v345 = vld [vmem:[%s299 + $0x64] sm:$0xf]
      %v346 = vld [vmem:[%s299 + $0x68] sm:$0xf]
      %v347 = vld [vmem:[%s299 + $0x6c] sm:$0xf]
      %v348 = vld [vmem:[%s299 + $0x70] sm:$0xf]
      %v349 = vld [vmem:[%s299 + $0x74] sm:$0xf]
      %v350 = vld [vmem:[%s299 + $0x78] sm:$0xf]
      %v351 = vld [vmem:[%s299 + $0x7c] sm:$0xf]
      %v352 = vld [vmem:[%s1] sm:$0xf]
      %v353 = vld [vmem:[%s1 + $0x4] sm:$0x1]
      %v354 = vld [vmem:[%s2] sm:$0x1]
      %v356 = vlaneseq
      %v357 = vshrl.u32 %v356, 7
      %v358 = vsub.s32 0, %v357
      %v359 = vrot.slane %v354, %v358
      %v393 = vunpack.c.l.b16 %v320
      %v394 = vunpack.c.l.b16 %v321
      %v395 = vunpack.c.l.b16 %v322
      %v396 = vunpack.c.l.b16 %v323
      %v397 = vunpack.c.l.b16 %v324
      %v398 = vunpack.c.l.b16 %v325
      %v399 = vunpack.c.l.b16 %v326
      %v400 = vunpack.c.l.b16 %v327
      %v401 = vunpack.c.l.b16 %v328
      %v402 = vunpack.c.l.b16 %v329
      %v403 = vunpack.c.l.b16 %v330
      %v404 = vunpack.c.l.b16 %v331
      %v405 = vunpack.c.l.b16 %v332
      %v406 = vunpack.c.l.b16 %v333
      %v407 = vunpack.c.l.b16 %v334
      %v408 = vunpack.c.l.b16 %v335
      %v409 = vunpack.c.l.b16 %v336
      %v410 = vunpack.c.l.b16 %v337
      %v411 = vunpack.c.l.b16 %v338
      %v412 = vunpack.c.l.b16 %v339
      %v413 = vunpack.c.l.b16 %v340
      %v414 = vunpack.c.l.b16 %v341
      %v415 = vunpack.c.l.b16 %v342
      %v416 = vunpack.c.l.b16 %v343
      %v417 = vunpack.c.l.b16 %v344
      %v418 = vunpack.c.l.b16 %v345
      %v419 = vunpack.c.l.b16 %v346
      %v420 = vunpack.c.l.b16 %v347
      %v421 = vunpack.c.l.b16 %v348
      %v422 = vunpack.c.l.b16 %v349
      %v423 = vunpack.c.l.b16 %v350
      %v424 = vunpack.c.l.b16 %v351
      %v425 = vpack.c.b16 %v394, %v393
      %v426 = vpack.c.b16 %v396, %v395
      %v427 = vpack.c.b16 %v398, %v397
      %v428 = vpack.c.b16 %v400, %v399
      %v429 = vpack.c.b16 %v402, %v401
      %v430 = vpack.c.b16 %v404, %v403
      %v431 = vpack.c.b16 %v406, %v405
      %v432 = vpack.c.b16 %v408, %v407
      %v433 = vpack.c.b16 %v410, %v409
      %v434 = vpack.c.b16 %v412, %v411
      %v435 = vpack.c.b16 %v414, %v413
      %v436 = vpack.c.b16 %v416, %v415
      %v437 = vpack.c.b16 %v418, %v417
      %v438 = vpack.c.b16 %v420, %v419
      %v439 = vpack.c.b16 %v422, %v421
      %v440 = vpack.c.b16 %v424, %v423
      %v443 = vunpack.c.l.b16 %v352
      %v444 = vunpack.c.l.b16 %v353
      %v445 = vpack.c.b16 %v444, %v443
      %vm446 = vcmask 72704
      %v448 = vsel %vm446, %v425, 0
      %v451 = vsel %vm446, %v426, 0
      %v454 = vsel %vm446, %v427, 0
      %v457 = vsel %vm446, %v428, 0
      %v460 = vsel %vm446, %v429, 0
      %v463 = vsel %vm446, %v430, 0
      %v466 = vsel %vm446, %v431, 0
      %v469 = vsel %vm446, %v432, 0
      %v472 = vsel %vm446, %v433, 0
      %v475 = vsel %vm446, %v434, 0
      %v478 = vsel %vm446, %v435, 0
      %v481 = vsel %vm446, %v436, 0
      %v484 = vsel %vm446, %v437, 0
      %v487 = vsel %vm446, %v438, 0
      %v490 = vsel %vm446, %v439, 0
      %v493 = vsel %vm446, %v440, 0
      %vm495 = vcmask 1043456
      %vm496 = vcmask 1044480
      %v497 = vsel %vm495, 4294967295, 65535
      %v498 = vsel %vm496, %v497, 0
      %v500 = vand.u32 %v445, %v498
      %502 = vmatprep.subr.bf16.mxu0 0
      %503 = vmatpush1.bf16.msra.mxu0 0
      %504 = vmatprep.subr.bf16.mxu0 0
      %505 = vmatpush1.bf16.msra.mxu0 0
      %506 = vmatprep.subr.bf16.mxu0 0
      %507 = vmatpush1.bf16.msra.mxu0 0
      %508 = vmatprep.subr.bf16.mxu0 0
      %509 = vmatpush1.bf16.msra.mxu0 0
      %510 = vmatprep.subr.bf16.mxu0 0
      %511 = vmatpush1.bf16.msra.mxu0 0
      %512 = vmatprep.subr.bf16.mxu0 0
      %513 = vmatpush1.bf16.msra.mxu0 0
      %514 = vmatprep.subr.bf16.mxu0 0
      %515 = vmatpush1.bf16.msra.mxu0 0
      %516 = vmatprep.subr.bf16.mxu0 0
      %517 = vmatpush1.bf16.msra.mxu0 %v500
      %518 = vmatprep.subr.bf16.mxu0 0
      %519 = vmatpush2.bf16.msra.mxu0 0
      %520 = vmatprep.subr.bf16.mxu0 0
      %521 = vmatpush2.bf16.msra.mxu0 0
      %522 = vmatprep.subr.bf16.mxu0 0
      %523 = vmatpush2.bf16.msra.mxu0 0
      %524 = vmatprep.subr.bf16.mxu0 0
      %525 = vmatpush2.bf16.msra.mxu0 0
      %526 = vmatprep.subr.bf16.mxu0 0
      %527 = vmatpush2.bf16.msra.mxu0 0
      %528 = vmatprep.subr.bf16.mxu0 0
      %529 = vmatpush2.bf16.msra.mxu0 0
      %530 = vmatprep.subr.bf16.mxu0 0
      %531 = vmatpush2.bf16.msra.mxu0 0
      %532 = vmatprep.subr.bf16.mxu0 0
      %533 = vmatpush2.bf16.msra.mxu0 0
      %534 = vmatprep.mubr.bf16.mxu0 0
      %535 = vmatmul.mubr.bf16.gmra.mxu0 %v448
      %v536 = vpop.f32.mrf.mxu0
      %v537 = vadd.f32 %v359, %v536
      %v538 = vpop.f32.mrf.mxu0
      %v539 = vpop.f32.mrf.mxu0
      %v540 = vadd.f32 %v359, %v539
      %v541 = vpop.f32.mrf.mxu0
      %542 = vmatprep.mubr.bf16.mxu0 0
      %543 = vmatmul.mubr.bf16.gmra.mxu0 %v451
      %v544 = vpop.f32.mrf.mxu0
      %v545 = vadd.f32 %v359, %v544
      %v546 = vpop.f32.mrf.mxu0
      %v547 = vpop.f32.mrf.mxu0
      %v548 = vadd.f32 %v359, %v547
      %v549 = vpop.f32.mrf.mxu0
      %550 = vmatprep.mubr.bf16.mxu0 0
      %551 = vmatmul.mubr.bf16.gmra.mxu0 %v454
      %v552 = vpop.f32.mrf.mxu0
      %v553 = vadd.f32 %v359, %v552
      %v554 = vpop.f32.mrf.mxu0
      %v555 = vpop.f32.mrf.mxu0
      %v556 = vadd.f32 %v359, %v555
      %v557 = vpop.f32.mrf.mxu0
      %558 = vmatprep.mubr.bf16.mxu0 0
      %559 = vmatmul.mubr.bf16.gmra.mxu0 %v457
      %v560 = vpop.f32.mrf.mxu0
      %v561 = vadd.f32 %v359, %v560
      %v562 = vpop.f32.mrf.mxu0
      %v563 = vpop.f32.mrf.mxu0
      %v564 = vadd.f32 %v359, %v563
      %v565 = vpop.f32.mrf.mxu0
      %566 = vmatprep.mubr.bf16.mxu0 0
      %567 = vmatmul.mubr.bf16.gmra.mxu0 %v460
      %v568 = vpop.f32.mrf.mxu0
      %v569 = vadd.f32 %v359, %v568
      %v570 = vpop.f32.mrf.mxu0
      %v571 = vpop.f32.mrf.mxu0
      %v572 = vadd.f32 %v359, %v571
      %v573 = vpop.f32.mrf.mxu0
      %574 = vmatprep.mubr.bf16.mxu0 0
      %575 = vmatmul.mubr.bf16.gmra.mxu0 %v463
      %v576 = vpop.f32.mrf.mxu0
      %v577 = vadd.f32 %v359, %v576
      %v578 = vpop.f32.mrf.mxu0
      %v579 = vpop.f32.mrf.mxu0
      %v580 = vadd.f32 %v359, %v579
      %v581 = vpop.f32.mrf.mxu0
      %582 = vmatprep.mubr.bf16.mxu0 0
      %583 = vmatmul.mubr.bf16.gmra.mxu0 %v466
      %v584 = vpop.f32.mrf.mxu0
      %v585 = vadd.f32 %v359, %v584
      %v586 = vpop.f32.mrf.mxu0
      %v587 = vpop.f32.mrf.mxu0
      %v588 = vadd.f32 %v359, %v587
      %v589 = vpop.f32.mrf.mxu0
      %590 = vmatprep.mubr.bf16.mxu0 0
      %591 = vmatmul.mubr.bf16.gmra.mxu0 %v469
      %v592 = vpop.f32.mrf.mxu0
      %v593 = vadd.f32 %v359, %v592
      %v594 = vpop.f32.mrf.mxu0
      %v595 = vpop.f32.mrf.mxu0
      %v596 = vadd.f32 %v359, %v595
      %v597 = vpop.f32.mrf.mxu0
      %598 = vmatprep.mubr.bf16.mxu0 0
      %599 = vmatmul.mubr.bf16.gmra.mxu0 %v472
      %v600 = vpop.f32.mrf.mxu0
      %v601 = vadd.f32 %v359, %v600
      %v602 = vpop.f32.mrf.mxu0
      %v603 = vpop.f32.mrf.mxu0
      %v604 = vadd.f32 %v359, %v603
      %v605 = vpop.f32.mrf.mxu0
      %606 = vmatprep.mubr.bf16.mxu0 0
      %607 = vmatmul.mubr.bf16.gmra.mxu0 %v475
      %v608 = vpop.f32.mrf.mxu0
      %v609 = vadd.f32 %v359, %v608
      %v610 = vpop.f32.mrf.mxu0
      %v611 = vpop.f32.mrf.mxu0
      %v612 = vadd.f32 %v359, %v611
      %v613 = vpop.f32.mrf.mxu0
      %614 = vmatprep.mubr.bf16.mxu0 0
      %615 = vmatmul.mubr.bf16.gmra.mxu0 %v478
      %v616 = vpop.f32.mrf.mxu0
      %v617 = vadd.f32 %v359, %v616
      %v618 = vpop.f32.mrf.mxu0
      %v619 = vpop.f32.mrf.mxu0
      %v620 = vadd.f32 %v359, %v619
      %v621 = vpop.f32.mrf.mxu0
      %622 = vmatprep.mubr.bf16.mxu0 0
      %623 = vmatmul.mubr.bf16.gmra.mxu0 %v481
      %v624 = vpop.f32.mrf.mxu0
      %v625 = vadd.f32 %v359, %v624
      %v626 = vpop.f32.mrf.mxu0
      %v627 = vpop.f32.mrf.mxu0
      %v628 = vadd.f32 %v359, %v627
      %v629 = vpop.f32.mrf.mxu0
      %630 = vmatprep.mubr.bf16.mxu0 0
      %631 = vmatmul.mubr.bf16.gmra.mxu0 %v484
      %v632 = vpop.f32.mrf.mxu0
      %v633 = vadd.f32 %v359, %v632
      %v634 = vpop.f32.mrf.mxu0
      %v635 = vpop.f32.mrf.mxu0
      %v636 = vadd.f32 %v359, %v635
      %v637 = vpop.f32.mrf.mxu0
      %638 = vmatprep.mubr.bf16.mxu0 0
      %639 = vmatmul.mubr.bf16.gmra.mxu0 %v487
      %v640 = vpop.f32.mrf.mxu0
      %v641 = vadd.f32 %v359, %v640
      %v642 = vpop.f32.mrf.mxu0
      %v643 = vpop.f32.mrf.mxu0
      %v644 = vadd.f32 %v359, %v643
      %v645 = vpop.f32.mrf.mxu0
      %646 = vmatprep.mubr.bf16.mxu0 0
      %647 = vmatmul.mubr.bf16.gmra.mxu0 %v490
      %v648 = vpop.f32.mrf.mxu0
      %v649 = vadd.f32 %v359, %v648
      %v650 = vpop.f32.mrf.mxu0
      %v651 = vpop.f32.mrf.mxu0
      %v652 = vadd.f32 %v359, %v651
      %v653 = vpop.f32.mrf.mxu0
      %654 = vmatprep.mubr.bf16.mxu0 0
      %655 = vmatmul.mubr.bf16.gmra.mxu0 %v493
      %v656 = vpop.f32.mrf.mxu0
      %v657 = vadd.f32 %v359, %v656
      %v658 = vpop.f32.mrf.mxu0
      %v659 = vpop.f32.mrf.mxu0
      %v660 = vadd.f32 %v359, %v659
      %v661 = vpop.f32.mrf.mxu0
      %662 = vdwg.mxu0
      %v663 = vmul.f32 %v537, 0.5
      %v664 = vmul.f32 %v540, 0.5
      %v665 = vmul.f32 %v545, 0.5
      %v666 = vmul.f32 %v548, 0.5
      %v667 = vmul.f32 %v553, 0.5
      %v668 = vmul.f32 %v556, 0.5
      %v669 = vmul.f32 %v561, 0.5
      %v670 = vmul.f32 %v564, 0.5
      %v671 = vmul.f32 %v569, 0.5
      %v672 = vmul.f32 %v572, 0.5
      %v673 = vmul.f32 %v577, 0.5
      %v674 = vmul.f32 %v580, 0.5
      %v675 = vmul.f32 %v585, 0.5
      %v676 = vmul.f32 %v588, 0.5
      %v677 = vmul.f32 %v593, 0.5
      %v678 = vmul.f32 %v596, 0.5
      %v679 = vmul.f32 %v601, 0.5
      %v680 = vmul.f32 %v604, 0.5
      %v681 = vmul.f32 %v609, 0.5
      %v682 = vmul.f32 %v612, 0.5
      %v683 = vmul.f32 %v617, 0.5
      %v684 = vmul.f32 %v620, 0.5
      %v685 = vmul.f32 %v625, 0.5
      %v686 = vmul.f32 %v628, 0.5
      %v687 = vmul.f32 %v633, 0.5
      %v688 = vmul.f32 %v636, 0.5
      %v689 = vmul.f32 %v641, 0.5
      %v690 = vmul.f32 %v644, 0.5
      %v691 = vmul.f32 %v649, 0.5
      %v692 = vmul.f32 %v652, 0.5
      %v693 = vmul.f32 %v657, 0.5
      %v694 = vmul.f32 %v660, 0.5
      %v695 = vtanh.pop %v663
      %v696 = vtanh.pop %v664
      %v697 = vtanh.pop %v665
      %v698 = vtanh.pop %v666
      %v699 = vtanh.pop %v667
      %v700 = vtanh.pop %v668
      %v701 = vtanh.pop %v669
      %v702 = vtanh.pop %v670
      %v703 = vtanh.pop %v671
      %v704 = vtanh.pop %v672
      %v705 = vtanh.pop %v673
      %v706 = vtanh.pop %v674
      %v707 = vtanh.pop %v675
      %v708 = vtanh.pop %v676
      %v709 = vtanh.pop %v677
      %v710 = vtanh.pop %v678
      %v711 = vtanh.pop %v679
      %v712 = vtanh.pop %v680
      %v713 = vtanh.pop %v681
      %v714 = vtanh.pop %v682
      %v715 = vtanh.pop %v683
      %v716 = vtanh.pop %v684
      %v717 = vtanh.pop %v685
      %v718 = vtanh.pop %v686
      %v719 = vtanh.pop %v687
      %v720 = vtanh.pop %v688
      %v721 = vtanh.pop %v689
      %v722 = vtanh.pop %v690
      %v723 = vtanh.pop %v691
      %v724 = vtanh.pop %v692
      %v725 = vtanh.pop %v693
      %v726 = vtanh.pop %v694
      %v727 = vmul.f32 %v695, 0.5
      %v728 = vmul.f32 %v696, 0.5
      %v729 = vmul.f32 %v697, 0.5
      %v730 = vmul.f32 %v698, 0.5
      %v731 = vmul.f32 %v699, 0.5
      %v732 = vmul.f32 %v700, 0.5
      %v733 = vmul.f32 %v701, 0.5
      %v734 = vmul.f32 %v702, 0.5
      %v735 = vmul.f32 %v703, 0.5
      %v736 = vmul.f32 %v704, 0.5
      %v737 = vmul.f32 %v705, 0.5
      %v738 = vmul.f32 %v706, 0.5
      %v739 = vmul.f32 %v707, 0.5
      %v740 = vmul.f32 %v708, 0.5
      %v741 = vmul.f32 %v709, 0.5
      %v742 = vmul.f32 %v710, 0.5
      %v743 = vmul.f32 %v711, 0.5
      %v744 = vmul.f32 %v712, 0.5
      %v745 = vmul.f32 %v713, 0.5
      %v746 = vmul.f32 %v714, 0.5
      %v747 = vmul.f32 %v715, 0.5
      %v748 = vmul.f32 %v716, 0.5
      %v749 = vmul.f32 %v717, 0.5
      %v750 = vmul.f32 %v718, 0.5
      %v751 = vmul.f32 %v719, 0.5
      %v752 = vmul.f32 %v720, 0.5
      %v753 = vmul.f32 %v721, 0.5
      %v754 = vmul.f32 %v722, 0.5
      %v755 = vmul.f32 %v723, 0.5
      %v756 = vmul.f32 %v724, 0.5
      %v757 = vmul.f32 %v725, 0.5
      %v758 = vmul.f32 %v726, 0.5
      %v759 = vadd.f32 %v727, 0.5
      %v760 = vadd.f32 %v728, 0.5
      %v761 = vadd.f32 %v729, 0.5
      %v762 = vadd.f32 %v730, 0.5
      %v763 = vadd.f32 %v731, 0.5
      %v764 = vadd.f32 %v732, 0.5
      %v765 = vadd.f32 %v733, 0.5
      %v766 = vadd.f32 %v734, 0.5
      %v767 = vadd.f32 %v735, 0.5
      %v768 = vadd.f32 %v736, 0.5
      %v769 = vadd.f32 %v737, 0.5
      %v770 = vadd.f32 %v738, 0.5
      %v771 = vadd.f32 %v739, 0.5
      %v772 = vadd.f32 %v740, 0.5
      %v773 = vadd.f32 %v741, 0.5
      %v774 = vadd.f32 %v742, 0.5
      %v775 = vadd.f32 %v743, 0.5
      %v776 = vadd.f32 %v744, 0.5
      %v777 = vadd.f32 %v745, 0.5
      %v778 = vadd.f32 %v746, 0.5
      %v779 = vadd.f32 %v747, 0.5
      %v780 = vadd.f32 %v748, 0.5
      %v781 = vadd.f32 %v749, 0.5
      %v782 = vadd.f32 %v750, 0.5
      %v783 = vadd.f32 %v751, 0.5
      %v784 = vadd.f32 %v752, 0.5
      %v785 = vadd.f32 %v753, 0.5
      %v786 = vadd.f32 %v754, 0.5
      %v787 = vadd.f32 %v755, 0.5
      %v788 = vadd.f32 %v756, 0.5
      %v789 = vadd.f32 %v757, 0.5
      %v790 = vadd.f32 %v758, 0.5
      %v791 = vmul.f32 %v537, %v759
      %v792 = vmul.f32 %v540, %v760
      %v793 = vmul.f32 %v545, %v761
      %v794 = vmul.f32 %v548, %v762
      %v795 = vmul.f32 %v553, %v763
      %v796 = vmul.f32 %v556, %v764
      %v797 = vmul.f32 %v561, %v765
      %v798 = vmul.f32 %v564, %v766
      %v799 = vmul.f32 %v569, %v767
      %v800 = vmul.f32 %v572, %v768
      %v801 = vmul.f32 %v577, %v769
      %v802 = vmul.f32 %v580, %v770
      %v803 = vmul.f32 %v585, %v771
      %v804 = vmul.f32 %v588, %v772
      %v805 = vmul.f32 %v593, %v773
      %v806 = vmul.f32 %v596, %v774
      %v807 = vmul.f32 %v601, %v775
      %v808 = vmul.f32 %v604, %v776
      %v809 = vmul.f32 %v609, %v777
      %v810 = vmul.f32 %v612, %v778
      %v811 = vmul.f32 %v617, %v779
      %v812 = vmul.f32 %v620, %v780
      %v813 = vmul.f32 %v625, %v781
      %v814 = vmul.f32 %v628, %v782
      %v815 = vmul.f32 %v633, %v783
      %v816 = vmul.f32 %v636, %v784
      %v817 = vmul.f32 %v641, %v785
      %v818 = vmul.f32 %v644, %v786
      %v819 = vmul.f32 %v649, %v787
      %v820 = vmul.f32 %v652, %v788
      %v821 = vmul.f32 %v657, %v789
      %v822 = vmul.f32 %v660, %v790
      %v823 = vpack.c.bf16 %v792, %v791
      %v824 = vpack.c.bf16 %v794, %v793
      %v825 = vpack.c.bf16 %v796, %v795
      %v826 = vpack.c.bf16 %v798, %v797
      %v827 = vpack.c.bf16 %v800, %v799
      %v828 = vpack.c.bf16 %v802, %v801
      %v829 = vpack.c.bf16 %v804, %v803
      %v830 = vpack.c.bf16 %v806, %v805
      %v831 = vpack.c.bf16 %v808, %v807
      %v832 = vpack.c.bf16 %v810, %v809
      %v833 = vpack.c.bf16 %v812, %v811
      %v834 = vpack.c.bf16 %v814, %v813
      %v835 = vpack.c.bf16 %v816, %v815
      %v836 = vpack.c.bf16 %v818, %v817
      %v837 = vpack.c.bf16 %v820, %v819
      %v838 = vpack.c.bf16 %v822, %v821
      %v839 = vld [vmem:[%s3] sm:$0xff]
      %v840 = vld [vmem:[%s3 + $0x28] sm:$0xff]
      %v841 = vld [vmem:[%s3 + $0x50] sm:$0xff]
      %v842 = vld [vmem:[%s3 + $0x78] sm:$0xff]
      %v843 = vld [vmem:[%s4] sm:$0x3]
      %v845 = vlaneseq
      %v846 = vshrl.u32 %v845, 7
      %v847 = vsub.s32 0, %v846
      %v848 = vrot.slane %v843, %v847
      %v849 = vlaneseq
      %v850 = vshrl.u32 %v849, 7
      %v851 = vsub.s32 1, %v850
      %v852 = vrot.slane %v843, %v851
      %v859 = vunpack.c.l.b16 %v839
      %v860 = vunpack.c.h.b16 %v839
      %v861 = vunpack.c.l.b16 %v840
      %v862 = vunpack.c.h.b16 %v840
      %v863 = vunpack.c.l.b16 %v841
      %v864 = vunpack.c.h.b16 %v841
      %v865 = vunpack.c.l.b16 %v842
      %v866 = vunpack.c.h.b16 %v842
      %v867 = vpack.c.b16 %v861, %v859
      %v868 = vpack.c.b16 %v862, %v860
      %v869 = vpack.c.b16 %v865, %v863
      %v870 = vpack.c.b16 %v866, %v864
      %vm875 = vcmask 261120
      %v877 = vsel %vm875, %v823, 0
      %v880 = vsel %vm875, %v824, 0
      %v883 = vsel %vm875, %v825, 0
      %v886 = vsel %vm875, %v826, 0
      %v889 = vsel %vm875, %v827, 0
      %v892 = vsel %vm875, %v828, 0
      %v895 = vsel %vm875, %v829, 0
      %v898 = vsel %vm875, %v830, 0
      %v901 = vsel %vm875, %v831, 0
      %v904 = vsel %vm875, %v832, 0
      %v907 = vsel %vm875, %v833, 0
      %v910 = vsel %vm875, %v834, 0
      %v913 = vsel %vm875, %v835, 0
      %v916 = vsel %vm875, %v836, 0
      %v919 = vsel %vm875, %v837, 0
      %v922 = vsel %vm875, %v838, 0
      %924 = vmatprep.subr.bf16.mxu0 0
      %925 = vmatpush1.bf16.msra.mxu0 0
      %926 = vmatprep.subr.bf16.mxu0 0
      %927 = vmatpush1.bf16.msra.mxu0 0
      %928 = vmatprep.subr.bf16.mxu0 0
      %929 = vmatpush1.bf16.msra.mxu0 0
      %930 = vmatprep.subr.bf16.mxu0 0
      %931 = vmatpush1.bf16.msra.mxu0 0
      %932 = vmatprep.subr.bf16.mxu0 0
      %933 = vmatpush1.bf16.msra.mxu0 0
      %934 = vmatprep.subr.bf16.mxu0 0
      %935 = vmatpush1.bf16.msra.mxu0 0
      %936 = vmatprep.subr.bf16.mxu0 %v870
      %937 = vmatpush1.bf16.msra.mxu0 %v869
      %938 = vmatprep.subr.bf16.mxu0 %v868
      %939 = vmatpush1.bf16.msra.mxu0 %v867
      %940 = vmatprep.subr.bf16.mxu0 0
      %941 = vmatpush2.bf16.msra.mxu0 0
      %942 = vmatprep.subr.bf16.mxu0 0
      %943 = vmatpush2.bf16.msra.mxu0 0
      %944 = vmatprep.subr.bf16.mxu0 0
      %945 = vmatpush2.bf16.msra.mxu0 0
      %946 = vmatprep.subr.bf16.mxu0 0
      %947 = vmatpush2.bf16.msra.mxu0 0
      %948 = vmatprep.subr.bf16.mxu0 0
      %949 = vmatpush2.bf16.msra.mxu0 0
      %950 = vmatprep.subr.bf16.mxu0 0
      %951 = vmatpush2.bf16.msra.mxu0 0
      %952 = vmatprep.subr.bf16.mxu0 0
      %953 = vmatpush2.bf16.msra.mxu0 0
      %954 = vmatprep.subr.bf16.mxu0 0
      %955 = vmatpush2.bf16.msra.mxu0 0
      %956 = vmatprep.mubr.bf16.mxu0 0
      %957 = vmatmul.mubr.bf16.gmra.mxu0 %v877
      %v958 = vpop.f32.mrf.mxu0
      %v959 = vadd.f32 %v848, %v958
      %v960 = vpop.f32.mrf.mxu0
      %v961 = vadd.f32 %v852, %v960
      %v962 = vpop.f32.mrf.mxu0
      %v963 = vadd.f32 %v848, %v962
      %v964 = vpop.f32.mrf.mxu0
      %v965 = vadd.f32 %v852, %v964
      %966 = vmatprep.mubr.bf16.mxu0 0
      %967 = vmatmul.mubr.bf16.gmra.mxu0 %v880
      %v968 = vpop.f32.mrf.mxu0
      %v969 = vadd.f32 %v848, %v968
      %v970 = vpop.f32.mrf.mxu0
      %v971 = vadd.f32 %v852, %v970
      %v972 = vpop.f32.mrf.mxu0
      %v973 = vadd.f32 %v848, %v972
      %v974 = vpop.f32.mrf.mxu0
      %v975 = vadd.f32 %v852, %v974
      %976 = vmatprep.mubr.bf16.mxu0 0
      %977 = vmatmul.mubr.bf16.gmra.mxu0 %v883
      %v978 = vpop.f32.mrf.mxu0
      %v979 = vadd.f32 %v848, %v978
      %v980 = vpop.f32.mrf.mxu0
      %v981 = vadd.f32 %v852, %v980
      %v982 = vpop.f32.mrf.mxu0
      %v983 = vadd.f32 %v848, %v982
      %v984 = vpop.f32.mrf.mxu0
      %v985 = vadd.f32 %v852, %v984
      %986 = vmatprep.mubr.bf16.mxu0 0
      %987 = vmatmul.mubr.bf16.gmra.mxu0 %v886
      %v988 = vpop.f32.mrf.mxu0
      %v989 = vadd.f32 %v848, %v988
      %v990 = vpop.f32.mrf.mxu0
      %v991 = vadd.f32 %v852, %v990
      %v992 = vpop.f32.mrf.mxu0
      %v993 = vadd.f32 %v848, %v992
      %v994 = vpop.f32.mrf.mxu0
      %v995 = vadd.f32 %v852, %v994
      %996 = vmatprep.mubr.bf16.mxu0 0
      %997 = vmatmul.mubr.bf16.gmra.mxu0 %v889
      %v998 = vpop.f32.mrf.mxu0
      %v999 = vadd.f32 %v848, %v998
      %v1000 = vpop.f32.mrf.mxu0
      %v1001 = vadd.f32 %v852, %v1000
      %v1002 = vpop.f32.mrf.mxu0
      %v1003 = vadd.f32 %v848, %v1002
      %v1004 = vpop.f32.mrf.mxu0
      %v1005 = vadd.f32 %v852, %v1004
      %1006 = vmatprep.mubr.bf16.mxu0 0
      %1007 = vmatmul.mubr.bf16.gmra.mxu0 %v892
      %v1008 = vpop.f32.mrf.mxu0
      %v1009 = vadd.f32 %v848, %v1008
      %v1010 = vpop.f32.mrf.mxu0
      %v1011 = vadd.f32 %v852, %v1010
      %v1012 = vpop.f32.mrf.mxu0
      %v1013 = vadd.f32 %v848, %v1012
      %v1014 = vpop.f32.mrf.mxu0
      %v1015 = vadd.f32 %v852, %v1014
      %1016 = vmatprep.mubr.bf16.mxu0 0
      %1017 = vmatmul.mubr.bf16.gmra.mxu0 %v895
      %v1018 = vpop.f32.mrf.mxu0
      %v1019 = vadd.f32 %v848, %v1018
      %v1020 = vpop.f32.mrf.mxu0
      %v1021 = vadd.f32 %v852, %v1020
      %v1022 = vpop.f32.mrf.mxu0
      %v1023 = vadd.f32 %v848, %v1022
      %v1024 = vpop.f32.mrf.mxu0
      %v1025 = vadd.f32 %v852, %v1024
      %1026 = vmatprep.mubr.bf16.mxu0 0
      %1027 = vmatmul.mubr.bf16.gmra.mxu0 %v898
      %v1028 = vpop.f32.mrf.mxu0
      %v1029 = vadd.f32 %v848, %v1028
      %v1030 = vpop.f32.mrf.mxu0
      %v1031 = vadd.f32 %v852, %v1030
      %v1032 = vpop.f32.mrf.mxu0
      %v1033 = vadd.f32 %v848, %v1032
      %v1034 = vpop.f32.mrf.mxu0
      %v1035 = vadd.f32 %v852, %v1034
      %1036 = vmatprep.mubr.bf16.mxu0 0
      %1037 = vmatmul.mubr.bf16.gmra.mxu0 %v901
      %v1038 = vpop.f32.mrf.mxu0
      %v1039 = vadd.f32 %v848, %v1038
      %v1040 = vpop.f32.mrf.mxu0
      %v1041 = vadd.f32 %v852, %v1040
      %v1042 = vpop.f32.mrf.mxu0
      %v1043 = vadd.f32 %v848, %v1042
      %v1044 = vpop.f32.mrf.mxu0
      %v1045 = vadd.f32 %v852, %v1044
      %1046 = vmatprep.mubr.bf16.mxu0 0
      %1047 = vmatmul.mubr.bf16.gmra.mxu0 %v904
      %v1048 = vpop.f32.mrf.mxu0
      %v1049 = vadd.f32 %v848, %v1048
      %v1050 = vpop.f32.mrf.mxu0
      %v1051 = vadd.f32 %v852, %v1050
      %v1052 = vpop.f32.mrf.mxu0
      %v1053 = vadd.f32 %v848, %v1052
      %v1054 = vpop.f32.mrf.mxu0
      %v1055 = vadd.f32 %v852, %v1054
      %1056 = vmatprep.mubr.bf16.mxu0 0
      %1057 = vmatmul.mubr.bf16.gmra.mxu0 %v907
      %v1058 = vpop.f32.mrf.mxu0
      %v1059 = vadd.f32 %v848, %v1058
      %v1060 = vpop.f32.mrf.mxu0
      %v1061 = vadd.f32 %v852, %v1060
      %v1062 = vpop.f32.mrf.mxu0
      %v1063 = vadd.f32 %v848, %v1062
      %v1064 = vpop.f32.mrf.mxu0
      %v1065 = vadd.f32 %v852, %v1064
      %1066 = vmatprep.mubr.bf16.mxu0 0
      %1067 = vmatmul.mubr.bf16.gmra.mxu0 %v910
      %v1068 = vpop.f32.mrf.mxu0
      %v1069 = vadd.f32 %v848, %v1068
      %v1070 = vpop.f32.mrf.mxu0
      %v1071 = vadd.f32 %v852, %v1070
      %v1072 = vpop.f32.mrf.mxu0
      %v1073 = vadd.f32 %v848, %v1072
      %v1074 = vpop.f32.mrf.mxu0
      %v1075 = vadd.f32 %v852, %v1074
      %1076 = vmatprep.mubr.bf16.mxu0 0
      %1077 = vmatmul.mubr.bf16.gmra.mxu0 %v913
      %v1078 = vpop.f32.mrf.mxu0
      %v1079 = vadd.f32 %v848, %v1078
      %v1080 = vpop.f32.mrf.mxu0
      %v1081 = vadd.f32 %v852, %v1080
      %v1082 = vpop.f32.mrf.mxu0
      %v1083 = vadd.f32 %v848, %v1082
      %v1084 = vpop.f32.mrf.mxu0
      %v1085 = vadd.f32 %v852, %v1084
      %1086 = vmatprep.mubr.bf16.mxu0 0
      %1087 = vmatmul.mubr.bf16.gmra.mxu0 %v916
      %v1088 = vpop.f32.mrf.mxu0
      %v1089 = vadd.f32 %v848, %v1088
      %v1090 = vpop.f32.mrf.mxu0
      %v1091 = vadd.f32 %v852, %v1090
      %v1092 = vpop.f32.mrf.mxu0
      %v1093 = vadd.f32 %v848, %v1092
      %v1094 = vpop.f32.mrf.mxu0
      %v1095 = vadd.f32 %v852, %v1094
      %1096 = vmatprep.mubr.bf16.mxu0 0
      %1097 = vmatmul.mubr.bf16.gmra.mxu0 %v919
      %v1098 = vpop.f32.mrf.mxu0
      %v1099 = vadd.f32 %v848, %v1098
      %v1100 = vpop.f32.mrf.mxu0
      %v1101 = vadd.f32 %v852, %v1100
      %v1102 = vpop.f32.mrf.mxu0
      %v1103 = vadd.f32 %v848, %v1102
      %v1104 = vpop.f32.mrf.mxu0
      %v1105 = vadd.f32 %v852, %v1104
      %1106 = vmatprep.mubr.bf16.mxu0 0
      %1107 = vmatmul.mubr.bf16.gmra.mxu0 %v922
      %v1108 = vpop.f32.mrf.mxu0
      %v1109 = vadd.f32 %v848, %v1108
      %v1110 = vpop.f32.mrf.mxu0
      %v1111 = vadd.f32 %v852, %v1110
      %v1112 = vpop.f32.mrf.mxu0
      %v1113 = vadd.f32 %v848, %v1112
      %v1114 = vpop.f32.mrf.mxu0
      %v1115 = vadd.f32 %v852, %v1114
      %1116 = vdwg.mxu0
      %v1117 = vmul.f32 %v959, 0.5
      %v1118 = vmul.f32 %v961, 0.5
      %v1119 = vmul.f32 %v963, 0.5
      %v1120 = vmul.f32 %v965, 0.5
      %v1121 = vmul.f32 %v969, 0.5
      %v1122 = vmul.f32 %v971, 0.5
      %v1123 = vmul.f32 %v973, 0.5
      %v1124 = vmul.f32 %v975, 0.5
      %v1125 = vmul.f32 %v979, 0.5
      %v1126 = vmul.f32 %v981, 0.5
      %v1127 = vmul.f32 %v983, 0.5
      %v1128 = vmul.f32 %v985, 0.5
      %v1129 = vmul.f32 %v989, 0.5
      %v1130 = vmul.f32 %v991, 0.5
      %v1131 = vmul.f32 %v993, 0.5
      %v1132 = vmul.f32 %v995, 0.5
      %v1133 = vmul.f32 %v999, 0.5
      %v1134 = vmul.f32 %v1001, 0.5
      %v1135 = vmul.f32 %v1003, 0.5
      %v1136 = vmul.f32 %v1005, 0.5
      %v1137 = vmul.f32 %v1009, 0.5
      %v1138 = vmul.f32 %v1011, 0.5
      %v1139 = vmul.f32 %v1013, 0.5
      %v1140 = vmul.f32 %v1015, 0.5
      %v1141 = vmul.f32 %v1019, 0.5
      %v1142 = vmul.f32 %v1021, 0.5
      %v1143 = vmul.f32 %v1023, 0.5
      %v1144 = vmul.f32 %v1025, 0.5
      %v1145 = vmul.f32 %v1029, 0.5
      %v1146 = vmul.f32 %v1031, 0.5
      %v1147 = vmul.f32 %v1033, 0.5
      %v1148 = vmul.f32 %v1035, 0.5
      %v1149 = vmul.f32 %v1039, 0.5
      %v1150 = vmul.f32 %v1041, 0.5
      %v1151 = vmul.f32 %v1043, 0.5
      %v1152 = vmul.f32 %v1045, 0.5
      %v1153 = vmul.f32 %v1049, 0.5
      %v1154 = vmul.f32 %v1051, 0.5
      %v1155 = vmul.f32 %v1053, 0.5
      %v1156 = vmul.f32 %v1055, 0.5
      %v1157 = vmul.f32 %v1059, 0.5
      %v1158 = vmul.f32 %v1061, 0.5
      %v1159 = vmul.f32 %v1063, 0.5
      %v1160 = vmul.f32 %v1065, 0.5
      %v1161 = vmul.f32 %v1069, 0.5
      %v1162 = vmul.f32 %v1071, 0.5
      %v1163 = vmul.f32 %v1073, 0.5
      %v1164 = vmul.f32 %v1075, 0.5
      %v1165 = vmul.f32 %v1079, 0.5
      %v1166 = vmul.f32 %v1081, 0.5
      %v1167 = vmul.f32 %v1083, 0.5
      %v1168 = vmul.f32 %v1085, 0.5
      %v1169 = vmul.f32 %v1089, 0.5
      %v1170 = vmul.f32 %v1091, 0.5
      %v1171 = vmul.f32 %v1093, 0.5
      %v1172 = vmul.f32 %v1095, 0.5
      %v1173 = vmul.f32 %v1099, 0.5
      %v1174 = vmul.f32 %v1101, 0.5
      %v1175 = vmul.f32 %v1103, 0.5
      %v1176 = vmul.f32 %v1105, 0.5
      %v1177 = vmul.f32 %v1109, 0.5
      %v1178 = vmul.f32 %v1111, 0.5
      %v1179 = vmul.f32 %v1113, 0.5
      %v1180 = vmul.f32 %v1115, 0.5
      %v1181 = vtanh.pop %v1117
      %v1182 = vtanh.pop %v1118
      %v1183 = vtanh.pop %v1119
      %v1184 = vtanh.pop %v1120
      %v1185 = vtanh.pop %v1121
      %v1186 = vtanh.pop %v1122
      %v1187 = vtanh.pop %v1123
      %v1188 = vtanh.pop %v1124
      %v1189 = vtanh.pop %v1125
      %v1190 = vtanh.pop %v1126
      %v1191 = vtanh.pop %v1127
      %v1192 = vtanh.pop %v1128
      %v1193 = vtanh.pop %v1129
      %v1194 = vtanh.pop %v1130
      %v1195 = vtanh.pop %v1131
      %v1196 = vtanh.pop %v1132
      %v1197 = vtanh.pop %v1133
      %v1198 = vtanh.pop %v1134
      %v1199 = vtanh.pop %v1135
      %v1200 = vtanh.pop %v1136
      %v1201 = vtanh.pop %v1137
      %v1202 = vtanh.pop %v1138
      %v1203 = vtanh.pop %v1139
      %v1204 = vtanh.pop %v1140
      %v1205 = vtanh.pop %v1141
      %v1206 = vtanh.pop %v1142
      %v1207 = vtanh.pop %v1143
      %v1208 = vtanh.pop %v1144
      %v1209 = vtanh.pop %v1145
      %v1210 = vtanh.pop %v1146
      %v1211 = vtanh.pop %v1147
      %v1212 = vtanh.pop %v1148
      %v1213 = vtanh.pop %v1149
      %v1214 = vtanh.pop %v1150
      %v1215 = vtanh.pop %v1151
      %v1216 = vtanh.pop %v1152
      %v1217 = vtanh.pop %v1153
      %v1218 = vtanh.pop %v1154
      %v1219 = vtanh.pop %v1155
      %v1220 = vtanh.pop %v1156
      %v1221 = vtanh.pop %v1157
      %v1222 = vtanh.pop %v1158
      %v1223 = vtanh.pop %v1159
      %v1224 = vtanh.pop %v1160
      %v1225 = vtanh.pop %v1161
      %v1226 = vtanh.pop %v1162
      %v1227 = vtanh.pop %v1163
      %v1228 = vtanh.pop %v1164
      %v1229 = vtanh.pop %v1165
      %v1230 = vtanh.pop %v1166
      %v1231 = vtanh.pop %v1167
      %v1232 = vtanh.pop %v1168
      %v1233 = vtanh.pop %v1169
      %v1234 = vtanh.pop %v1170
      %v1235 = vtanh.pop %v1171
      %v1236 = vtanh.pop %v1172
      %v1237 = vtanh.pop %v1173
      %v1238 = vtanh.pop %v1174
      %v1239 = vtanh.pop %v1175
      %v1240 = vtanh.pop %v1176
      %v1241 = vtanh.pop %v1177
      %v1242 = vtanh.pop %v1178
      %v1243 = vtanh.pop %v1179
      %v1244 = vtanh.pop %v1180
      %v1245 = vmul.f32 %v1181, 0.5
      %v1246 = vmul.f32 %v1182, 0.5
      %v1247 = vmul.f32 %v1183, 0.5
      %v1248 = vmul.f32 %v1184, 0.5
      %v1249 = vmul.f32 %v1185, 0.5
      %v1250 = vmul.f32 %v1186, 0.5
      %v1251 = vmul.f32 %v1187, 0.5
      %v1252 = vmul.f32 %v1188, 0.5
      %v1253 = vmul.f32 %v1189, 0.5
      %v1254 = vmul.f32 %v1190, 0.5
      %v1255 = vmul.f32 %v1191, 0.5
      %v1256 = vmul.f32 %v1192, 0.5
      %v1257 = vmul.f32 %v1193, 0.5
      %v1258 = vmul.f32 %v1194, 0.5
      %v1259 = vmul.f32 %v1195, 0.5
      %v1260 = vmul.f32 %v1196, 0.5
      %v1261 = vmul.f32 %v1197, 0.5
      %v1262 = vmul.f32 %v1198, 0.5
      %v1263 = vmul.f32 %v1199, 0.5
      %v1264 = vmul.f32 %v1200, 0.5
      %v1265 = vmul.f32 %v1201, 0.5
      %v1266 = vmul.f32 %v1202, 0.5
      %v1267 = vmul.f32 %v1203, 0.5
      %v1268 = vmul.f32 %v1204, 0.5
      %v1269 = vmul.f32 %v1205, 0.5
      %v1270 = vmul.f32 %v1206, 0.5
      %v1271 = vmul.f32 %v1207, 0.5
      %v1272 = vmul.f32 %v1208, 0.5
      %v1273 = vmul.f32 %v1209, 0.5
      %v1274 = vmul.f32 %v1210, 0.5
      %v1275 = vmul.f32 %v1211, 0.5
      %v1276 = vmul.f32 %v1212, 0.5
      %v1277 = vmul.f32 %v1213, 0.5
      %v1278 = vmul.f32 %v1214, 0.5
      %v1279 = vmul.f32 %v1215, 0.5
      %v1280 = vmul.f32 %v1216, 0.5
      %v1281 = vmul.f32 %v1217, 0.5
      %v1282 = vmul.f32 %v1218, 0.5
      %v1283 = vmul.f32 %v1219, 0.5
      %v1284 = vmul.f32 %v1220, 0.5
      %v1285 = vmul.f32 %v1221, 0.5
      %v1286 = vmul.f32 %v1222, 0.5
      %v1287 = vmul.f32 %v1223, 0.5
      %v1288 = vmul.f32 %v1224, 0.5
      %v1289 = vmul.f32 %v1225, 0.5
      %v1290 = vmul.f32 %v1226, 0.5
      %v1291 = vmul.f32 %v1227, 0.5
      %v1292 = vmul.f32 %v1228, 0.5
      %v1293 = vmul.f32 %v1229, 0.5
      %v1294 = vmul.f32 %v1230, 0.5
      %v1295 = vmul.f32 %v1231, 0.5
      %v1296 = vmul.f32 %v1232, 0.5
      %v1297 = vmul.f32 %v1233, 0.5
      %v1298 = vmul.f32 %v1234, 0.5
      %v1299 = vmul.f32 %v1235, 0.5
      %v1300 = vmul.f32 %v1236, 0.5
      %v1301 = vmul.f32 %v1237, 0.5
      %v1302 = vmul.f32 %v1238, 0.5
      %v1303 = vmul.f32 %v1239, 0.5
      %v1304 = vmul.f32 %v1240, 0.5
      %v1305 = vmul.f32 %v1241, 0.5
      %v1306 = vmul.f32 %v1242, 0.5
      %v1307 = vmul.f32 %v1243, 0.5
      %v1308 = vmul.f32 %v1244, 0.5
      %v1309 = vadd.f32 %v1245, 0.5
      %v1310 = vadd.f32 %v1246, 0.5
      %v1311 = vadd.f32 %v1247, 0.5
      %v1312 = vadd.f32 %v1248, 0.5
      %v1313 = vadd.f32 %v1249, 0.5
      %v1314 = vadd.f32 %v1250, 0.5
      %v1315 = vadd.f32 %v1251, 0.5
      %v1316 = vadd.f32 %v1252, 0.5
      %v1317 = vadd.f32 %v1253, 0.5
      %v1318 = vadd.f32 %v1254, 0.5
      %v1319 = vadd.f32 %v1255, 0.5
      %v1320 = vadd.f32 %v1256, 0.5
      %v1321 = vadd.f32 %v1257, 0.5
      %v1322 = vadd.f32 %v1258, 0.5
      %v1323 = vadd.f32 %v1259, 0.5
      %v1324 = vadd.f32 %v1260, 0.5
      %v1325 = vadd.f32 %v1261, 0.5
      %v1326 = vadd.f32 %v1262, 0.5
      %v1327 = vadd.f32 %v1263, 0.5
      %v1328 = vadd.f32 %v1264, 0.5
      %v1329 = vadd.f32 %v1265, 0.5
      %v1330 = vadd.f32 %v1266, 0.5
      %v1331 = vadd.f32 %v1267, 0.5
      %v1332 = vadd.f32 %v1268, 0.5
      %v1333 = vadd.f32 %v1269, 0.5
      %v1334 = vadd.f32 %v1270, 0.5
      %v1335 = vadd.f32 %v1271, 0.5
      %v1336 = vadd.f32 %v1272, 0.5
      %v1337 = vadd.f32 %v1273, 0.5
      %v1338 = vadd.f32 %v1274, 0.5
      %v1339 = vadd.f32 %v1275, 0.5
      %v1340 = vadd.f32 %v1276, 0.5
      %v1341 = vadd.f32 %v1277, 0.5
      %v1342 = vadd.f32 %v1278, 0.5
      %v1343 = vadd.f32 %v1279, 0.5
      %v1344 = vadd.f32 %v1280, 0.5
      %v1345 = vadd.f32 %v1281, 0.5
      %v1346 = vadd.f32 %v1282, 0.5
      %v1347 = vadd.f32 %v1283, 0.5
      %v1348 = vadd.f32 %v1284, 0.5
      %v1349 = vadd.f32 %v1285, 0.5
      %v1350 = vadd.f32 %v1286, 0.5
      %v1351 = vadd.f32 %v1287, 0.5
      %v1352 = vadd.f32 %v1288, 0.5
      %v1353 = vadd.f32 %v1289, 0.5
      %v1354 = vadd.f32 %v1290, 0.5
      %v1355 = vadd.f32 %v1291, 0.5
      %v1356 = vadd.f32 %v1292, 0.5
      %v1357 = vadd.f32 %v1293, 0.5
      %v1358 = vadd.f32 %v1294, 0.5
      %v1359 = vadd.f32 %v1295, 0.5
      %v1360 = vadd.f32 %v1296, 0.5
      %v1361 = vadd.f32 %v1297, 0.5
      %v1362 = vadd.f32 %v1298, 0.5
      %v1363 = vadd.f32 %v1299, 0.5
      %v1364 = vadd.f32 %v1300, 0.5
      %v1365 = vadd.f32 %v1301, 0.5
      %v1366 = vadd.f32 %v1302, 0.5
      %v1367 = vadd.f32 %v1303, 0.5
      %v1368 = vadd.f32 %v1304, 0.5
      %v1369 = vadd.f32 %v1305, 0.5
      %v1370 = vadd.f32 %v1306, 0.5
      %v1371 = vadd.f32 %v1307, 0.5
      %v1372 = vadd.f32 %v1308, 0.5
      %v1373 = vmul.f32 %v959, %v1309
      %v1374 = vmul.f32 %v961, %v1310
      %v1375 = vmul.f32 %v963, %v1311
      %v1376 = vmul.f32 %v965, %v1312
      %v1377 = vmul.f32 %v969, %v1313
      %v1378 = vmul.f32 %v971, %v1314
      %v1379 = vmul.f32 %v973, %v1315
      %v1380 = vmul.f32 %v975, %v1316
      %v1381 = vmul.f32 %v979, %v1317
      %v1382 = vmul.f32 %v981, %v1318
      %v1383 = vmul.f32 %v983, %v1319
      %v1384 = vmul.f32 %v985, %v1320
      %v1385 = vmul.f32 %v989, %v1321
      %v1386 = vmul.f32 %v991, %v1322
      %v1387 = vmul.f32 %v993, %v1323
      %v1388 = vmul.f32 %v995, %v1324
      %v1389 = vmul.f32 %v999, %v1325
      %v1390 = vmul.f32 %v1001, %v1326
      %v1391 = vmul.f32 %v1003, %v1327
      %v1392 = vmul.f32 %v1005, %v1328
      %v1393 = vmul.f32 %v1009, %v1329
      %v1394 = vmul.f32 %v1011, %v1330
      %v1395 = vmul.f32 %v1013, %v1331
      %v1396 = vmul.f32 %v1015, %v1332
      %v1397 = vmul.f32 %v1019, %v1333
      %v1398 = vmul.f32 %v1021, %v1334
      %v1399 = vmul.f32 %v1023, %v1335
      %v1400 = vmul.f32 %v1025, %v1336
      %v1401 = vmul.f32 %v1029, %v1337
      %v1402 = vmul.f32 %v1031, %v1338
      %v1403 = vmul.f32 %v1033, %v1339
      %v1404 = vmul.f32 %v1035, %v1340
      %v1405 = vmul.f32 %v1039, %v1341
      %v1406 = vmul.f32 %v1041, %v1342
      %v1407 = vmul.f32 %v1043, %v1343
      %v1408 = vmul.f32 %v1045, %v1344
      %v1409 = vmul.f32 %v1049, %v1345
      %v1410 = vmul.f32 %v1051, %v1346
      %v1411 = vmul.f32 %v1053, %v1347
      %v1412 = vmul.f32 %v1055, %v1348
      %v1413 = vmul.f32 %v1059, %v1349
      %v1414 = vmul.f32 %v1061, %v1350
      %v1415 = vmul.f32 %v1063, %v1351
      %v1416 = vmul.f32 %v1065, %v1352
      %v1417 = vmul.f32 %v1069, %v1353
      %v1418 = vmul.f32 %v1071, %v1354
      %v1419 = vmul.f32 %v1073, %v1355
      %v1420 = vmul.f32 %v1075, %v1356
      %v1421 = vmul.f32 %v1079, %v1357
      %v1422 = vmul.f32 %v1081, %v1358
      %v1423 = vmul.f32 %v1083, %v1359
      %v1424 = vmul.f32 %v1085, %v1360
      %v1425 = vmul.f32 %v1089, %v1361
      %v1426 = vmul.f32 %v1091, %v1362
      %v1427 = vmul.f32 %v1093, %v1363
      %v1428 = vmul.f32 %v1095, %v1364
      %v1429 = vmul.f32 %v1099, %v1365
      %v1430 = vmul.f32 %v1101, %v1366
      %v1431 = vmul.f32 %v1103, %v1367
      %v1432 = vmul.f32 %v1105, %v1368
      %v1433 = vmul.f32 %v1109, %v1369
      %v1434 = vmul.f32 %v1111, %v1370
      %v1435 = vmul.f32 %v1113, %v1371
      %v1436 = vmul.f32 %v1115, %v1372
      %v1437 = vld [vmem:[#allocation2] sm:$0xff]
      %v1438 = vld [vmem:[#allocation2 + $0x8] sm:$0xff]
      %v1439 = vadd.f32 %v1373, %v1375
      %v1440 = vadd.f32 %v1439, %v1377
      %v1441 = vadd.f32 %v1440, %v1379
      %v1442 = vadd.f32 %v1441, %v1381
      %v1443 = vadd.f32 %v1442, %v1383
      %v1444 = vadd.f32 %v1443, %v1385
      %v1445 = vadd.f32 %v1444, %v1387
      %v1446 = vadd.f32 %v1445, %v1389
      %v1447 = vadd.f32 %v1446, %v1391
      %v1448 = vadd.f32 %v1447, %v1393
      %v1449 = vadd.f32 %v1448, %v1395
      %v1450 = vadd.f32 %v1449, %v1397
      %v1451 = vadd.f32 %v1450, %v1399
      %v1452 = vadd.f32 %v1451, %v1401
      %v1453 = vadd.f32 %v1452, %v1403
      %v1454 = vadd.f32 %v1453, %v1405
      %v1455 = vadd.f32 %v1454, %v1407
      %v1456 = vadd.f32 %v1455, %v1409
      %v1457 = vadd.f32 %v1456, %v1411
      %v1458 = vadd.f32 %v1457, %v1413
      %v1459 = vadd.f32 %v1458, %v1415
      %v1460 = vadd.f32 %v1459, %v1417
      %v1461 = vadd.f32 %v1460, %v1419
      %v1462 = vadd.f32 %v1461, %v1421
      %v1463 = vadd.f32 %v1462, %v1423
      %v1464 = vadd.f32 %v1463, %v1425
      %v1465 = vadd.f32 %v1464, %v1427
      %v1466 = vadd.f32 %v1465, %v1429
      %v1467 = vadd.f32 %v1466, %v1431
      %v1468 = vadd.f32 %v1467, %v1433
      %v1469 = vadd.f32 %v1468, %v1435
      %v1470 = vadd.f32 %v1374, %v1376
      %v1471 = vadd.f32 %v1470, %v1378
      %v1472 = vadd.f32 %v1471, %v1380
      %v1473 = vadd.f32 %v1472, %v1382
      %v1474 = vadd.f32 %v1473, %v1384
      %v1475 = vadd.f32 %v1474, %v1386
      %v1476 = vadd.f32 %v1475, %v1388
      %v1477 = vadd.f32 %v1476, %v1390
      %v1478 = vadd.f32 %v1477, %v1392
      %v1479 = vadd.f32 %v1478, %v1394
      %v1480 = vadd.f32 %v1479, %v1396
      %v1481 = vadd.f32 %v1480, %v1398
      %v1482 = vadd.f32 %v1481, %v1400
      %v1483 = vadd.f32 %v1482, %v1402
      %v1484 = vadd.f32 %v1483, %v1404
      %v1485 = vadd.f32 %v1484, %v1406
      %v1486 = vadd.f32 %v1485, %v1408
      %v1487 = vadd.f32 %v1486, %v1410
      %v1488 = vadd.f32 %v1487, %v1412
      %v1489 = vadd.f32 %v1488, %v1414
      %v1490 = vadd.f32 %v1489, %v1416
      %v1491 = vadd.f32 %v1490, %v1418
      %v1492 = vadd.f32 %v1491, %v1420
      %v1493 = vadd.f32 %v1492, %v1422
      %v1494 = vadd.f32 %v1493, %v1424
      %v1495 = vadd.f32 %v1494, %v1426
      %v1496 = vadd.f32 %v1495, %v1428
      %v1497 = vadd.f32 %v1496, %v1430
      %v1498 = vadd.f32 %v1497, %v1432
      %v1499 = vadd.f32 %v1498, %v1434
      %v1500 = vadd.f32 %v1499, %v1436
      %v1501 = vadd.f32 %v1437, %v1469
      %v1502 = vadd.f32 %v1438, %v1500
      %1503 = vst [vmem:[#allocation2] sm:$0xff] %v1501
      %1504 = vst [vmem:[#allocation2 + $0x8] sm:$0xff] %v1502
      %v1505 = vld [vmem:[%s3 + $0x8] sm:$0xff]
      %v1506 = vld [vmem:[%s3 + $0x30] sm:$0xff]
      %v1507 = vld [vmem:[%s3 + $0x58] sm:$0xff]
      %v1508 = vld [vmem:[%s3 + $0x80] sm:$0xff]
      %v1509 = vld [vmem:[%s4 + $0x2] sm:$0x3]
      %v1511 = vlaneseq
      %v1512 = vshrl.u32 %v1511, 7
      %v1513 = vsub.s32 0, %v1512
      %v1514 = vrot.slane %v1509, %v1513
      %v1515 = vlaneseq
      %v1516 = vshrl.u32 %v1515, 7
      %v1517 = vsub.s32 1, %v1516
      %v1518 = vrot.slane %v1509, %v1517
      %v1525 = vunpack.c.l.b16 %v1505
      %v1526 = vunpack.c.h.b16 %v1505
      %v1527 = vunpack.c.l.b16 %v1506
      %v1528 = vunpack.c.h.b16 %v1506
      %v1529 = vunpack.c.l.b16 %v1507
      %v1530 = vunpack.c.h.b16 %v1507
      %v1531 = vunpack.c.l.b16 %v1508
      %v1532 = vunpack.c.h.b16 %v1508
      %v1533 = vpack.c.b16 %v1527, %v1525
      %v1534 = vpack.c.b16 %v1528, %v1526
      %v1535 = vpack.c.b16 %v1531, %v1529
      %v1536 = vpack.c.b16 %v1532, %v1530
      %1541 = vmatprep.subr.bf16.mxu0 0
      %1542 = vmatpush1.bf16.msra.mxu0 0
      %1543 = vmatprep.subr.bf16.mxu0 0
      %1544 = vmatpush1.bf16.msra.mxu0 0
      %1545 = vmatprep.subr.bf16.mxu0 0
      %1546 = vmatpush1.bf16.msra.mxu0 0
      %1547 = vmatprep.subr.bf16.mxu0 0
      %1548 = vmatpush1.bf16.msra.mxu0 0
      %1549 = vmatprep.subr.bf16.mxu0 0
      %1550 = vmatpush1.bf16.msra.mxu0 0
      %1551 = vmatprep.subr.bf16.mxu0 0
      %1552 = vmatpush1.bf16.msra.mxu0 0
      %1553 = vmatprep.subr.bf16.mxu0 %v1536
      %1554 = vmatpush1.bf16.msra.mxu0 %v1535
      %1555 = vmatprep.subr.bf16.mxu0 %v1534
      %1556 = vmatpush1.bf16.msra.mxu0 %v1533
      %1557 = vmatprep.subr.bf16.mxu0 0
      %1558 = vmatpush2.bf16.msra.mxu0 0
      %1559 = vmatprep.subr.bf16.mxu0 0
      %1560 = vmatpush2.bf16.msra.mxu0 0
      %1561 = vmatprep.subr.bf16.mxu0 0
      %1562 = vmatpush2.bf16.msra.mxu0 0
      %1563 = vmatprep.subr.bf16.mxu0 0
      %1564 = vmatpush2.bf16.msra.mxu0 0
      %1565 = vmatprep.subr.bf16.mxu0 0
      %1566 = vmatpush2.bf16.msra.mxu0 0
      %1567 = vmatprep.subr.bf16.mxu0 0
      %1568 = vmatpush2.bf16.msra.mxu0 0
      %1569 = vmatprep.subr.bf16.mxu0 0
      %1570 = vmatpush2.bf16.msra.mxu0 0
      %1571 = vmatprep.subr.bf16.mxu0 0
      %1572 = vmatpush2.bf16.msra.mxu0 0
      %1573 = vmatprep.mubr.bf16.mxu0 0
      %1574 = vmatmul.mubr.bf16.gmra.mxu0 %v877
      %v1575 = vpop.f32.mrf.mxu0
      %v1576 = vadd.f32 %v1514, %v1575
      %v1577 = vpop.f32.mrf.mxu0
      %v1578 = vadd.f32 %v1518, %v1577
      %v1579 = vpop.f32.mrf.mxu0
      %v1580 = vadd.f32 %v1514, %v1579
      %v1581 = vpop.f32.mrf.mxu0
      %v1582 = vadd.f32 %v1518, %v1581
      %1583 = vmatprep.mubr.bf16.mxu0 0
      %1584 = vmatmul.mubr.bf16.gmra.mxu0 %v880
      %v1585 = vpop.f32.mrf.mxu0
      %v1586 = vadd.f32 %v1514, %v1585
      %v1587 = vpop.f32.mrf.mxu0
      %v1588 = vadd.f32 %v1518, %v1587
      %v1589 = vpop.f32.mrf.mxu0
      %v1590 = vadd.f32 %v1514, %v1589
      %v1591 = vpop.f32.mrf.mxu0
      %v1592 = vadd.f32 %v1518, %v1591
      %1593 = vmatprep.mubr.bf16.mxu0 0
      %1594 = vmatmul.mubr.bf16.gmra.mxu0 %v883
      %v1595 = vpop.f32.mrf.mxu0
      %v1596 = vadd.f32 %v1514, %v1595
      %v1597 = vpop.f32.mrf.mxu0
      %v1598 = vadd.f32 %v1518, %v1597
      %v1599 = vpop.f32.mrf.mxu0
      %v1600 = vadd.f32 %v1514, %v1599
      %v1601 = vpop.f32.mrf.mxu0
      %v1602 = vadd.f32 %v1518, %v1601
      %1603 = vmatprep.mubr.bf16.mxu0 0
      %1604 = vmatmul.mubr.bf16.gmra.mxu0 %v886
      %v1605 = vpop.f32.mrf.mxu0
      %v1606 = vadd.f32 %v1514, %v1605
      %v1607 = vpop.f32.mrf.mxu0
      %v1608 = vadd.f32 %v1518, %v1607
      %v1609 = vpop.f32.mrf.mxu0
      %v1610 = vadd.f32 %v1514, %v1609
      %v1611 = vpop.f32.mrf.mxu0
      %v1612 = vadd.f32 %v1518, %v1611
      %1613 = vmatprep.mubr.bf16.mxu0 0
      %1614 = vmatmul.mubr.bf16.gmra.mxu0 %v889
      %v1615 = vpop.f32.mrf.mxu0
      %v1616 = vadd.f32 %v1514, %v1615
      %v1617 = vpop.f32.mrf.mxu0
      %v1618 = vadd.f32 %v1518, %v1617
      %v1619 = vpop.f32.mrf.mxu0
      %v1620 = vadd.f32 %v1514, %v1619
      %v1621 = vpop.f32.mrf.mxu0
      %v1622 = vadd.f32 %v1518, %v1621
      %1623 = vmatprep.mubr.bf16.mxu0 0
      %1624 = vmatmul.mubr.bf16.gmra.mxu0 %v892
      %v1625 = vpop.f32.mrf.mxu0
      %v1626 = vadd.f32 %v1514, %v1625
      %v1627 = vpop.f32.mrf.mxu0
      %v1628 = vadd.f32 %v1518, %v1627
      %v1629 = vpop.f32.mrf.mxu0
      %v1630 = vadd.f32 %v1514, %v1629
      %v1631 = vpop.f32.mrf.mxu0
      %v1632 = vadd.f32 %v1518, %v1631
      %1633 = vmatprep.mubr.bf16.mxu0 0
      %1634 = vmatmul.mubr.bf16.gmra.mxu0 %v895
      %v1635 = vpop.f32.mrf.mxu0
      %v1636 = vadd.f32 %v1514, %v1635
      %v1637 = vpop.f32.mrf.mxu0
      %v1638 = vadd.f32 %v1518, %v1637
      %v1639 = vpop.f32.mrf.mxu0
      %v1640 = vadd.f32 %v1514, %v1639
      %v1641 = vpop.f32.mrf.mxu0
      %v1642 = vadd.f32 %v1518, %v1641
      %1643 = vmatprep.mubr.bf16.mxu0 0
      %1644 = vmatmul.mubr.bf16.gmra.mxu0 %v898
      %v1645 = vpop.f32.mrf.mxu0
      %v1646 = vadd.f32 %v1514, %v1645
      %v1647 = vpop.f32.mrf.mxu0
      %v1648 = vadd.f32 %v1518, %v1647
      %v1649 = vpop.f32.mrf.mxu0
      %v1650 = vadd.f32 %v1514, %v1649
      %v1651 = vpop.f32.mrf.mxu0
      %v1652 = vadd.f32 %v1518, %v1651
      %1653 = vmatprep.mubr.bf16.mxu0 0
      %1654 = vmatmul.mubr.bf16.gmra.mxu0 %v901
      %v1655 = vpop.f32.mrf.mxu0
      %v1656 = vadd.f32 %v1514, %v1655
      %v1657 = vpop.f32.mrf.mxu0
      %v1658 = vadd.f32 %v1518, %v1657
      %v1659 = vpop.f32.mrf.mxu0
      %v1660 = vadd.f32 %v1514, %v1659
      %v1661 = vpop.f32.mrf.mxu0
      %v1662 = vadd.f32 %v1518, %v1661
      %1663 = vmatprep.mubr.bf16.mxu0 0
      %1664 = vmatmul.mubr.bf16.gmra.mxu0 %v904
      %v1665 = vpop.f32.mrf.mxu0
      %v1666 = vadd.f32 %v1514, %v1665
      %v1667 = vpop.f32.mrf.mxu0
      %v1668 = vadd.f32 %v1518, %v1667
      %v1669 = vpop.f32.mrf.mxu0
      %v1670 = vadd.f32 %v1514, %v1669
      %v1671 = vpop.f32.mrf.mxu0
      %v1672 = vadd.f32 %v1518, %v1671
      %1673 = vmatprep.mubr.bf16.mxu0 0
      %1674 = vmatmul.mubr.bf16.gmra.mxu0 %v907
      %v1675 = vpop.f32.mrf.mxu0
      %v1676 = vadd.f32 %v1514, %v1675
      %v1677 = vpop.f32.mrf.mxu0
      %v1678 = vadd.f32 %v1518, %v1677
      %v1679 = vpop.f32.mrf.mxu0
      %v1680 = vadd.f32 %v1514, %v1679
      %v1681 = vpop.f32.mrf.mxu0
      %v1682 = vadd.f32 %v1518, %v1681
      %1683 = vmatprep.mubr.bf16.mxu0 0
      %1684 = vmatmul.mubr.bf16.gmra.mxu0 %v910
      %v1685 = vpop.f32.mrf.mxu0
      %v1686 = vadd.f32 %v1514, %v1685
      %v1687 = vpop.f32.mrf.mxu0
      %v1688 = vadd.f32 %v1518, %v1687
      %v1689 = vpop.f32.mrf.mxu0
      %v1690 = vadd.f32 %v1514, %v1689
      %v1691 = vpop.f32.mrf.mxu0
      %v1692 = vadd.f32 %v1518, %v1691
      %1693 = vmatprep.mubr.bf16.mxu0 0
      %1694 = vmatmul.mubr.bf16.gmra.mxu0 %v913
      %v1695 = vpop.f32.mrf.mxu0
      %v1696 = vadd.f32 %v1514, %v1695
      %v1697 = vpop.f32.mrf.mxu0
      %v1698 = vadd.f32 %v1518, %v1697
      %v1699 = vpop.f32.mrf.mxu0
      %v1700 = vadd.f32 %v1514, %v1699
      %v1701 = vpop.f32.mrf.mxu0
      %v1702 = vadd.f32 %v1518, %v1701
      %1703 = vmatprep.mubr.bf16.mxu0 0
      %1704 = vmatmul.mubr.bf16.gmra.mxu0 %v916
      %v1705 = vpop.f32.mrf.mxu0
      %v1706 = vadd.f32 %v1514, %v1705
      %v1707 = vpop.f32.mrf.mxu0
      %v1708 = vadd.f32 %v1518, %v1707
      %v1709 = vpop.f32.mrf.mxu0
      %v1710 = vadd.f32 %v1514, %v1709
      %v1711 = vpop.f32.mrf.mxu0
      %v1712 = vadd.f32 %v1518, %v1711
      %1713 = vmatprep.mubr.bf16.mxu0 0
      %1714 = vmatmul.mubr.bf16.gmra.mxu0 %v919
      %v1715 = vpop.f32.mrf.mxu0
      %v1716 = vadd.f32 %v1514, %v1715
      %v1717 = vpop.f32.mrf.mxu0
      %v1718 = vadd.f32 %v1518, %v1717
      %v1719 = vpop.f32.mrf.mxu0
      %v1720 = vadd.f32 %v1514, %v1719
      %v1721 = vpop.f32.mrf.mxu0
      %v1722 = vadd.f32 %v1518, %v1721
      %1723 = vmatprep.mubr.bf16.mxu0 0
      %1724 = vmatmul.mubr.bf16.gmra.mxu0 %v922
      %v1725 = vpop.f32.mrf.mxu0
      %v1726 = vadd.f32 %v1514, %v1725
      %v1727 = vpop.f32.mrf.mxu0
      %v1728 = vadd.f32 %v1518, %v1727
      %v1729 = vpop.f32.mrf.mxu0
      %v1730 = vadd.f32 %v1514, %v1729
      %v1731 = vpop.f32.mrf.mxu0
      %v1732 = vadd.f32 %v1518, %v1731
      %1733 = vdwg.mxu0
      %v1734 = vmul.f32 %v1576, 0.5
      %v1735 = vmul.f32 %v1578, 0.5
      %v1736 = vmul.f32 %v1580, 0.5
      %v1737 = vmul.f32 %v1582, 0.5
      %v1738 = vmul.f32 %v1586, 0.5
      %v1739 = vmul.f32 %v1588, 0.5
      %v1740 = vmul.f32 %v1590, 0.5
      %v1741 = vmul.f32 %v1592, 0.5
      %v1742 = vmul.f32 %v1596, 0.5
      %v1743 = vmul.f32 %v1598, 0.5
      %v1744 = vmul.f32 %v1600, 0.5
      %v1745 = vmul.f32 %v1602, 0.5
      %v1746 = vmul.f32 %v1606, 0.5
      %v1747 = vmul.f32 %v1608, 0.5
      %v1748 = vmul.f32 %v1610, 0.5
      %v1749 = vmul.f32 %v1612, 0.5
      %v1750 = vmul.f32 %v1616, 0.5
      %v1751 = vmul.f32 %v1618, 0.5
      %v1752 = vmul.f32 %v1620, 0.5
      %v1753 = vmul.f32 %v1622, 0.5
      %v1754 = vmul.f32 %v1626, 0.5
      %v1755 = vmul.f32 %v1628, 0.5
      %v1756 = vmul.f32 %v1630, 0.5
      %v1757 = vmul.f32 %v1632, 0.5
      %v1758 = vmul.f32 %v1636, 0.5
      %v1759 = vmul.f32 %v1638, 0.5
      %v1760 = vmul.f32 %v1640, 0.5
      %v1761 = vmul.f32 %v1642, 0.5
      %v1762 = vmul.f32 %v1646, 0.5
      %v1763 = vmul.f32 %v1648, 0.5
      %v1764 = vmul.f32 %v1650, 0.5
      %v1765 = vmul.f32 %v1652, 0.5
      %v1766 = vmul.f32 %v1656, 0.5
      %v1767 = vmul.f32 %v1658, 0.5
      %v1768 = vmul.f32 %v1660, 0.5
      %v1769 = vmul.f32 %v1662, 0.5
      %v1770 = vmul.f32 %v1666, 0.5
      %v1771 = vmul.f32 %v1668, 0.5
      %v1772 = vmul.f32 %v1670, 0.5
      %v1773 = vmul.f32 %v1672, 0.5
      %v1774 = vmul.f32 %v1676, 0.5
      %v1775 = vmul.f32 %v1678, 0.5
      %v1776 = vmul.f32 %v1680, 0.5
      %v1777 = vmul.f32 %v1682, 0.5
      %v1778 = vmul.f32 %v1686, 0.5
      %v1779 = vmul.f32 %v1688, 0.5
      %v1780 = vmul.f32 %v1690, 0.5
      %v1781 = vmul.f32 %v1692, 0.5
      %v1782 = vmul.f32 %v1696, 0.5
      %v1783 = vmul.f32 %v1698, 0.5
      %v1784 = vmul.f32 %v1700, 0.5
      %v1785 = vmul.f32 %v1702, 0.5
      %v1786 = vmul.f32 %v1706, 0.5
      %v1787 = vmul.f32 %v1708, 0.5
      %v1788 = vmul.f32 %v1710, 0.5
      %v1789 = vmul.f32 %v1712, 0.5
      %v1790 = vmul.f32 %v1716, 0.5
      %v1791 = vmul.f32 %v1718, 0.5
      %v1792 = vmul.f32 %v1720, 0.5
      %v1793 = vmul.f32 %v1722, 0.5
      %v1794 = vmul.f32 %v1726, 0.5
      %v1795 = vmul.f32 %v1728, 0.5
      %v1796 = vmul.f32 %v1730, 0.5
      %v1797 = vmul.f32 %v1732, 0.5
      %v1798 = vtanh.pop %v1734
      %v1799 = vtanh.pop %v1735
      %v1800 = vtanh.pop %v1736
      %v1801 = vtanh.pop %v1737
      %v1802 = vtanh.pop %v1738
      %v1803 = vtanh.pop %v1739
      %v1804 = vtanh.pop %v1740
      %v1805 = vtanh.pop %v1741
      %v1806 = vtanh.pop %v1742
      %v1807 = vtanh.pop %v1743
      %v1808 = vtanh.pop %v1744
      %v1809 = vtanh.pop %v1745
      %v1810 = vtanh.pop %v1746
      %v1811 = vtanh.pop %v1747
      %v1812 = vtanh.pop %v1748
      %v1813 = vtanh.pop %v1749
      %v1814 = vtanh.pop %v1750
      %v1815 = vtanh.pop %v1751
      %v1816 = vtanh.pop %v1752
      %v1817 = vtanh.pop %v1753
      %v1818 = vtanh.pop %v1754
      %v1819 = vtanh.pop %v1755
      %v1820 = vtanh.pop %v1756
      %v1821 = vtanh.pop %v1757
      %v1822 = vtanh.pop %v1758
      %v1823 = vtanh.pop %v1759
      %v1824 = vtanh.pop %v1760
      %v1825 = vtanh.pop %v1761
      %v1826 = vtanh.pop %v1762
      %v1827 = vtanh.pop %v1763
      %v1828 = vtanh.pop %v1764
      %v1829 = vtanh.pop %v1765
      %v1830 = vtanh.pop %v1766
      %v1831 = vtanh.pop %v1767
      %v1832 = vtanh.pop %v1768
      %v1833 = vtanh.pop %v1769
      %v1834 = vtanh.pop %v1770
      %v1835 = vtanh.pop %v1771
      %v1836 = vtanh.pop %v1772
      %v1837 = vtanh.pop %v1773
      %v1838 = vtanh.pop %v1774
      %v1839 = vtanh.pop %v1775
      %v1840 = vtanh.pop %v1776
      %v1841 = vtanh.pop %v1777
      %v1842 = vtanh.pop %v1778
      %v1843 = vtanh.pop %v1779
      %v1844 = vtanh.pop %v1780
      %v1845 = vtanh.pop %v1781
      %v1846 = vtanh.pop %v1782
      %v1847 = vtanh.pop %v1783
      %v1848 = vtanh.pop %v1784
      %v1849 = vtanh.pop %v1785
      %v1850 = vtanh.pop %v1786
      %v1851 = vtanh.pop %v1787
      %v1852 = vtanh.pop %v1788
      %v1853 = vtanh.pop %v1789
      %v1854 = vtanh.pop %v1790
      %v1855 = vtanh.pop %v1791
      %v1856 = vtanh.pop %v1792
      %v1857 = vtanh.pop %v1793
      %v1858 = vtanh.pop %v1794
      %v1859 = vtanh.pop %v1795
      %v1860 = vtanh.pop %v1796
      %v1861 = vtanh.pop %v1797
      %v1862 = vmul.f32 %v1798, 0.5
      %v1863 = vmul.f32 %v1799, 0.5
      %v1864 = vmul.f32 %v1800, 0.5
      %v1865 = vmul.f32 %v1801, 0.5
      %v1866 = vmul.f32 %v1802, 0.5
      %v1867 = vmul.f32 %v1803, 0.5
      %v1868 = vmul.f32 %v1804, 0.5
      %v1869 = vmul.f32 %v1805, 0.5
      %v1870 = vmul.f32 %v1806, 0.5
      %v1871 = vmul.f32 %v1807, 0.5
      %v1872 = vmul.f32 %v1808, 0.5
      %v1873 = vmul.f32 %v1809, 0.5
      %v1874 = vmul.f32 %v1810, 0.5
      %v1875 = vmul.f32 %v1811, 0.5
      %v1876 = vmul.f32 %v1812, 0.5
      %v1877 = vmul.f32 %v1813, 0.5
      %v1878 = vmul.f32 %v1814, 0.5
      %v1879 = vmul.f32 %v1815, 0.5
      %v1880 = vmul.f32 %v1816, 0.5
      %v1881 = vmul.f32 %v1817, 0.5
      %v1882 = vmul.f32 %v1818, 0.5
      %v1883 = vmul.f32 %v1819, 0.5
      %v1884 = vmul.f32 %v1820, 0.5
      %v1885 = vmul.f32 %v1821, 0.5
      %v1886 = vmul.f32 %v1822, 0.5
      %v1887 = vmul.f32 %v1823, 0.5
      %v1888 = vmul.f32 %v1824, 0.5
      %v1889 = vmul.f32 %v1825, 0.5
      %v1890 = vmul.f32 %v1826, 0.5
      %v1891 = vmul.f32 %v1827, 0.5
      %v1892 = vmul.f32 %v1828, 0.5
      %v1893 = vmul.f32 %v1829, 0.5
      %v1894 = vmul.f32 %v1830, 0.5
      %v1895 = vmul.f32 %v1831, 0.5
      %v1896 = vmul.f32 %v1832, 0.5
      %v1897 = vmul.f32 %v1833, 0.5
      %v1898 = vmul.f32 %v1834, 0.5
      %v1899 = vmul.f32 %v1835, 0.5
      %v1900 = vmul.f32 %v1836, 0.5
      %v1901 = vmul.f32 %v1837, 0.5
      %v1902 = vmul.f32 %v1838, 0.5
      %v1903 = vmul.f32 %v1839, 0.5
      %v1904 = vmul.f32 %v1840, 0.5
      %v1905 = vmul.f32 %v1841, 0.5
      %v1906 = vmul.f32 %v1842, 0.5
      %v1907 = vmul.f32 %v1843, 0.5
      %v1908 = vmul.f32 %v1844, 0.5
      %v1909 = vmul.f32 %v1845, 0.5
      %v1910 = vmul.f32 %v1846, 0.5
      %v1911 = vmul.f32 %v1847, 0.5
      %v1912 = vmul.f32 %v1848, 0.5
      %v1913 = vmul.f32 %v1849, 0.5
      %v1914 = vmul.f32 %v1850, 0.5
      %v1915 = vmul.f32 %v1851, 0.5
      %v1916 = vmul.f32 %v1852, 0.5
      %v1917 = vmul.f32 %v1853, 0.5
      %v1918 = vmul.f32 %v1854, 0.5
      %v1919 = vmul.f32 %v1855, 0.5
      %v1920 = vmul.f32 %v1856, 0.5
      %v1921 = vmul.f32 %v1857, 0.5
      %v1922 = vmul.f32 %v1858, 0.5
      %v1923 = vmul.f32 %v1859, 0.5
      %v1924 = vmul.f32 %v1860, 0.5
      %v1925 = vmul.f32 %v1861, 0.5
      %v1926 = vadd.f32 %v1862, 0.5
      %v1927 = vadd.f32 %v1863, 0.5
      %v1928 = vadd.f32 %v1864, 0.5
      %v1929 = vadd.f32 %v1865, 0.5
      %v1930 = vadd.f32 %v1866, 0.5
      %v1931 = vadd.f32 %v1867, 0.5
      %v1932 = vadd.f32 %v1868, 0.5
      %v1933 = vadd.f32 %v1869, 0.5
      %v1934 = vadd.f32 %v1870, 0.5
      %v1935 = vadd.f32 %v1871, 0.5
      %v1936 = vadd.f32 %v1872, 0.5
      %v1937 = vadd.f32 %v1873, 0.5
      %v1938 = vadd.f32 %v1874, 0.5
      %v1939 = vadd.f32 %v1875, 0.5
      %v1940 = vadd.f32 %v1876, 0.5
      %v1941 = vadd.f32 %v1877, 0.5
      %v1942 = vadd.f32 %v1878, 0.5
      %v1943 = vadd.f32 %v1879, 0.5
      %v1944 = vadd.f32 %v1880, 0.5
      %v1945 = vadd.f32 %v1881, 0.5
      %v1946 = vadd.f32 %v1882, 0.5
      %v1947 = vadd.f32 %v1883, 0.5
      %v1948 = vadd.f32 %v1884, 0.5
      %v1949 = vadd.f32 %v1885, 0.5
      %v1950 = vadd.f32 %v1886, 0.5
      %v1951 = vadd.f32 %v1887, 0.5
      %v1952 = vadd.f32 %v1888, 0.5
      %v1953 = vadd.f32 %v1889, 0.5
      %v1954 = vadd.f32 %v1890, 0.5
      %v1955 = vadd.f32 %v1891, 0.5
      %v1956 = vadd.f32 %v1892, 0.5
      %v1957 = vadd.f32 %v1893, 0.5
      %v1958 = vadd.f32 %v1894, 0.5
      %v1959 = vadd.f32 %v1895, 0.5
      %v1960 = vadd.f32 %v1896, 0.5
      %v1961 = vadd.f32 %v1897, 0.5
      %v1962 = vadd.f32 %v1898, 0.5
      %v1963 = vadd.f32 %v1899, 0.5
      %v1964 = vadd.f32 %v1900, 0.5
      %v1965 = vadd.f32 %v1901, 0.5
      %v1966 = vadd.f32 %v1902, 0.5
      %v1967 = vadd.f32 %v1903, 0.5
      %v1968 = vadd.f32 %v1904, 0.5
      %v1969 = vadd.f32 %v1905, 0.5
      %v1970 = vadd.f32 %v1906, 0.5
      %v1971 = vadd.f32 %v1907, 0.5
      %v1972 = vadd.f32 %v1908, 0.5
      %v1973 = vadd.f32 %v1909, 0.5
      %v1974 = vadd.f32 %v1910, 0.5
      %v1975 = vadd.f32 %v1911, 0.5
      %v1976 = vadd.f32 %v1912, 0.5
      %v1977 = vadd.f32 %v1913, 0.5
      %v1978 = vadd.f32 %v1914, 0.5
      %v1979 = vadd.f32 %v1915, 0.5
      %v1980 = vadd.f32 %v1916, 0.5
      %v1981 = vadd.f32 %v1917, 0.5
      %v1982 = vadd.f32 %v1918, 0.5
      %v1983 = vadd.f32 %v1919, 0.5
      %v1984 = vadd.f32 %v1920, 0.5
      %v1985 = vadd.f32 %v1921, 0.5
      %v1986 = vadd.f32 %v1922, 0.5
      %v1987 = vadd.f32 %v1923, 0.5
      %v1988 = vadd.f32 %v1924, 0.5
      %v1989 = vadd.f32 %v1925, 0.5
      %v1990 = vmul.f32 %v1576, %v1926
      %v1991 = vmul.f32 %v1578, %v1927
      %v1992 = vmul.f32 %v1580, %v1928
      %v1993 = vmul.f32 %v1582, %v1929
      %v1994 = vmul.f32 %v1586, %v1930
      %v1995 = vmul.f32 %v1588, %v1931
      %v1996 = vmul.f32 %v1590, %v1932
      %v1997 = vmul.f32 %v1592, %v1933
      %v1998 = vmul.f32 %v1596, %v1934
      %v1999 = vmul.f32 %v1598, %v1935
      %v2000 = vmul.f32 %v1600, %v1936
      %v2001 = vmul.f32 %v1602, %v1937
      %v2002 = vmul.f32 %v1606, %v1938
      %v2003 = vmul.f32 %v1608, %v1939
      %v2004 = vmul.f32 %v1610, %v1940
      %v2005 = vmul.f32 %v1612, %v1941
      %v2006 = vmul.f32 %v1616, %v1942
      %v2007 = vmul.f32 %v1618, %v1943
      %v2008 = vmul.f32 %v1620, %v1944
      %v2009 = vmul.f32 %v1622, %v1945
      %v2010 = vmul.f32 %v1626, %v1946
      %v2011 = vmul.f32 %v1628, %v1947
      %v2012 = vmul.f32 %v1630, %v1948
      %v2013 = vmul.f32 %v1632, %v1949
      %v2014 = vmul.f32 %v1636, %v1950
      %v2015 = vmul.f32 %v1638, %v1951
      %v2016 = vmul.f32 %v1640, %v1952
      %v2017 = vmul.f32 %v1642, %v1953
      %v2018 = vmul.f32 %v1646, %v1954
      %v2019 = vmul.f32 %v1648, %v1955
      %v2020 = vmul.f32 %v1650, %v1956
      %v2021 = vmul.f32 %v1652, %v1957
      %v2022 = vmul.f32 %v1656, %v1958
      %v2023 = vmul.f32 %v1658, %v1959
      %v2024 = vmul.f32 %v1660, %v1960
      %v2025 = vmul.f32 %v1662, %v1961
      %v2026 = vmul.f32 %v1666, %v1962
      %v2027 = vmul.f32 %v1668, %v1963
      %v2028 = vmul.f32 %v1670, %v1964
      %v2029 = vmul.f32 %v1672, %v1965
      %v2030 = vmul.f32 %v1676, %v1966
      %v2031 = vmul.f32 %v1678, %v1967
      %v2032 = vmul.f32 %v1680, %v1968
      %v2033 = vmul.f32 %v1682, %v1969
      %v2034 = vmul.f32 %v1686, %v1970
      %v2035 = vmul.f32 %v1688, %v1971
      %v2036 = vmul.f32 %v1690, %v1972
      %v2037 = vmul.f32 %v1692, %v1973
      %v2038 = vmul.f32 %v1696, %v1974
      %v2039 = vmul.f32 %v1698, %v1975
      %v2040 = vmul.f32 %v1700, %v1976
      %v2041 = vmul.f32 %v1702, %v1977
      %v2042 = vmul.f32 %v1706, %v1978
      %v2043 = vmul.f32 %v1708, %v1979
      %v2044 = vmul.f32 %v1710, %v1980
      %v2045 = vmul.f32 %v1712, %v1981
      %v2046 = vmul.f32 %v1716, %v1982
      %v2047 = vmul.f32 %v1718, %v1983
      %v2048 = vmul.f32 %v1720, %v1984
      %v2049 = vmul.f32 %v1722, %v1985
      %v2050 = vmul.f32 %v1726, %v1986
      %v2051 = vmul.f32 %v1728, %v1987
      %v2052 = vmul.f32 %v1730, %v1988
      %v2053 = vmul.f32 %v1732, %v1989
      %v2054 = vld [vmem:[#allocation2 + $0x10] sm:$0xff]
      %v2055 = vld [vmem:[#allocation2 + $0x18] sm:$0xff]
      %v2056 = vadd.f32 %v1990, %v1992
      %v2057 = vadd.f32 %v2056, %v1994
      %v2058 = vadd.f32 %v2057, %v1996
      %v2059 = vadd.f32 %v2058, %v1998
      %v2060 = vadd.f32 %v2059, %v2000
      %v2061 = vadd.f32 %v2060, %v2002
      %v2062 = vadd.f32 %v2061, %v2004
      %v2063 = vadd.f32 %v2062, %v2006
      %v2064 = vadd.f32 %v2063, %v2008
      %v2065 = vadd.f32 %v2064, %v2010
      %v2066 = vadd.f32 %v2065, %v2012
      %v2067 = vadd.f32 %v2066, %v2014
      %v2068 = vadd.f32 %v2067, %v2016
      %v2069 = vadd.f32 %v2068, %v2018
      %v2070 = vadd.f32 %v2069, %v2020
      %v2071 = vadd.f32 %v2070, %v2022
      %v2072 = vadd.f32 %v2071, %v2024
      %v2073 = vadd.f32 %v2072, %v2026
      %v2074 = vadd.f32 %v2073, %v2028
      %v2075 = vadd.f32 %v2074, %v2030
      %v2076 = vadd.f32 %v2075, %v2032
      %v2077 = vadd.f32 %v2076, %v2034
      %v2078 = vadd.f32 %v2077, %v2036
      %v2079 = vadd.f32 %v2078, %v2038
      %v2080 = vadd.f32 %v2079, %v2040
      %v2081 = vadd.f32 %v2080, %v2042
      %v2082 = vadd.f32 %v2081, %v2044
      %v2083 = vadd.f32 %v2082, %v2046
      %v2084 = vadd.f32 %v2083, %v2048
      %v2085 = vadd.f32 %v2084, %v2050
      %v2086 = vadd.f32 %v2085, %v2052
      %v2087 = vadd.f32 %v1991, %v1993
      %v2088 = vadd.f32 %v2087, %v1995
      %v2089 = vadd.f32 %v2088, %v1997
      %v2090 = vadd.f32 %v2089, %v1999
      %v2091 = vadd.f32 %v2090, %v2001
      %v2092 = vadd.f32 %v2091, %v2003
      %v2093 = vadd.f32 %v2092, %v2005
      %v2094 = vadd.f32 %v2093, %v2007
      %v2095 = vadd.f32 %v2094, %v2009
      %v2096 = vadd.f32 %v2095, %v2011
      %v2097 = vadd.f32 %v2096, %v2013
      %v2098 = vadd.f32 %v2097, %v2015
      %v2099 = vadd.f32 %v2098, %v2017
      %v2100 = vadd.f32 %v2099, %v2019
      %v2101 = vadd.f32 %v2100, %v2021
      %v2102 = vadd.f32 %v2101, %v2023
      %v2103 = vadd.f32 %v2102, %v2025
      %v2104 = vadd.f32 %v2103, %v2027
      %v2105 = vadd.f32 %v2104, %v2029
      %v2106 = vadd.f32 %v2105, %v2031
      %v2107 = vadd.f32 %v2106, %v2033
      %v2108 = vadd.f32 %v2107, %v2035
      %v2109 = vadd.f32 %v2108, %v2037
      %v2110 = vadd.f32 %v2109, %v2039
      %v2111 = vadd.f32 %v2110, %v2041
      %v2112 = vadd.f32 %v2111, %v2043
      %v2113 = vadd.f32 %v2112, %v2045
      %v2114 = vadd.f32 %v2113, %v2047
      %v2115 = vadd.f32 %v2114, %v2049
      %v2116 = vadd.f32 %v2115, %v2051
      %v2117 = vadd.f32 %v2116, %v2053
      %v2118 = vadd.f32 %v2054, %v2086
      %v2119 = vadd.f32 %v2055, %v2117
      %2120 = vst [vmem:[#allocation2 + $0x10] sm:$0xff] %v2118
      %2121 = vst [vmem:[#allocation2 + $0x18] sm:$0xff] %v2119
      %v2122 = vld [vmem:[%s3 + $0x10] sm:$0xff]
      %v2123 = vld [vmem:[%s3 + $0x38] sm:$0xff]
      %v2124 = vld [vmem:[%s3 + $0x60] sm:$0xff]
      %v2125 = vld [vmem:[%s3 + $0x88] sm:$0xff]
      %v2126 = vld [vmem:[%s4 + $0x4] sm:$0x3]
      %v2128 = vlaneseq
      %v2129 = vshrl.u32 %v2128, 7
      %v2130 = vsub.s32 0, %v2129
      %v2131 = vrot.slane %v2126, %v2130
      %v2132 = vlaneseq
      %v2133 = vshrl.u32 %v2132, 7
      %v2134 = vsub.s32 1, %v2133
      %v2135 = vrot.slane %v2126, %v2134
      %v2142 = vunpack.c.l.b16 %v2122
      %v2143 = vunpack.c.h.b16 %v2122
      %v2144 = vunpack.c.l.b16 %v2123
      %v2145 = vunpack.c.h.b16 %v2123
      %v2146 = vunpack.c.l.b16 %v2124
      %v2147 = vunpack.c.h.b16 %v2124
      %v2148 = vunpack.c.l.b16 %v2125
      %v2149 = vunpack.c.h.b16 %v2125
      %v2150 = vpack.c.b16 %v2144, %v2142
      %v2151 = vpack.c.b16 %v2145, %v2143
      %v2152 = vpack.c.b16 %v2148, %v2146
      %v2153 = vpack.c.b16 %v2149, %v2147
      %2158 = vmatprep.subr.bf16.mxu0 0
      %2159 = vmatpush1.bf16.msra.mxu0 0
      %2160 = vmatprep.subr.bf16.mxu0 0
      %2161 = vmatpush1.bf16.msra.mxu0 0
      %2162 = vmatprep.subr.bf16.mxu0 0
      %2163 = vmatpush1.bf16.msra.mxu0 0
      %2164 = vmatprep.subr.bf16.mxu0 0
      %2165 = vmatpush1.bf16.msra.mxu0 0
      %2166 = vmatprep.subr.bf16.mxu0 0
      %2167 = vmatpush1.bf16.msra.mxu0 0
      %2168 = vmatprep.subr.bf16.mxu0 0
      %2169 = vmatpush1.bf16.msra.mxu0 0
      %2170 = vmatprep.subr.bf16.mxu0 %v2153
      %2171 = vmatpush1.bf16.msra.mxu0 %v2152
      %2172 = vmatprep.subr.bf16.mxu0 %v2151
      %2173 = vmatpush1.bf16.msra.mxu0 %v2150
      %2174 = vmatprep.subr.bf16.mxu0 0
      %2175 = vmatpush2.bf16.msra.mxu0 0
      %2176 = vmatprep.subr.bf16.mxu0 0
      %2177 = vmatpush2.bf16.msra.mxu0 0
      %2178 = vmatprep.subr.bf16.mxu0 0
      %2179 = vmatpush2.bf16.msra.mxu0 0
      %2180 = vmatprep.subr.bf16.mxu0 0
      %2181 = vmatpush2.bf16.msra.mxu0 0
      %2182 = vmatprep.subr.bf16.mxu0 0
      %2183 = vmatpush2.bf16.msra.mxu0 0
      %2184 = vmatprep.subr.bf16.mxu0 0
      %2185 = vmatpush2.bf16.msra.mxu0 0
      %2186 = vmatprep.subr.bf16.mxu0 0
      %2187 = vmatpush2.bf16.msra.mxu0 0
      %2188 = vmatprep.subr.bf16.mxu0 0
      %2189 = vmatpush2.bf16.msra.mxu0 0
      %2190 = vmatprep.mubr.bf16.mxu0 0
      %2191 = vmatmul.mubr.bf16.gmra.mxu0 %v877
      %v2192 = vpop.f32.mrf.mxu0
      %v2193 = vadd.f32 %v2131, %v2192
      %v2194 = vpop.f32.mrf.mxu0
      %v2195 = vadd.f32 %v2135, %v2194
      %v2196 = vpop.f32.mrf.mxu0
      %v2197 = vadd.f32 %v2131, %v2196
      %v2198 = vpop.f32.mrf.mxu0
      %v2199 = vadd.f32 %v2135, %v2198
      %2200 = vmatprep.mubr.bf16.mxu0 0
      %2201 = vmatmul.mubr.bf16.gmra.mxu0 %v880
      %v2202 = vpop.f32.mrf.mxu0
      %v2203 = vadd.f32 %v2131, %v2202
      %v2204 = vpop.f32.mrf.mxu0
      %v2205 = vadd.f32 %v2135, %v2204
      %v2206 = vpop.f32.mrf.mxu0
      %v2207 = vadd.f32 %v2131, %v2206
      %v2208 = vpop.f32.mrf.mxu0
      %v2209 = vadd.f32 %v2135, %v2208
      %2210 = vmatprep.mubr.bf16.mxu0 0
      %2211 = vmatmul.mubr.bf16.gmra.mxu0 %v883
      %v2212 = vpop.f32.mrf.mxu0
      %v2213 = vadd.f32 %v2131, %v2212
      %v2214 = vpop.f32.mrf.mxu0
      %v2215 = vadd.f32 %v2135, %v2214
      %v2216 = vpop.f32.mrf.mxu0
      %v2217 = vadd.f32 %v2131, %v2216
      %v2218 = vpop.f32.mrf.mxu0
      %v2219 = vadd.f32 %v2135, %v2218
      %2220 = vmatprep.mubr.bf16.mxu0 0
      %2221 = vmatmul.mubr.bf16.gmra.mxu0 %v886
      %v2222 = vpop.f32.mrf.mxu0
      %v2223 = vadd.f32 %v2131, %v2222
      %v2224 = vpop.f32.mrf.mxu0
      %v2225 = vadd.f32 %v2135, %v2224
      %v2226 = vpop.f32.mrf.mxu0
      %v2227 = vadd.f32 %v2131, %v2226
      %v2228 = vpop.f32.mrf.mxu0
      %v2229 = vadd.f32 %v2135, %v2228
      %2230 = vmatprep.mubr.bf16.mxu0 0
      %2231 = vmatmul.mubr.bf16.gmra.mxu0 %v889
      %v2232 = vpop.f32.mrf.mxu0
      %v2233 = vadd.f32 %v2131, %v2232
      %v2234 = vpop.f32.mrf.mxu0
      %v2235 = vadd.f32 %v2135, %v2234
      %v2236 = vpop.f32.mrf.mxu0
      %v2237 = vadd.f32 %v2131, %v2236
      %v2238 = vpop.f32.mrf.mxu0
      %v2239 = vadd.f32 %v2135, %v2238
      %2240 = vmatprep.mubr.bf16.mxu0 0
      %2241 = vmatmul.mubr.bf16.gmra.mxu0 %v892
      %v2242 = vpop.f32.mrf.mxu0
      %v2243 = vadd.f32 %v2131, %v2242
      %v2244 = vpop.f32.mrf.mxu0
      %v2245 = vadd.f32 %v2135, %v2244
      %v2246 = vpop.f32.mrf.mxu0
      %v2247 = vadd.f32 %v2131, %v2246
      %v2248 = vpop.f32.mrf.mxu0
      %v2249 = vadd.f32 %v2135, %v2248
      %2250 = vmatprep.mubr.bf16.mxu0 0
      %2251 = vmatmul.mubr.bf16.gmra.mxu0 %v895
      %v2252 = vpop.f32.mrf.mxu0
      %v2253 = vadd.f32 %v2131, %v2252
      %v2254 = vpop.f32.mrf.mxu0
      %v2255 = vadd.f32 %v2135, %v2254
      %v2256 = vpop.f32.mrf.mxu0
      %v2257 = vadd.f32 %v2131, %v2256
      %v2258 = vpop.f32.mrf.mxu0
      %v2259 = vadd.f32 %v2135, %v2258
      %2260 = vmatprep.mubr.bf16.mxu0 0
      %2261 = vmatmul.mubr.bf16.gmra.mxu0 %v898
      %v2262 = vpop.f32.mrf.mxu0
      %v2263 = vadd.f32 %v2131, %v2262
      %v2264 = vpop.f32.mrf.mxu0
      %v2265 = vadd.f32 %v2135, %v2264
      %v2266 = vpop.f32.mrf.mxu0
      %v2267 = vadd.f32 %v2131, %v2266
      %v2268 = vpop.f32.mrf.mxu0
      %v2269 = vadd.f32 %v2135, %v2268
      %2270 = vmatprep.mubr.bf16.mxu0 0
      %2271 = vmatmul.mubr.bf16.gmra.mxu0 %v901
      %v2272 = vpop.f32.mrf.mxu0
      %v2273 = vadd.f32 %v2131, %v2272
      %v2274 = vpop.f32.mrf.mxu0
      %v2275 = vadd.f32 %v2135, %v2274
      %v2276 = vpop.f32.mrf.mxu0
      %v2277 = vadd.f32 %v2131, %v2276
      %v2278 = vpop.f32.mrf.mxu0
      %v2279 = vadd.f32 %v2135, %v2278
      %2280 = vmatprep.mubr.bf16.mxu0 0
      %2281 = vmatmul.mubr.bf16.gmra.mxu0 %v904
      %v2282 = vpop.f32.mrf.mxu0
      %v2283 = vadd.f32 %v2131, %v2282
      %v2284 = vpop.f32.mrf.mxu0
      %v2285 = vadd.f32 %v2135, %v2284
      %v2286 = vpop.f32.mrf.mxu0
      %v2287 = vadd.f32 %v2131, %v2286
      %v2288 = vpop.f32.mrf.mxu0
      %v2289 = vadd.f32 %v2135, %v2288
      %2290 = vmatprep.mubr.bf16.mxu0 0
      %2291 = vmatmul.mubr.bf16.gmra.mxu0 %v907
      %v2292 = vpop.f32.mrf.mxu0
      %v2293 = vadd.f32 %v2131, %v2292
      %v2294 = vpop.f32.mrf.mxu0
      %v2295 = vadd.f32 %v2135, %v2294
      %v2296 = vpop.f32.mrf.mxu0
      %v2297 = vadd.f32 %v2131, %v2296
      %v2298 = vpop.f32.mrf.mxu0
      %v2299 = vadd.f32 %v2135, %v2298
      %2300 = vmatprep.mubr.bf16.mxu0 0
      %2301 = vmatmul.mubr.bf16.gmra.mxu0 %v910
      %v2302 = vpop.f32.mrf.mxu0
      %v2303 = vadd.f32 %v2131, %v2302
      %v2304 = vpop.f32.mrf.mxu0
      %v2305 = vadd.f32 %v2135, %v2304
      %v2306 = vpop.f32.mrf.mxu0
      %v2307 = vadd.f32 %v2131, %v2306
      %v2308 = vpop.f32.mrf.mxu0
      %v2309 = vadd.f32 %v2135, %v2308
      %2310 = vmatprep.mubr.bf16.mxu0 0
      %2311 = vmatmul.mubr.bf16.gmra.mxu0 %v913
      %v2312 = vpop.f32.mrf.mxu0
      %v2313 = vadd.f32 %v2131, %v2312
      %v2314 = vpop.f32.mrf.mxu0
      %v2315 = vadd.f32 %v2135, %v2314
      %v2316 = vpop.f32.mrf.mxu0
      %v2317 = vadd.f32 %v2131, %v2316
      %v2318 = vpop.f32.mrf.mxu0
      %v2319 = vadd.f32 %v2135, %v2318
      %2320 = vmatprep.mubr.bf16.mxu0 0
      %2321 = vmatmul.mubr.bf16.gmra.mxu0 %v916
      %v2322 = vpop.f32.mrf.mxu0
      %v2323 = vadd.f32 %v2131, %v2322
      %v2324 = vpop.f32.mrf.mxu0
      %v2325 = vadd.f32 %v2135, %v2324
      %v2326 = vpop.f32.mrf.mxu0
      %v2327 = vadd.f32 %v2131, %v2326
      %v2328 = vpop.f32.mrf.mxu0
      %v2329 = vadd.f32 %v2135, %v2328
      %2330 = vmatprep.mubr.bf16.mxu0 0
      %2331 = vmatmul.mubr.bf16.gmra.mxu0 %v919
      %v2332 = vpop.f32.mrf.mxu0
      %v2333 = vadd.f32 %v2131, %v2332
      %v2334 = vpop.f32.mrf.mxu0
      %v2335 = vadd.f32 %v2135, %v2334
      %v2336 = vpop.f32.mrf.mxu0
      %v2337 = vadd.f32 %v2131, %v2336
      %v2338 = vpop.f32.mrf.mxu0
      %v2339 = vadd.f32 %v2135, %v2338
      %2340 = vmatprep.mubr.bf16.mxu0 0
      %2341 = vmatmul.mubr.bf16.gmra.mxu0 %v922
      %v2342 = vpop.f32.mrf.mxu0
      %v2343 = vadd.f32 %v2131, %v2342
      %v2344 = vpop.f32.mrf.mxu0
      %v2345 = vadd.f32 %v2135, %v2344
      %v2346 = vpop.f32.mrf.mxu0
      %v2347 = vadd.f32 %v2131, %v2346
      %v2348 = vpop.f32.mrf.mxu0
      %v2349 = vadd.f32 %v2135, %v2348
      %2350 = vdwg.mxu0
      %v2351 = vmul.f32 %v2193, 0.5
      %v2352 = vmul.f32 %v2195, 0.5
      %v2353 = vmul.f32 %v2197, 0.5
      %v2354 = vmul.f32 %v2199, 0.5
      %v2355 = vmul.f32 %v2203, 0.5
      %v2356 = vmul.f32 %v2205, 0.5
      %v2357 = vmul.f32 %v2207, 0.5
      %v2358 = vmul.f32 %v2209, 0.5
      %v2359 = vmul.f32 %v2213, 0.5
      %v2360 = vmul.f32 %v2215, 0.5
      %v2361 = vmul.f32 %v2217, 0.5
      %v2362 = vmul.f32 %v2219, 0.5
      %v2363 = vmul.f32 %v2223, 0.5
      %v2364 = vmul.f32 %v2225, 0.5
      %v2365 = vmul.f32 %v2227, 0.5
      %v2366 = vmul.f32 %v2229, 0.5
      %v2367 = vmul.f32 %v2233, 0.5
      %v2368 = vmul.f32 %v2235, 0.5
      %v2369 = vmul.f32 %v2237, 0.5
      %v2370 = vmul.f32 %v2239, 0.5
      %v2371 = vmul.f32 %v2243, 0.5
      %v2372 = vmul.f32 %v2245, 0.5
      %v2373 = vmul.f32 %v2247, 0.5
      %v2374 = vmul.f32 %v2249, 0.5
      %v2375 = vmul.f32 %v2253, 0.5
      %v2376 = vmul.f32 %v2255, 0.5
      %v2377 = vmul.f32 %v2257, 0.5
      %v2378 = vmul.f32 %v2259, 0.5
      %v2379 = vmul.f32 %v2263, 0.5
      %v2380 = vmul.f32 %v2265, 0.5
      %v2381 = vmul.f32 %v2267, 0.5
      %v2382 = vmul.f32 %v2269, 0.5
      %v2383 = vmul.f32 %v2273, 0.5
      %v2384 = vmul.f32 %v2275, 0.5
      %v2385 = vmul.f32 %v2277, 0.5
      %v2386 = vmul.f32 %v2279, 0.5
      %v2387 = vmul.f32 %v2283, 0.5
      %v2388 = vmul.f32 %v2285, 0.5
      %v2389 = vmul.f32 %v2287, 0.5
      %v2390 = vmul.f32 %v2289, 0.5
      %v2391 = vmul.f32 %v2293, 0.5
      %v2392 = vmul.f32 %v2295, 0.5
      %v2393 = vmul.f32 %v2297, 0.5
      %v2394 = vmul.f32 %v2299, 0.5
      %v2395 = vmul.f32 %v2303, 0.5
      %v2396 = vmul.f32 %v2305, 0.5
      %v2397 = vmul.f32 %v2307, 0.5
      %v2398 = vmul.f32 %v2309, 0.5
      %v2399 = vmul.f32 %v2313, 0.5
      %v2400 = vmul.f32 %v2315, 0.5
      %v2401 = vmul.f32 %v2317, 0.5
      %v2402 = vmul.f32 %v2319, 0.5
      %v2403 = vmul.f32 %v2323, 0.5
      %v2404 = vmul.f32 %v2325, 0.5
      %v2405 = vmul.f32 %v2327, 0.5
      %v2406 = vmul.f32 %v2329, 0.5
      %v2407 = vmul.f32 %v2333, 0.5
      %v2408 = vmul.f32 %v2335, 0.5
      %v2409 = vmul.f32 %v2337, 0.5
      %v2410 = vmul.f32 %v2339, 0.5
      %v2411 = vmul.f32 %v2343, 0.5
      %v2412 = vmul.f32 %v2345, 0.5
      %v2413 = vmul.f32 %v2347, 0.5
      %v2414 = vmul.f32 %v2349, 0.5
      %v2415 = vtanh.pop %v2351
      %v2416 = vtanh.pop %v2352
      %v2417 = vtanh.pop %v2353
      %v2418 = vtanh.pop %v2354
      %v2419 = vtanh.pop %v2355
      %v2420 = vtanh.pop %v2356
      %v2421 = vtanh.pop %v2357
      %v2422 = vtanh.pop %v2358
      %v2423 = vtanh.pop %v2359
      %v2424 = vtanh.pop %v2360
      %v2425 = vtanh.pop %v2361
      %v2426 = vtanh.pop %v2362
      %v2427 = vtanh.pop %v2363
      %v2428 = vtanh.pop %v2364
      %v2429 = vtanh.pop %v2365
      %v2430 = vtanh.pop %v2366
      %v2431 = vtanh.pop %v2367
      %v2432 = vtanh.pop %v2368
      %v2433 = vtanh.pop %v2369
      %v2434 = vtanh.pop %v2370
      %v2435 = vtanh.pop %v2371
      %v2436 = vtanh.pop %v2372
      %v2437 = vtanh.pop %v2373
      %v2438 = vtanh.pop %v2374
      %v2439 = vtanh.pop %v2375
      %v2440 = vtanh.pop %v2376
      %v2441 = vtanh.pop %v2377
      %v2442 = vtanh.pop %v2378
      %v2443 = vtanh.pop %v2379
      %v2444 = vtanh.pop %v2380
      %v2445 = vtanh.pop %v2381
      %v2446 = vtanh.pop %v2382
      %v2447 = vtanh.pop %v2383
      %v2448 = vtanh.pop %v2384
      %v2449 = vtanh.pop %v2385
      %v2450 = vtanh.pop %v2386
      %v2451 = vtanh.pop %v2387
      %v2452 = vtanh.pop %v2388
      %v2453 = vtanh.pop %v2389
      %v2454 = vtanh.pop %v2390
      %v2455 = vtanh.pop %v2391
      %v2456 = vtanh.pop %v2392
      %v2457 = vtanh.pop %v2393
      %v2458 = vtanh.pop %v2394
      %v2459 = vtanh.pop %v2395
      %v2460 = vtanh.pop %v2396
      %v2461 = vtanh.pop %v2397
      %v2462 = vtanh.pop %v2398
      %v2463 = vtanh.pop %v2399
      %v2464 = vtanh.pop %v2400
      %v2465 = vtanh.pop %v2401
      %v2466 = vtanh.pop %v2402
      %v2467 = vtanh.pop %v2403
      %v2468 = vtanh.pop %v2404
      %v2469 = vtanh.pop %v2405
      %v2470 = vtanh.pop %v2406
      %v2471 = vtanh.pop %v2407
      %v2472 = vtanh.pop %v2408
      %v2473 = vtanh.pop %v2409
      %v2474 = vtanh.pop %v2410
      %v2475 = vtanh.pop %v2411
      %v2476 = vtanh.pop %v2412
      %v2477 = vtanh.pop %v2413
      %v2478 = vtanh.pop %v2414
      %v2479 = vmul.f32 %v2415, 0.5
      %v2480 = vmul.f32 %v2416, 0.5
      %v2481 = vmul.f32 %v2417, 0.5
      %v2482 = vmul.f32 %v2418, 0.5
      %v2483 = vmul.f32 %v2419, 0.5
      %v2484 = vmul.f32 %v2420, 0.5
      %v2485 = vmul.f32 %v2421, 0.5
      %v2486 = vmul.f32 %v2422, 0.5
      %v2487 = vmul.f32 %v2423, 0.5
      %v2488 = vmul.f32 %v2424, 0.5
      %v2489 = vmul.f32 %v2425, 0.5
      %v2490 = vmul.f32 %v2426, 0.5
      %v2491 = vmul.f32 %v2427, 0.5
      %v2492 = vmul.f32 %v2428, 0.5
      %v2493 = vmul.f32 %v2429, 0.5
      %v2494 = vmul.f32 %v2430, 0.5
      %v2495 = vmul.f32 %v2431, 0.5
      %v2496 = vmul.f32 %v2432, 0.5
      %v2497 = vmul.f32 %v2433, 0.5
      %v2498 = vmul.f32 %v2434, 0.5
      %v2499 = vmul.f32 %v2435, 0.5
      %v2500 = vmul.f32 %v2436, 0.5
      %v2501 = vmul.f32 %v2437, 0.5
      %v2502 = vmul.f32 %v2438, 0.5
      %v2503 = vmul.f32 %v2439, 0.5
      %v2504 = vmul.f32 %v2440, 0.5
      %v2505 = vmul.f32 %v2441, 0.5
      %v2506 = vmul.f32 %v2442, 0.5
      %v2507 = vmul.f32 %v2443, 0.5
      %v2508 = vmul.f32 %v2444, 0.5
      %v2509 = vmul.f32 %v2445, 0.5
      %v2510 = vmul.f32 %v2446, 0.5
      %v2511 = vmul.f32 %v2447, 0.5
      %v2512 = vmul.f32 %v2448, 0.5
      %v2513 = vmul.f32 %v2449, 0.5
      %v2514 = vmul.f32 %v2450, 0.5
      %v2515 = vmul.f32 %v2451, 0.5
      %v2516 = vmul.f32 %v2452, 0.5
      %v2517 = vmul.f32 %v2453, 0.5
      %v2518 = vmul.f32 %v2454, 0.5
      %v2519 = vmul.f32 %v2455, 0.5
      %v2520 = vmul.f32 %v2456, 0.5
      %v2521 = vmul.f32 %v2457, 0.5
      %v2522 = vmul.f32 %v2458, 0.5
      %v2523 = vmul.f32 %v2459, 0.5
      %v2524 = vmul.f32 %v2460, 0.5
      %v2525 = vmul.f32 %v2461, 0.5
      %v2526 = vmul.f32 %v2462, 0.5
      %v2527 = vmul.f32 %v2463, 0.5
      %v2528 = vmul.f32 %v2464, 0.5
      %v2529 = vmul.f32 %v2465, 0.5
      %v2530 = vmul.f32 %v2466, 0.5
      %v2531 = vmul.f32 %v2467, 0.5
      %v2532 = vmul.f32 %v2468, 0.5
      %v2533 = vmul.f32 %v2469, 0.5
      %v2534 = vmul.f32 %v2470, 0.5
      %v2535 = vmul.f32 %v2471, 0.5
      %v2536 = vmul.f32 %v2472, 0.5
      %v2537 = vmul.f32 %v2473, 0.5
      %v2538 = vmul.f32 %v2474, 0.5
      %v2539 = vmul.f32 %v2475, 0.5
      %v2540 = vmul.f32 %v2476, 0.5
      %v2541 = vmul.f32 %v2477, 0.5
      %v2542 = vmul.f32 %v2478, 0.5
      %v2543 = vadd.f32 %v2479, 0.5
      %v2544 = vadd.f32 %v2480, 0.5
      %v2545 = vadd.f32 %v2481, 0.5
      %v2546 = vadd.f32 %v2482, 0.5
      %v2547 = vadd.f32 %v2483, 0.5
      %v2548 = vadd.f32 %v2484, 0.5
      %v2549 = vadd.f32 %v2485, 0.5
      %v2550 = vadd.f32 %v2486, 0.5
      %v2551 = vadd.f32 %v2487, 0.5
      %v2552 = vadd.f32 %v2488, 0.5
      %v2553 = vadd.f32 %v2489, 0.5
      %v2554 = vadd.f32 %v2490, 0.5
      %v2555 = vadd.f32 %v2491, 0.5
      %v2556 = vadd.f32 %v2492, 0.5
      %v2557 = vadd.f32 %v2493, 0.5
      %v2558 = vadd.f32 %v2494, 0.5
      %v2559 = vadd.f32 %v2495, 0.5
      %v2560 = vadd.f32 %v2496, 0.5
      %v2561 = vadd.f32 %v2497, 0.5
      %v2562 = vadd.f32 %v2498, 0.5
      %v2563 = vadd.f32 %v2499, 0.5
      %v2564 = vadd.f32 %v2500, 0.5
      %v2565 = vadd.f32 %v2501, 0.5
      %v2566 = vadd.f32 %v2502, 0.5
      %v2567 = vadd.f32 %v2503, 0.5
      %v2568 = vadd.f32 %v2504, 0.5
      %v2569 = vadd.f32 %v2505, 0.5
      %v2570 = vadd.f32 %v2506, 0.5
      %v2571 = vadd.f32 %v2507, 0.5
      %v2572 = vadd.f32 %v2508, 0.5
      %v2573 = vadd.f32 %v2509, 0.5
      %v2574 = vadd.f32 %v2510, 0.5
      %v2575 = vadd.f32 %v2511, 0.5
      %v2576 = vadd.f32 %v2512, 0.5
      %v2577 = vadd.f32 %v2513, 0.5
      %v2578 = vadd.f32 %v2514, 0.5
      %v2579 = vadd.f32 %v2515, 0.5
      %v2580 = vadd.f32 %v2516, 0.5
      %v2581 = vadd.f32 %v2517, 0.5
      %v2582 = vadd.f32 %v2518, 0.5
      %v2583 = vadd.f32 %v2519, 0.5
      %v2584 = vadd.f32 %v2520, 0.5
      %v2585 = vadd.f32 %v2521, 0.5
      %v2586 = vadd.f32 %v2522, 0.5
      %v2587 = vadd.f32 %v2523, 0.5
      %v2588 = vadd.f32 %v2524, 0.5
      %v2589 = vadd.f32 %v2525, 0.5
      %v2590 = vadd.f32 %v2526, 0.5
      %v2591 = vadd.f32 %v2527, 0.5
      %v2592 = vadd.f32 %v2528, 0.5
      %v2593 = vadd.f32 %v2529, 0.5
      %v2594 = vadd.f32 %v2530, 0.5
      %v2595 = vadd.f32 %v2531, 0.5
      %v2596 = vadd.f32 %v2532, 0.5
      %v2597 = vadd.f32 %v2533, 0.5
      %v2598 = vadd.f32 %v2534, 0.5
      %v2599 = vadd.f32 %v2535, 0.5
      %v2600 = vadd.f32 %v2536, 0.5
      %v2601 = vadd.f32 %v2537, 0.5
      %v2602 = vadd.f32 %v2538, 0.5
      %v2603 = vadd.f32 %v2539, 0.5
      %v2604 = vadd.f32 %v2540, 0.5
      %v2605 = vadd.f32 %v2541, 0.5
      %v2606 = vadd.f32 %v2542, 0.5
      %v2607 = vmul.f32 %v2193, %v2543
      %v2608 = vmul.f32 %v2195, %v2544
      %v2609 = vmul.f32 %v2197, %v2545
      %v2610 = vmul.f32 %v2199, %v2546
      %v2611 = vmul.f32 %v2203, %v2547
      %v2612 = vmul.f32 %v2205, %v2548
      %v2613 = vmul.f32 %v2207, %v2549
      %v2614 = vmul.f32 %v2209, %v2550
      %v2615 = vmul.f32 %v2213, %v2551
      %v2616 = vmul.f32 %v2215, %v2552
      %v2617 = vmul.f32 %v2217, %v2553
      %v2618 = vmul.f32 %v2219, %v2554
      %v2619 = vmul.f32 %v2223, %v2555
      %v2620 = vmul.f32 %v2225, %v2556
      %v2621 = vmul.f32 %v2227, %v2557
      %v2622 = vmul.f32 %v2229, %v2558
      %v2623 = vmul.f32 %v2233, %v2559
      %v2624 = vmul.f32 %v2235, %v2560
      %v2625 = vmul.f32 %v2237, %v2561
      %v2626 = vmul.f32 %v2239, %v2562
      %v2627 = vmul.f32 %v2243, %v2563
      %v2628 = vmul.f32 %v2245, %v2564
      %v2629 = vmul.f32 %v2247, %v2565
      %v2630 = vmul.f32 %v2249, %v2566
      %v2631 = vmul.f32 %v2253, %v2567
      %v2632 = vmul.f32 %v2255, %v2568
      %v2633 = vmul.f32 %v2257, %v2569
      %v2634 = vmul.f32 %v2259, %v2570
      %v2635 = vmul.f32 %v2263, %v2571
      %v2636 = vmul.f32 %v2265, %v2572
      %v2637 = vmul.f32 %v2267, %v2573
      %v2638 = vmul.f32 %v2269, %v2574
      %v2639 = vmul.f32 %v2273, %v2575
      %v2640 = vmul.f32 %v2275, %v2576
      %v2641 = vmul.f32 %v2277, %v2577
      %v2642 = vmul.f32 %v2279, %v2578
      %v2643 = vmul.f32 %v2283, %v2579
      %v2644 = vmul.f32 %v2285, %v2580
      %v2645 = vmul.f32 %v2287, %v2581
      %v2646 = vmul.f32 %v2289, %v2582
      %v2647 = vmul.f32 %v2293, %v2583
      %v2648 = vmul.f32 %v2295, %v2584
      %v2649 = vmul.f32 %v2297, %v2585
      %v2650 = vmul.f32 %v2299, %v2586
      %v2651 = vmul.f32 %v2303, %v2587
      %v2652 = vmul.f32 %v2305, %v2588
      %v2653 = vmul.f32 %v2307, %v2589
      %v2654 = vmul.f32 %v2309, %v2590
      %v2655 = vmul.f32 %v2313, %v2591
      %v2656 = vmul.f32 %v2315, %v2592
      %v2657 = vmul.f32 %v2317, %v2593
      %v2658 = vmul.f32 %v2319, %v2594
      %v2659 = vmul.f32 %v2323, %v2595
      %v2660 = vmul.f32 %v2325, %v2596
      %v2661 = vmul.f32 %v2327, %v2597
      %v2662 = vmul.f32 %v2329, %v2598
      %v2663 = vmul.f32 %v2333, %v2599
      %v2664 = vmul.f32 %v2335, %v2600
      %v2665 = vmul.f32 %v2337, %v2601
      %v2666 = vmul.f32 %v2339, %v2602
      %v2667 = vmul.f32 %v2343, %v2603
      %v2668 = vmul.f32 %v2345, %v2604
      %v2669 = vmul.f32 %v2347, %v2605
      %v2670 = vmul.f32 %v2349, %v2606
      %v2671 = vld [vmem:[#allocation2 + $0x20] sm:$0xff]
      %v2672 = vld [vmem:[#allocation2 + $0x28] sm:$0xff]
      %v2673 = vadd.f32 %v2607, %v2609
      %v2674 = vadd.f32 %v2673, %v2611
      %v2675 = vadd.f32 %v2674, %v2613
      %v2676 = vadd.f32 %v2675, %v2615
      %v2677 = vadd.f32 %v2676, %v2617
      %v2678 = vadd.f32 %v2677, %v2619
      %v2679 = vadd.f32 %v2678, %v2621
      %v2680 = vadd.f32 %v2679, %v2623
      %v2681 = vadd.f32 %v2680, %v2625
      %v2682 = vadd.f32 %v2681, %v2627
      %v2683 = vadd.f32 %v2682, %v2629
      %v2684 = vadd.f32 %v2683, %v2631
      %v2685 = vadd.f32 %v2684, %v2633
      %v2686 = vadd.f32 %v2685, %v2635
      %v2687 = vadd.f32 %v2686, %v2637
      %v2688 = vadd.f32 %v2687, %v2639
      %v2689 = vadd.f32 %v2688, %v2641
      %v2690 = vadd.f32 %v2689, %v2643
      %v2691 = vadd.f32 %v2690, %v2645
      %v2692 = vadd.f32 %v2691, %v2647
      %v2693 = vadd.f32 %v2692, %v2649
      %v2694 = vadd.f32 %v2693, %v2651
      %v2695 = vadd.f32 %v2694, %v2653
      %v2696 = vadd.f32 %v2695, %v2655
      %v2697 = vadd.f32 %v2696, %v2657
      %v2698 = vadd.f32 %v2697, %v2659
      %v2699 = vadd.f32 %v2698, %v2661
      %v2700 = vadd.f32 %v2699, %v2663
      %v2701 = vadd.f32 %v2700, %v2665
      %v2702 = vadd.f32 %v2701, %v2667
      %v2703 = vadd.f32 %v2702, %v2669
      %v2704 = vadd.f32 %v2608, %v2610
      %v2705 = vadd.f32 %v2704, %v2612
      %v2706 = vadd.f32 %v2705, %v2614
      %v2707 = vadd.f32 %v2706, %v2616
      %v2708 = vadd.f32 %v2707, %v2618
      %v2709 = vadd.f32 %v2708, %v2620
      %v2710 = vadd.f32 %v2709, %v2622
      %v2711 = vadd.f32 %v2710, %v2624
      %v2712 = vadd.f32 %v2711, %v2626
      %v2713 = vadd.f32 %v2712, %v2628
      %v2714 = vadd.f32 %v2713, %v2630
      %v2715 = vadd.f32 %v2714, %v2632
      %v2716 = vadd.f32 %v2715, %v2634
      %v2717 = vadd.f32 %v2716, %v2636
      %v2718 = vadd.f32 %v2717, %v2638
      %v2719 = vadd.f32 %v2718, %v2640
      %v2720 = vadd.f32 %v2719, %v2642
      %v2721 = vadd.f32 %v2720, %v2644
      %v2722 = vadd.f32 %v2721, %v2646
      %v2723 = vadd.f32 %v2722, %v2648
      %v2724 = vadd.f32 %v2723, %v2650
      %v2725 = vadd.f32 %v2724, %v2652
      %v2726 = vadd.f32 %v2725, %v2654
      %v2727 = vadd.f32 %v2726, %v2656
      %v2728 = vadd.f32 %v2727, %v2658
      %v2729 = vadd.f32 %v2728, %v2660
      %v2730 = vadd.f32 %v2729, %v2662
      %v2731 = vadd.f32 %v2730, %v2664
      %v2732 = vadd.f32 %v2731, %v2666
      %v2733 = vadd.f32 %v2732, %v2668
      %v2734 = vadd.f32 %v2733, %v2670
      %v2735 = vadd.f32 %v2671, %v2703
      %v2736 = vadd.f32 %v2672, %v2734
      %2737 = vst [vmem:[#allocation2 + $0x20] sm:$0xff] %v2735
      %2738 = vst [vmem:[#allocation2 + $0x28] sm:$0xff] %v2736
      %v2739 = vld [vmem:[%s3 + $0x18] sm:$0xff]
      %v2740 = vld [vmem:[%s3 + $0x40] sm:$0xff]
      %v2741 = vld [vmem:[%s3 + $0x68] sm:$0xff]
      %v2742 = vld [vmem:[%s3 + $0x90] sm:$0xff]
      %v2743 = vld [vmem:[%s4 + $0x6] sm:$0x3]
      %v2745 = vlaneseq
      %v2746 = vshrl.u32 %v2745, 7
      %v2747 = vsub.s32 0, %v2746
      %v2748 = vrot.slane %v2743, %v2747
      %v2749 = vlaneseq
      %v2750 = vshrl.u32 %v2749, 7
      %v2751 = vsub.s32 1, %v2750
      %v2752 = vrot.slane %v2743, %v2751
      %v2759 = vunpack.c.l.b16 %v2739
      %v2760 = vunpack.c.h.b16 %v2739
      %v2761 = vunpack.c.l.b16 %v2740
      %v2762 = vunpack.c.h.b16 %v2740
      %v2763 = vunpack.c.l.b16 %v2741
      %v2764 = vunpack.c.h.b16 %v2741
      %v2765 = vunpack.c.l.b16 %v2742
      %v2766 = vunpack.c.h.b16 %v2742
      %v2767 = vpack.c.b16 %v2761, %v2759
      %v2768 = vpack.c.b16 %v2762, %v2760
      %v2769 = vpack.c.b16 %v2765, %v2763
      %v2770 = vpack.c.b16 %v2766, %v2764
      %2775 = vmatprep.subr.bf16.mxu0 0
      %2776 = vmatpush1.bf16.msra.mxu0 0
      %2777 = vmatprep.subr.bf16.mxu0 0
      %2778 = vmatpush1.bf16.msra.mxu0 0
      %2779 = vmatprep.subr.bf16.mxu0 0
      %2780 = vmatpush1.bf16.msra.mxu0 0
      %2781 = vmatprep.subr.bf16.mxu0 0
      %2782 = vmatpush1.bf16.msra.mxu0 0
      %2783 = vmatprep.subr.bf16.mxu0 0
      %2784 = vmatpush1.bf16.msra.mxu0 0
      %2785 = vmatprep.subr.bf16.mxu0 0
      %2786 = vmatpush1.bf16.msra.mxu0 0
      %2787 = vmatprep.subr.bf16.mxu0 %v2770
      %2788 = vmatpush1.bf16.msra.mxu0 %v2769
      %2789 = vmatprep.subr.bf16.mxu0 %v2768
      %2790 = vmatpush1.bf16.msra.mxu0 %v2767
      %2791 = vmatprep.subr.bf16.mxu0 0
      %2792 = vmatpush2.bf16.msra.mxu0 0
      %2793 = vmatprep.subr.bf16.mxu0 0
      %2794 = vmatpush2.bf16.msra.mxu0 0
      %2795 = vmatprep.subr.bf16.mxu0 0
      %2796 = vmatpush2.bf16.msra.mxu0 0
      %2797 = vmatprep.subr.bf16.mxu0 0
      %2798 = vmatpush2.bf16.msra.mxu0 0
      %2799 = vmatprep.subr.bf16.mxu0 0
      %2800 = vmatpush2.bf16.msra.mxu0 0
      %2801 = vmatprep.subr.bf16.mxu0 0
      %2802 = vmatpush2.bf16.msra.mxu0 0
      %2803 = vmatprep.subr.bf16.mxu0 0
      %2804 = vmatpush2.bf16.msra.mxu0 0
      %2805 = vmatprep.subr.bf16.mxu0 0
      %2806 = vmatpush2.bf16.msra.mxu0 0
      %2807 = vmatprep.mubr.bf16.mxu0 0
      %2808 = vmatmul.mubr.bf16.gmra.mxu0 %v877
      %v2809 = vpop.f32.mrf.mxu0
      %v2810 = vadd.f32 %v2748, %v2809
      %v2811 = vpop.f32.mrf.mxu0
      %v2812 = vadd.f32 %v2752, %v2811
      %v2813 = vpop.f32.mrf.mxu0
      %v2814 = vadd.f32 %v2748, %v2813
      %v2815 = vpop.f32.mrf.mxu0
      %v2816 = vadd.f32 %v2752, %v2815
      %2817 = vmatprep.mubr.bf16.mxu0 0
      %2818 = vmatmul.mubr.bf16.gmra.mxu0 %v880
      %v2819 = vpop.f32.mrf.mxu0
      %v2820 = vadd.f32 %v2748, %v2819
      %v2821 = vpop.f32.mrf.mxu0
      %v2822 = vadd.f32 %v2752, %v2821
      %v2823 = vpop.f32.mrf.mxu0
      %v2824 = vadd.f32 %v2748, %v2823
      %v2825 = vpop.f32.mrf.mxu0
      %v2826 = vadd.f32 %v2752, %v2825
      %2827 = vmatprep.mubr.bf16.mxu0 0
      %2828 = vmatmul.mubr.bf16.gmra.mxu0 %v883
      %v2829 = vpop.f32.mrf.mxu0
      %v2830 = vadd.f32 %v2748, %v2829
      %v2831 = vpop.f32.mrf.mxu0
      %v2832 = vadd.f32 %v2752, %v2831
      %v2833 = vpop.f32.mrf.mxu0
      %v2834 = vadd.f32 %v2748, %v2833
      %v2835 = vpop.f32.mrf.mxu0
      %v2836 = vadd.f32 %v2752, %v2835
      %2837 = vmatprep.mubr.bf16.mxu0 0
      %2838 = vmatmul.mubr.bf16.gmra.mxu0 %v886
      %v2839 = vpop.f32.mrf.mxu0
      %v2840 = vadd.f32 %v2748, %v2839
      %v2841 = vpop.f32.mrf.mxu0
      %v2842 = vadd.f32 %v2752, %v2841
      %v2843 = vpop.f32.mrf.mxu0
      %v2844 = vadd.f32 %v2748, %v2843
      %v2845 = vpop.f32.mrf.mxu0
      %v2846 = vadd.f32 %v2752, %v2845
      %2847 = vmatprep.mubr.bf16.mxu0 0
      %2848 = vmatmul.mubr.bf16.gmra.mxu0 %v889
      %v2849 = vpop.f32.mrf.mxu0
      %v2850 = vadd.f32 %v2748, %v2849
      %v2851 = vpop.f32.mrf.mxu0
      %v2852 = vadd.f32 %v2752, %v2851
      %v2853 = vpop.f32.mrf.mxu0
      %v2854 = vadd.f32 %v2748, %v2853
      %v2855 = vpop.f32.mrf.mxu0
      %v2856 = vadd.f32 %v2752, %v2855
      %2857 = vmatprep.mubr.bf16.mxu0 0
      %2858 = vmatmul.mubr.bf16.gmra.mxu0 %v892
      %v2859 = vpop.f32.mrf.mxu0
      %v2860 = vadd.f32 %v2748, %v2859
      %v2861 = vpop.f32.mrf.mxu0
      %v2862 = vadd.f32 %v2752, %v2861
      %v2863 = vpop.f32.mrf.mxu0
      %v2864 = vadd.f32 %v2748, %v2863
      %v2865 = vpop.f32.mrf.mxu0
      %v2866 = vadd.f32 %v2752, %v2865
      %2867 = vmatprep.mubr.bf16.mxu0 0
      %2868 = vmatmul.mubr.bf16.gmra.mxu0 %v895
      %v2869 = vpop.f32.mrf.mxu0
      %v2870 = vadd.f32 %v2748, %v2869
      %v2871 = vpop.f32.mrf.mxu0
      %v2872 = vadd.f32 %v2752, %v2871
      %v2873 = vpop.f32.mrf.mxu0
      %v2874 = vadd.f32 %v2748, %v2873
      %v2875 = vpop.f32.mrf.mxu0
      %v2876 = vadd.f32 %v2752, %v2875
      %2877 = vmatprep.mubr.bf16.mxu0 0
      %2878 = vmatmul.mubr.bf16.gmra.mxu0 %v898
      %v2879 = vpop.f32.mrf.mxu0
      %v2880 = vadd.f32 %v2748, %v2879
      %v2881 = vpop.f32.mrf.mxu0
      %v2882 = vadd.f32 %v2752, %v2881
      %v2883 = vpop.f32.mrf.mxu0
      %v2884 = vadd.f32 %v2748, %v2883
      %v2885 = vpop.f32.mrf.mxu0
      %v2886 = vadd.f32 %v2752, %v2885
      %2887 = vmatprep.mubr.bf16.mxu0 0
      %2888 = vmatmul.mubr.bf16.gmra.mxu0 %v901
      %v2889 = vpop.f32.mrf.mxu0
      %v2890 = vadd.f32 %v2748, %v2889
      %v2891 = vpop.f32.mrf.mxu0
      %v2892 = vadd.f32 %v2752, %v2891
      %v2893 = vpop.f32.mrf.mxu0
      %v2894 = vadd.f32 %v2748, %v2893
      %v2895 = vpop.f32.mrf.mxu0
      %v2896 = vadd.f32 %v2752, %v2895
      %2897 = vmatprep.mubr.bf16.mxu0 0
      %2898 = vmatmul.mubr.bf16.gmra.mxu0 %v904
      %v2899 = vpop.f32.mrf.mxu0
      %v2900 = vadd.f32 %v2748, %v2899
      %v2901 = vpop.f32.mrf.mxu0
      %v2902 = vadd.f32 %v2752, %v2901
      %v2903 = vpop.f32.mrf.mxu0
      %v2904 = vadd.f32 %v2748, %v2903
      %v2905 = vpop.f32.mrf.mxu0
      %v2906 = vadd.f32 %v2752, %v2905
      %2907 = vmatprep.mubr.bf16.mxu0 0
      %2908 = vmatmul.mubr.bf16.gmra.mxu0 %v907
      %v2909 = vpop.f32.mrf.mxu0
      %v2910 = vadd.f32 %v2748, %v2909
      %v2911 = vpop.f32.mrf.mxu0
      %v2912 = vadd.f32 %v2752, %v2911
      %v2913 = vpop.f32.mrf.mxu0
      %v2914 = vadd.f32 %v2748, %v2913
      %v2915 = vpop.f32.mrf.mxu0
      %v2916 = vadd.f32 %v2752, %v2915
      %2917 = vmatprep.mubr.bf16.mxu0 0
      %2918 = vmatmul.mubr.bf16.gmra.mxu0 %v910
      %v2919 = vpop.f32.mrf.mxu0
      %v2920 = vadd.f32 %v2748, %v2919
      %v2921 = vpop.f32.mrf.mxu0
      %v2922 = vadd.f32 %v2752, %v2921
      %v2923 = vpop.f32.mrf.mxu0
      %v2924 = vadd.f32 %v2748, %v2923
      %v2925 = vpop.f32.mrf.mxu0
      %v2926 = vadd.f32 %v2752, %v2925
      %2927 = vmatprep.mubr.bf16.mxu0 0
      %2928 = vmatmul.mubr.bf16.gmra.mxu0 %v913
      %v2929 = vpop.f32.mrf.mxu0
      %v2930 = vadd.f32 %v2748, %v2929
      %v2931 = vpop.f32.mrf.mxu0
      %v2932 = vadd.f32 %v2752, %v2931
      %v2933 = vpop.f32.mrf.mxu0
      %v2934 = vadd.f32 %v2748, %v2933
      %v2935 = vpop.f32.mrf.mxu0
      %v2936 = vadd.f32 %v2752, %v2935
      %2937 = vmatprep.mubr.bf16.mxu0 0
      %2938 = vmatmul.mubr.bf16.gmra.mxu0 %v916
      %v2939 = vpop.f32.mrf.mxu0
      %v2940 = vadd.f32 %v2748, %v2939
      %v2941 = vpop.f32.mrf.mxu0
      %v2942 = vadd.f32 %v2752, %v2941
      %v2943 = vpop.f32.mrf.mxu0
      %v2944 = vadd.f32 %v2748, %v2943
      %v2945 = vpop.f32.mrf.mxu0
      %v2946 = vadd.f32 %v2752, %v2945
      %2947 = vmatprep.mubr.bf16.mxu0 0
      %2948 = vmatmul.mubr.bf16.gmra.mxu0 %v919
      %v2949 = vpop.f32.mrf.mxu0
      %v2950 = vadd.f32 %v2748, %v2949
      %v2951 = vpop.f32.mrf.mxu0
      %v2952 = vadd.f32 %v2752, %v2951
      %v2953 = vpop.f32.mrf.mxu0
      %v2954 = vadd.f32 %v2748, %v2953
      %v2955 = vpop.f32.mrf.mxu0
      %v2956 = vadd.f32 %v2752, %v2955
      %2957 = vmatprep.mubr.bf16.mxu0 0
      %2958 = vmatmul.mubr.bf16.gmra.mxu0 %v922
      %v2959 = vpop.f32.mrf.mxu0
      %v2960 = vadd.f32 %v2748, %v2959
      %v2961 = vpop.f32.mrf.mxu0
      %v2962 = vadd.f32 %v2752, %v2961
      %v2963 = vpop.f32.mrf.mxu0
      %v2964 = vadd.f32 %v2748, %v2963
      %v2965 = vpop.f32.mrf.mxu0
      %v2966 = vadd.f32 %v2752, %v2965
      %2967 = vdwg.mxu0
      %v2968 = vmul.f32 %v2810, 0.5
      %v2969 = vmul.f32 %v2812, 0.5
      %v2970 = vmul.f32 %v2814, 0.5
      %v2971 = vmul.f32 %v2816, 0.5
      %v2972 = vmul.f32 %v2820, 0.5
      %v2973 = vmul.f32 %v2822, 0.5
      %v2974 = vmul.f32 %v2824, 0.5
      %v2975 = vmul.f32 %v2826, 0.5
      %v2976 = vmul.f32 %v2830, 0.5
      %v2977 = vmul.f32 %v2832, 0.5
      %v2978 = vmul.f32 %v2834, 0.5
      %v2979 = vmul.f32 %v2836, 0.5
      %v2980 = vmul.f32 %v2840, 0.5
      %v2981 = vmul.f32 %v2842, 0.5
      %v2982 = vmul.f32 %v2844, 0.5
      %v2983 = vmul.f32 %v2846, 0.5
      %v2984 = vmul.f32 %v2850, 0.5
      %v2985 = vmul.f32 %v2852, 0.5
      %v2986 = vmul.f32 %v2854, 0.5
      %v2987 = vmul.f32 %v2856, 0.5
      %v2988 = vmul.f32 %v2860, 0.5
      %v2989 = vmul.f32 %v2862, 0.5
      %v2990 = vmul.f32 %v2864, 0.5
      %v2991 = vmul.f32 %v2866, 0.5
      %v2992 = vmul.f32 %v2870, 0.5
      %v2993 = vmul.f32 %v2872, 0.5
      %v2994 = vmul.f32 %v2874, 0.5
      %v2995 = vmul.f32 %v2876, 0.5
      %v2996 = vmul.f32 %v2880, 0.5
      %v2997 = vmul.f32 %v2882, 0.5
      %v2998 = vmul.f32 %v2884, 0.5
      %v2999 = vmul.f32 %v2886, 0.5
      %v3000 = vmul.f32 %v2890, 0.5
      %v3001 = vmul.f32 %v2892, 0.5
      %v3002 = vmul.f32 %v2894, 0.5
      %v3003 = vmul.f32 %v2896, 0.5
      %v3004 = vmul.f32 %v2900, 0.5
      %v3005 = vmul.f32 %v2902, 0.5
      %v3006 = vmul.f32 %v2904, 0.5
      %v3007 = vmul.f32 %v2906, 0.5
      %v3008 = vmul.f32 %v2910, 0.5
      %v3009 = vmul.f32 %v2912, 0.5
      %v3010 = vmul.f32 %v2914, 0.5
      %v3011 = vmul.f32 %v2916, 0.5
      %v3012 = vmul.f32 %v2920, 0.5
      %v3013 = vmul.f32 %v2922, 0.5
      %v3014 = vmul.f32 %v2924, 0.5
      %v3015 = vmul.f32 %v2926, 0.5
      %v3016 = vmul.f32 %v2930, 0.5
      %v3017 = vmul.f32 %v2932, 0.5
      %v3018 = vmul.f32 %v2934, 0.5
      %v3019 = vmul.f32 %v2936, 0.5
      %v3020 = vmul.f32 %v2940, 0.5
      %v3021 = vmul.f32 %v2942, 0.5
      %v3022 = vmul.f32 %v2944, 0.5
      %v3023 = vmul.f32 %v2946, 0.5
      %v3024 = vmul.f32 %v2950, 0.5
      %v3025 = vmul.f32 %v2952, 0.5
      %v3026 = vmul.f32 %v2954, 0.5
      %v3027 = vmul.f32 %v2956, 0.5
      %v3028 = vmul.f32 %v2960, 0.5
      %v3029 = vmul.f32 %v2962, 0.5
      %v3030 = vmul.f32 %v2964, 0.5
      %v3031 = vmul.f32 %v2966, 0.5
      %v3032 = vtanh.pop %v2968
      %v3033 = vtanh.pop %v2969
      %v3034 = vtanh.pop %v2970
      %v3035 = vtanh.pop %v2971
      %v3036 = vtanh.pop %v2972
      %v3037 = vtanh.pop %v2973
      %v3038 = vtanh.pop %v2974
      %v3039 = vtanh.pop %v2975
      %v3040 = vtanh.pop %v2976
      %v3041 = vtanh.pop %v2977
      %v3042 = vtanh.pop %v2978
      %v3043 = vtanh.pop %v2979
      %v3044 = vtanh.pop %v2980
      %v3045 = vtanh.pop %v2981
      %v3046 = vtanh.pop %v2982
      %v3047 = vtanh.pop %v2983
      %v3048 = vtanh.pop %v2984
      %v3049 = vtanh.pop %v2985
      %v3050 = vtanh.pop %v2986
      %v3051 = vtanh.pop %v2987
      %v3052 = vtanh.pop %v2988
      %v3053 = vtanh.pop %v2989
      %v3054 = vtanh.pop %v2990
      %v3055 = vtanh.pop %v2991
      %v3056 = vtanh.pop %v2992
      %v3057 = vtanh.pop %v2993
      %v3058 = vtanh.pop %v2994
      %v3059 = vtanh.pop %v2995
      %v3060 = vtanh.pop %v2996
      %v3061 = vtanh.pop %v2997
      %v3062 = vtanh.pop %v2998
      %v3063 = vtanh.pop %v2999
      %v3064 = vtanh.pop %v3000
      %v3065 = vtanh.pop %v3001
      %v3066 = vtanh.pop %v3002
      %v3067 = vtanh.pop %v3003
      %v3068 = vtanh.pop %v3004
      %v3069 = vtanh.pop %v3005
      %v3070 = vtanh.pop %v3006
      %v3071 = vtanh.pop %v3007
      %v3072 = vtanh.pop %v3008
      %v3073 = vtanh.pop %v3009
      %v3074 = vtanh.pop %v3010
      %v3075 = vtanh.pop %v3011
      %v3076 = vtanh.pop %v3012
      %v3077 = vtanh.pop %v3013
      %v3078 = vtanh.pop %v3014
      %v3079 = vtanh.pop %v3015
      %v3080 = vtanh.pop %v3016
      %v3081 = vtanh.pop %v3017
      %v3082 = vtanh.pop %v3018
      %v3083 = vtanh.pop %v3019
      %v3084 = vtanh.pop %v3020
      %v3085 = vtanh.pop %v3021
      %v3086 = vtanh.pop %v3022
      %v3087 = vtanh.pop %v3023
      %v3088 = vtanh.pop %v3024
      %v3089 = vtanh.pop %v3025
      %v3090 = vtanh.pop %v3026
      %v3091 = vtanh.pop %v3027
      %v3092 = vtanh.pop %v3028
      %v3093 = vtanh.pop %v3029
      %v3094 = vtanh.pop %v3030
      %v3095 = vtanh.pop %v3031
      %v3096 = vmul.f32 %v3032, 0.5
      %v3097 = vmul.f32 %v3033, 0.5
      %v3098 = vmul.f32 %v3034, 0.5
      %v3099 = vmul.f32 %v3035, 0.5
      %v3100 = vmul.f32 %v3036, 0.5
      %v3101 = vmul.f32 %v3037, 0.5
      %v3102 = vmul.f32 %v3038, 0.5
      %v3103 = vmul.f32 %v3039, 0.5
      %v3104 = vmul.f32 %v3040, 0.5
      %v3105 = vmul.f32 %v3041, 0.5
      %v3106 = vmul.f32 %v3042, 0.5
      %v3107 = vmul.f32 %v3043, 0.5
      %v3108 = vmul.f32 %v3044, 0.5
      %v3109 = vmul.f32 %v3045, 0.5
      %v3110 = vmul.f32 %v3046, 0.5
      %v3111 = vmul.f32 %v3047, 0.5
      %v3112 = vmul.f32 %v3048, 0.5
      %v3113 = vmul.f32 %v3049, 0.5
      %v3114 = vmul.f32 %v3050, 0.5
      %v3115 = vmul.f32 %v3051, 0.5
      %v3116 = vmul.f32 %v3052, 0.5
      %v3117 = vmul.f32 %v3053, 0.5
      %v3118 = vmul.f32 %v3054, 0.5
      %v3119 = vmul.f32 %v3055, 0.5
      %v3120 = vmul.f32 %v3056, 0.5
      %v3121 = vmul.f32 %v3057, 0.5
      %v3122 = vmul.f32 %v3058, 0.5
      %v3123 = vmul.f32 %v3059, 0.5
      %v3124 = vmul.f32 %v3060, 0.5
      %v3125 = vmul.f32 %v3061, 0.5
      %v3126 = vmul.f32 %v3062, 0.5
      %v3127 = vmul.f32 %v3063, 0.5
      %v3128 = vmul.f32 %v3064, 0.5
      %v3129 = vmul.f32 %v3065, 0.5
      %v3130 = vmul.f32 %v3066, 0.5
      %v3131 = vmul.f32 %v3067, 0.5
      %v3132 = vmul.f32 %v3068, 0.5
      %v3133 = vmul.f32 %v3069, 0.5
      %v3134 = vmul.f32 %v3070, 0.5
      %v3135 = vmul.f32 %v3071, 0.5
      %v3136 = vmul.f32 %v3072, 0.5
      %v3137 = vmul.f32 %v3073, 0.5
      %v3138 = vmul.f32 %v3074, 0.5
      %v3139 = vmul.f32 %v3075, 0.5
      %v3140 = vmul.f32 %v3076, 0.5
      %v3141 = vmul.f32 %v3077, 0.5
      %v3142 = vmul.f32 %v3078, 0.5
      %v3143 = vmul.f32 %v3079, 0.5
      %v3144 = vmul.f32 %v3080, 0.5
      %v3145 = vmul.f32 %v3081, 0.5
      %v3146 = vmul.f32 %v3082, 0.5
      %v3147 = vmul.f32 %v3083, 0.5
      %v3148 = vmul.f32 %v3084, 0.5
      %v3149 = vmul.f32 %v3085, 0.5
      %v3150 = vmul.f32 %v3086, 0.5
      %v3151 = vmul.f32 %v3087, 0.5
      %v3152 = vmul.f32 %v3088, 0.5
      %v3153 = vmul.f32 %v3089, 0.5
      %v3154 = vmul.f32 %v3090, 0.5
      %v3155 = vmul.f32 %v3091, 0.5
      %v3156 = vmul.f32 %v3092, 0.5
      %v3157 = vmul.f32 %v3093, 0.5
      %v3158 = vmul.f32 %v3094, 0.5
      %v3159 = vmul.f32 %v3095, 0.5
      %v3160 = vadd.f32 %v3096, 0.5
      %v3161 = vadd.f32 %v3097, 0.5
      %v3162 = vadd.f32 %v3098, 0.5
      %v3163 = vadd.f32 %v3099, 0.5
      %v3164 = vadd.f32 %v3100, 0.5
      %v3165 = vadd.f32 %v3101, 0.5
      %v3166 = vadd.f32 %v3102, 0.5
      %v3167 = vadd.f32 %v3103, 0.5
      %v3168 = vadd.f32 %v3104, 0.5
      %v3169 = vadd.f32 %v3105, 0.5
      %v3170 = vadd.f32 %v3106, 0.5
      %v3171 = vadd.f32 %v3107, 0.5
      %v3172 = vadd.f32 %v3108, 0.5
      %v3173 = vadd.f32 %v3109, 0.5
      %v3174 = vadd.f32 %v3110, 0.5
      %v3175 = vadd.f32 %v3111, 0.5
      %v3176 = vadd.f32 %v3112, 0.5
      %v3177 = vadd.f32 %v3113, 0.5
      %v3178 = vadd.f32 %v3114, 0.5
      %v3179 = vadd.f32 %v3115, 0.5
      %v3180 = vadd.f32 %v3116, 0.5
      %v3181 = vadd.f32 %v3117, 0.5
      %v3182 = vadd.f32 %v3118, 0.5
      %v3183 = vadd.f32 %v3119, 0.5
      %v3184 = vadd.f32 %v3120, 0.5
      %v3185 = vadd.f32 %v3121, 0.5
      %v3186 = vadd.f32 %v3122, 0.5
      %v3187 = vadd.f32 %v3123, 0.5
      %v3188 = vadd.f32 %v3124, 0.5
      %v3189 = vadd.f32 %v3125, 0.5
      %v3190 = vadd.f32 %v3126, 0.5
      %v3191 = vadd.f32 %v3127, 0.5
      %v3192 = vadd.f32 %v3128, 0.5
      %v3193 = vadd.f32 %v3129, 0.5
      %v3194 = vadd.f32 %v3130, 0.5
      %v3195 = vadd.f32 %v3131, 0.5
      %v3196 = vadd.f32 %v3132, 0.5
      %v3197 = vadd.f32 %v3133, 0.5
      %v3198 = vadd.f32 %v3134, 0.5
      %v3199 = vadd.f32 %v3135, 0.5
      %v3200 = vadd.f32 %v3136, 0.5
      %v3201 = vadd.f32 %v3137, 0.5
      %v3202 = vadd.f32 %v3138, 0.5
      %v3203 = vadd.f32 %v3139, 0.5
      %v3204 = vadd.f32 %v3140, 0.5
      %v3205 = vadd.f32 %v3141, 0.5
      %v3206 = vadd.f32 %v3142, 0.5
      %v3207 = vadd.f32 %v3143, 0.5
      %v3208 = vadd.f32 %v3144, 0.5
      %v3209 = vadd.f32 %v3145, 0.5
      %v3210 = vadd.f32 %v3146, 0.5
      %v3211 = vadd.f32 %v3147, 0.5
      %v3212 = vadd.f32 %v3148, 0.5
      %v3213 = vadd.f32 %v3149, 0.5
      %v3214 = vadd.f32 %v3150, 0.5
      %v3215 = vadd.f32 %v3151, 0.5
      %v3216 = vadd.f32 %v3152, 0.5
      %v3217 = vadd.f32 %v3153, 0.5
      %v3218 = vadd.f32 %v3154, 0.5
      %v3219 = vadd.f32 %v3155, 0.5
      %v3220 = vadd.f32 %v3156, 0.5
      %v3221 = vadd.f32 %v3157, 0.5
      %v3222 = vadd.f32 %v3158, 0.5
      %v3223 = vadd.f32 %v3159, 0.5
      %v3224 = vmul.f32 %v2810, %v3160
      %v3225 = vmul.f32 %v2812, %v3161
      %v3226 = vmul.f32 %v2814, %v3162
      %v3227 = vmul.f32 %v2816, %v3163
      %v3228 = vmul.f32 %v2820, %v3164
      %v3229 = vmul.f32 %v2822, %v3165
      %v3230 = vmul.f32 %v2824, %v3166
      %v3231 = vmul.f32 %v2826, %v3167
      %v3232 = vmul.f32 %v2830, %v3168
      %v3233 = vmul.f32 %v2832, %v3169
      %v3234 = vmul.f32 %v2834, %v3170
      %v3235 = vmul.f32 %v2836, %v3171
      %v3236 = vmul.f32 %v2840, %v3172
      %v3237 = vmul.f32 %v2842, %v3173
      %v3238 = vmul.f32 %v2844, %v3174
      %v3239 = vmul.f32 %v2846, %v3175
      %v3240 = vmul.f32 %v2850, %v3176
      %v3241 = vmul.f32 %v2852, %v3177
      %v3242 = vmul.f32 %v2854, %v3178
      %v3243 = vmul.f32 %v2856, %v3179
      %v3244 = vmul.f32 %v2860, %v3180
      %v3245 = vmul.f32 %v2862, %v3181
      %v3246 = vmul.f32 %v2864, %v3182
      %v3247 = vmul.f32 %v2866, %v3183
      %v3248 = vmul.f32 %v2870, %v3184
      %v3249 = vmul.f32 %v2872, %v3185
      %v3250 = vmul.f32 %v2874, %v3186
      %v3251 = vmul.f32 %v2876, %v3187
      %v3252 = vmul.f32 %v2880, %v3188
      %v3253 = vmul.f32 %v2882, %v3189
      %v3254 = vmul.f32 %v2884, %v3190
      %v3255 = vmul.f32 %v2886, %v3191
      %v3256 = vmul.f32 %v2890, %v3192
      %v3257 = vmul.f32 %v2892, %v3193
      %v3258 = vmul.f32 %v2894, %v3194
      %v3259 = vmul.f32 %v2896, %v3195
      %v3260 = vmul.f32 %v2900, %v3196
      %v3261 = vmul.f32 %v2902, %v3197
      %v3262 = vmul.f32 %v2904, %v3198
      %v3263 = vmul.f32 %v2906, %v3199
      %v3264 = vmul.f32 %v2910, %v3200
      %v3265 = vmul.f32 %v2912, %v3201
      %v3266 = vmul.f32 %v2914, %v3202
      %v3267 = vmul.f32 %v2916, %v3203
      %v3268 = vmul.f32 %v2920, %v3204
      %v3269 = vmul.f32 %v2922, %v3205
      %v3270 = vmul.f32 %v2924, %v3206
      %v3271 = vmul.f32 %v2926, %v3207
      %v3272 = vmul.f32 %v2930, %v3208
      %v3273 = vmul.f32 %v2932, %v3209
      %v3274 = vmul.f32 %v2934, %v3210
      %v3275 = vmul.f32 %v2936, %v3211
      %v3276 = vmul.f32 %v2940, %v3212
      %v3277 = vmul.f32 %v2942, %v3213
      %v3278 = vmul.f32 %v2944, %v3214
      %v3279 = vmul.f32 %v2946, %v3215
      %v3280 = vmul.f32 %v2950, %v3216
      %v3281 = vmul.f32 %v2952, %v3217
      %v3282 = vmul.f32 %v2954, %v3218
      %v3283 = vmul.f32 %v2956, %v3219
      %v3284 = vmul.f32 %v2960, %v3220
      %v3285 = vmul.f32 %v2962, %v3221
      %v3286 = vmul.f32 %v2964, %v3222
      %v3287 = vmul.f32 %v2966, %v3223
      %v3288 = vld [vmem:[#allocation2 + $0x30] sm:$0xff]
      %v3289 = vld [vmem:[#allocation2 + $0x38] sm:$0xff]
      %v3290 = vadd.f32 %v3224, %v3226
      %v3291 = vadd.f32 %v3290, %v3228
      %v3292 = vadd.f32 %v3291, %v3230
      %v3293 = vadd.f32 %v3292, %v3232
      %v3294 = vadd.f32 %v3293, %v3234
      %v3295 = vadd.f32 %v3294, %v3236
      %v3296 = vadd.f32 %v3295, %v3238
      %v3297 = vadd.f32 %v3296, %v3240
      %v3298 = vadd.f32 %v3297, %v3242
      %v3299 = vadd.f32 %v3298, %v3244
      %v3300 = vadd.f32 %v3299, %v3246
      %v3301 = vadd.f32 %v3300, %v3248
      %v3302 = vadd.f32 %v3301, %v3250
      %v3303 = vadd.f32 %v3302, %v3252
      %v3304 = vadd.f32 %v3303, %v3254
      %v3305 = vadd.f32 %v3304, %v3256
      %v3306 = vadd.f32 %v3305, %v3258
      %v3307 = vadd.f32 %v3306, %v3260
      %v3308 = vadd.f32 %v3307, %v3262
      %v3309 = vadd.f32 %v3308, %v3264
      %v3310 = vadd.f32 %v3309, %v3266
      %v3311 = vadd.f32 %v3310, %v3268
      %v3312 = vadd.f32 %v3311, %v3270
      %v3313 = vadd.f32 %v3312, %v3272
      %v3314 = vadd.f32 %v3313, %v3274
      %v3315 = vadd.f32 %v3314, %v3276
      %v3316 = vadd.f32 %v3315, %v3278
      %v3317 = vadd.f32 %v3316, %v3280
      %v3318 = vadd.f32 %v3317, %v3282
      %v3319 = vadd.f32 %v3318, %v3284
      %v3320 = vadd.f32 %v3319, %v3286
      %v3321 = vadd.f32 %v3225, %v3227
      %v3322 = vadd.f32 %v3321, %v3229
      %v3323 = vadd.f32 %v3322, %v3231
      %v3324 = vadd.f32 %v3323, %v3233
      %v3325 = vadd.f32 %v3324, %v3235
      %v3326 = vadd.f32 %v3325, %v3237
      %v3327 = vadd.f32 %v3326, %v3239
      %v3328 = vadd.f32 %v3327, %v3241
      %v3329 = vadd.f32 %v3328, %v3243
      %v3330 = vadd.f32 %v3329, %v3245
      %v3331 = vadd.f32 %v3330, %v3247
      %v3332 = vadd.f32 %v3331, %v3249
      %v3333 = vadd.f32 %v3332, %v3251
      %v3334 = vadd.f32 %v3333, %v3253
      %v3335 = vadd.f32 %v3334, %v3255
      %v3336 = vadd.f32 %v3335, %v3257
      %v3337 = vadd.f32 %v3336, %v3259
      %v3338 = vadd.f32 %v3337, %v3261
      %v3339 = vadd.f32 %v3338, %v3263
      %v3340 = vadd.f32 %v3339, %v3265
      %v3341 = vadd.f32 %v3340, %v3267
      %v3342 = vadd.f32 %v3341, %v3269
      %v3343 = vadd.f32 %v3342, %v3271
      %v3344 = vadd.f32 %v3343, %v3273
      %v3345 = vadd.f32 %v3344, %v3275
      %v3346 = vadd.f32 %v3345, %v3277
      %v3347 = vadd.f32 %v3346, %v3279
      %v3348 = vadd.f32 %v3347, %v3281
      %v3349 = vadd.f32 %v3348, %v3283
      %v3350 = vadd.f32 %v3349, %v3285
      %v3351 = vadd.f32 %v3350, %v3287
      %v3352 = vadd.f32 %v3288, %v3320
      %v3353 = vadd.f32 %v3289, %v3351
      %3354 = vst [vmem:[#allocation2 + $0x30] sm:$0xff] %v3352
      %3355 = vst [vmem:[#allocation2 + $0x38] sm:$0xff] %v3353
      %v3356 = vld [vmem:[%s3 + $0x20] sm:$0xff]
      %v3357 = vld [vmem:[%s3 + $0x48] sm:$0xff]
      %v3358 = vld [vmem:[%s3 + $0x70] sm:$0xff]
      %v3359 = vld [vmem:[%s3 + $0x98] sm:$0xff]
      %v3360 = vld [vmem:[%s4 + $0x8] sm:$0x3]
      %v3362 = vlaneseq
      %v3363 = vshrl.u32 %v3362, 7
      %v3364 = vsub.s32 0, %v3363
      %v3365 = vrot.slane %v3360, %v3364
      %v3366 = vlaneseq
      %v3367 = vshrl.u32 %v3366, 7
      %v3368 = vsub.s32 1, %v3367
      %v3369 = vrot.slane %v3360, %v3368
      %v3376 = vunpack.c.l.b16 %v3356
      %v3377 = vunpack.c.h.b16 %v3356
      %v3378 = vunpack.c.l.b16 %v3357
      %v3379 = vunpack.c.h.b16 %v3357
      %v3380 = vunpack.c.l.b16 %v3358
      %v3381 = vunpack.c.h.b16 %v3358
      %v3382 = vunpack.c.l.b16 %v3359
      %v3383 = vunpack.c.h.b16 %v3359
      %v3384 = vpack.c.b16 %v3378, %v3376
      %v3385 = vpack.c.b16 %v3379, %v3377
      %v3386 = vpack.c.b16 %v3382, %v3380
      %v3387 = vpack.c.b16 %v3383, %v3381
      %3392 = vmatprep.subr.bf16.mxu0 0
      %3393 = vmatpush1.bf16.msra.mxu0 0
      %3394 = vmatprep.subr.bf16.mxu0 0
      %3395 = vmatpush1.bf16.msra.mxu0 0
      %3396 = vmatprep.subr.bf16.mxu0 0
      %3397 = vmatpush1.bf16.msra.mxu0 0
      %3398 = vmatprep.subr.bf16.mxu0 0
      %3399 = vmatpush1.bf16.msra.mxu0 0
      %3400 = vmatprep.subr.bf16.mxu0 0
      %3401 = vmatpush1.bf16.msra.mxu0 0
      %3402 = vmatprep.subr.bf16.mxu0 0
      %3403 = vmatpush1.bf16.msra.mxu0 0
      %3404 = vmatprep.subr.bf16.mxu0 %v3387
      %3405 = vmatpush1.bf16.msra.mxu0 %v3386
      %3406 = vmatprep.subr.bf16.mxu0 %v3385
      %3407 = vmatpush1.bf16.msra.mxu0 %v3384
      %3408 = vmatprep.subr.bf16.mxu0 0
      %3409 = vmatpush2.bf16.msra.mxu0 0
      %3410 = vmatprep.subr.bf16.mxu0 0
      %3411 = vmatpush2.bf16.msra.mxu0 0
      %3412 = vmatprep.subr.bf16.mxu0 0
      %3413 = vmatpush2.bf16.msra.mxu0 0
      %3414 = vmatprep.subr.bf16.mxu0 0
      %3415 = vmatpush2.bf16.msra.mxu0 0
      %3416 = vmatprep.subr.bf16.mxu0 0
      %3417 = vmatpush2.bf16.msra.mxu0 0
      %3418 = vmatprep.subr.bf16.mxu0 0
      %3419 = vmatpush2.bf16.msra.mxu0 0
      %3420 = vmatprep.subr.bf16.mxu0 0
      %3421 = vmatpush2.bf16.msra.mxu0 0
      %3422 = vmatprep.subr.bf16.mxu0 0
      %3423 = vmatpush2.bf16.msra.mxu0 0
      %3424 = vmatprep.mubr.bf16.mxu0 0
      %3425 = vmatmul.mubr.bf16.gmra.mxu0 %v877
      %v3426 = vpop.f32.mrf.mxu0
      %v3427 = vadd.f32 %v3365, %v3426
      %v3428 = vpop.f32.mrf.mxu0
      %v3429 = vadd.f32 %v3369, %v3428
      %v3430 = vpop.f32.mrf.mxu0
      %v3431 = vadd.f32 %v3365, %v3430
      %v3432 = vpop.f32.mrf.mxu0
      %v3433 = vadd.f32 %v3369, %v3432
      %3434 = vmatprep.mubr.bf16.mxu0 0
      %3435 = vmatmul.mubr.bf16.gmra.mxu0 %v880
      %v3436 = vpop.f32.mrf.mxu0
      %v3437 = vadd.f32 %v3365, %v3436
      %v3438 = vpop.f32.mrf.mxu0
      %v3439 = vadd.f32 %v3369, %v3438
      %v3440 = vpop.f32.mrf.mxu0
      %v3441 = vadd.f32 %v3365, %v3440
      %v3442 = vpop.f32.mrf.mxu0
      %v3443 = vadd.f32 %v3369, %v3442
      %3444 = vmatprep.mubr.bf16.mxu0 0
      %3445 = vmatmul.mubr.bf16.gmra.mxu0 %v883
      %v3446 = vpop.f32.mrf.mxu0
      %v3447 = vadd.f32 %v3365, %v3446
      %v3448 = vpop.f32.mrf.mxu0
      %v3449 = vadd.f32 %v3369, %v3448
      %v3450 = vpop.f32.mrf.mxu0
      %v3451 = vadd.f32 %v3365, %v3450
      %v3452 = vpop.f32.mrf.mxu0
      %v3453 = vadd.f32 %v3369, %v3452
      %3454 = vmatprep.mubr.bf16.mxu0 0
      %3455 = vmatmul.mubr.bf16.gmra.mxu0 %v886
      %v3456 = vpop.f32.mrf.mxu0
      %v3457 = vadd.f32 %v3365, %v3456
      %v3458 = vpop.f32.mrf.mxu0
      %v3459 = vadd.f32 %v3369, %v3458
      %v3460 = vpop.f32.mrf.mxu0
      %v3461 = vadd.f32 %v3365, %v3460
      %v3462 = vpop.f32.mrf.mxu0
      %v3463 = vadd.f32 %v3369, %v3462
      %3464 = vmatprep.mubr.bf16.mxu0 0
      %3465 = vmatmul.mubr.bf16.gmra.mxu0 %v889
      %v3466 = vpop.f32.mrf.mxu0
      %v3467 = vadd.f32 %v3365, %v3466
      %v3468 = vpop.f32.mrf.mxu0
      %v3469 = vadd.f32 %v3369, %v3468
      %v3470 = vpop.f32.mrf.mxu0
      %v3471 = vadd.f32 %v3365, %v3470
      %v3472 = vpop.f32.mrf.mxu0
      %v3473 = vadd.f32 %v3369, %v3472
      %3474 = vmatprep.mubr.bf16.mxu0 0
      %3475 = vmatmul.mubr.bf16.gmra.mxu0 %v892
      %v3476 = vpop.f32.mrf.mxu0
      %v3477 = vadd.f32 %v3365, %v3476
      %v3478 = vpop.f32.mrf.mxu0
      %v3479 = vadd.f32 %v3369, %v3478
      %v3480 = vpop.f32.mrf.mxu0
      %v3481 = vadd.f32 %v3365, %v3480
      %v3482 = vpop.f32.mrf.mxu0
      %v3483 = vadd.f32 %v3369, %v3482
      %3484 = vmatprep.mubr.bf16.mxu0 0
      %3485 = vmatmul.mubr.bf16.gmra.mxu0 %v895
      %v3486 = vpop.f32.mrf.mxu0
      %v3487 = vadd.f32 %v3365, %v3486
      %v3488 = vpop.f32.mrf.mxu0
      %v3489 = vadd.f32 %v3369, %v3488
      %v3490 = vpop.f32.mrf.mxu0
      %v3491 = vadd.f32 %v3365, %v3490
      %v3492 = vpop.f32.mrf.mxu0
      %v3493 = vadd.f32 %v3369, %v3492
      %3494 = vmatprep.mubr.bf16.mxu0 0
      %3495 = vmatmul.mubr.bf16.gmra.mxu0 %v898
      %v3496 = vpop.f32.mrf.mxu0
      %v3497 = vadd.f32 %v3365, %v3496
      %v3498 = vpop.f32.mrf.mxu0
      %v3499 = vadd.f32 %v3369, %v3498
      %v3500 = vpop.f32.mrf.mxu0
      %v3501 = vadd.f32 %v3365, %v3500
      %v3502 = vpop.f32.mrf.mxu0
      %v3503 = vadd.f32 %v3369, %v3502
      %3504 = vmatprep.mubr.bf16.mxu0 0
      %3505 = vmatmul.mubr.bf16.gmra.mxu0 %v901
      %v3506 = vpop.f32.mrf.mxu0
      %v3507 = vadd.f32 %v3365, %v3506
      %v3508 = vpop.f32.mrf.mxu0
      %v3509 = vadd.f32 %v3369, %v3508
      %v3510 = vpop.f32.mrf.mxu0
      %v3511 = vadd.f32 %v3365, %v3510
      %v3512 = vpop.f32.mrf.mxu0
      %v3513 = vadd.f32 %v3369, %v3512
      %3514 = vmatprep.mubr.bf16.mxu0 0
      %3515 = vmatmul.mubr.bf16.gmra.mxu0 %v904
      %v3516 = vpop.f32.mrf.mxu0
      %v3517 = vadd.f32 %v3365, %v3516
      %v3518 = vpop.f32.mrf.mxu0
      %v3519 = vadd.f32 %v3369, %v3518
      %v3520 = vpop.f32.mrf.mxu0
      %v3521 = vadd.f32 %v3365, %v3520
      %v3522 = vpop.f32.mrf.mxu0
      %v3523 = vadd.f32 %v3369, %v3522
      %3524 = vmatprep.mubr.bf16.mxu0 0
      %3525 = vmatmul.mubr.bf16.gmra.mxu0 %v907
      %v3526 = vpop.f32.mrf.mxu0
      %v3527 = vadd.f32 %v3365, %v3526
      %v3528 = vpop.f32.mrf.mxu0
      %v3529 = vadd.f32 %v3369, %v3528
      %v3530 = vpop.f32.mrf.mxu0
      %v3531 = vadd.f32 %v3365, %v3530
      %v3532 = vpop.f32.mrf.mxu0
      %v3533 = vadd.f32 %v3369, %v3532
      %3534 = vmatprep.mubr.bf16.mxu0 0
      %3535 = vmatmul.mubr.bf16.gmra.mxu0 %v910
      %v3536 = vpop.f32.mrf.mxu0
      %v3537 = vadd.f32 %v3365, %v3536
      %v3538 = vpop.f32.mrf.mxu0
      %v3539 = vadd.f32 %v3369, %v3538
      %v3540 = vpop.f32.mrf.mxu0
      %v3541 = vadd.f32 %v3365, %v3540
      %v3542 = vpop.f32.mrf.mxu0
      %v3543 = vadd.f32 %v3369, %v3542
      %3544 = vmatprep.mubr.bf16.mxu0 0
      %3545 = vmatmul.mubr.bf16.gmra.mxu0 %v913
      %v3546 = vpop.f32.mrf.mxu0
      %v3547 = vadd.f32 %v3365, %v3546
      %v3548 = vpop.f32.mrf.mxu0
      %v3549 = vadd.f32 %v3369, %v3548
      %v3550 = vpop.f32.mrf.mxu0
      %v3551 = vadd.f32 %v3365, %v3550
      %v3552 = vpop.f32.mrf.mxu0
      %v3553 = vadd.f32 %v3369, %v3552
      %3554 = vmatprep.mubr.bf16.mxu0 0
      %3555 = vmatmul.mubr.bf16.gmra.mxu0 %v916
      %v3556 = vpop.f32.mrf.mxu0
      %v3557 = vadd.f32 %v3365, %v3556
      %v3558 = vpop.f32.mrf.mxu0
      %v3559 = vadd.f32 %v3369, %v3558
      %v3560 = vpop.f32.mrf.mxu0
      %v3561 = vadd.f32 %v3365, %v3560
      %v3562 = vpop.f32.mrf.mxu0
      %v3563 = vadd.f32 %v3369, %v3562
      %3564 = vmatprep.mubr.bf16.mxu0 0
      %3565 = vmatmul.mubr.bf16.gmra.mxu0 %v919
      %v3566 = vpop.f32.mrf.mxu0
      %v3567 = vadd.f32 %v3365, %v3566
      %v3568 = vpop.f32.mrf.mxu0
      %v3569 = vadd.f32 %v3369, %v3568
      %v3570 = vpop.f32.mrf.mxu0
      %v3571 = vadd.f32 %v3365, %v3570
      %v3572 = vpop.f32.mrf.mxu0
      %v3573 = vadd.f32 %v3369, %v3572
      %3574 = vmatprep.mubr.bf16.mxu0 0
      %3575 = vmatmul.mubr.bf16.gmra.mxu0 %v922
      %v3576 = vpop.f32.mrf.mxu0
      %v3577 = vadd.f32 %v3365, %v3576
      %v3578 = vpop.f32.mrf.mxu0
      %v3579 = vadd.f32 %v3369, %v3578
      %v3580 = vpop.f32.mrf.mxu0
      %v3581 = vadd.f32 %v3365, %v3580
      %v3582 = vpop.f32.mrf.mxu0
      %v3583 = vadd.f32 %v3369, %v3582
      %3584 = vdwg.mxu0
      %v3585 = vmul.f32 %v3427, 0.5
      %v3586 = vmul.f32 %v3429, 0.5
      %v3587 = vmul.f32 %v3431, 0.5
      %v3588 = vmul.f32 %v3433, 0.5
      %v3589 = vmul.f32 %v3437, 0.5
      %v3590 = vmul.f32 %v3439, 0.5
      %v3591 = vmul.f32 %v3441, 0.5
      %v3592 = vmul.f32 %v3443, 0.5
      %v3593 = vmul.f32 %v3447, 0.5
      %v3594 = vmul.f32 %v3449, 0.5
      %v3595 = vmul.f32 %v3451, 0.5
      %v3596 = vmul.f32 %v3453, 0.5
      %v3597 = vmul.f32 %v3457, 0.5
      %v3598 = vmul.f32 %v3459, 0.5
      %v3599 = vmul.f32 %v3461, 0.5
      %v3600 = vmul.f32 %v3463, 0.5
      %v3601 = vmul.f32 %v3467, 0.5
      %v3602 = vmul.f32 %v3469, 0.5
      %v3603 = vmul.f32 %v3471, 0.5
      %v3604 = vmul.f32 %v3473, 0.5
      %v3605 = vmul.f32 %v3477, 0.5
      %v3606 = vmul.f32 %v3479, 0.5
      %v3607 = vmul.f32 %v3481, 0.5
      %v3608 = vmul.f32 %v3483, 0.5
      %v3609 = vmul.f32 %v3487, 0.5
      %v3610 = vmul.f32 %v3489, 0.5
      %v3611 = vmul.f32 %v3491, 0.5
      %v3612 = vmul.f32 %v3493, 0.5
      %v3613 = vmul.f32 %v3497, 0.5
      %v3614 = vmul.f32 %v3499, 0.5
      %v3615 = vmul.f32 %v3501, 0.5
      %v3616 = vmul.f32 %v3503, 0.5
      %v3617 = vmul.f32 %v3507, 0.5
      %v3618 = vmul.f32 %v3509, 0.5
      %v3619 = vmul.f32 %v3511, 0.5
      %v3620 = vmul.f32 %v3513, 0.5
      %v3621 = vmul.f32 %v3517, 0.5
      %v3622 = vmul.f32 %v3519, 0.5
      %v3623 = vmul.f32 %v3521, 0.5
      %v3624 = vmul.f32 %v3523, 0.5
      %v3625 = vmul.f32 %v3527, 0.5
      %v3626 = vmul.f32 %v3529, 0.5
      %v3627 = vmul.f32 %v3531, 0.5
      %v3628 = vmul.f32 %v3533, 0.5
      %v3629 = vmul.f32 %v3537, 0.5
      %v3630 = vmul.f32 %v3539, 0.5
      %v3631 = vmul.f32 %v3541, 0.5
      %v3632 = vmul.f32 %v3543, 0.5
      %v3633 = vmul.f32 %v3547, 0.5
      %v3634 = vmul.f32 %v3549, 0.5
      %v3635 = vmul.f32 %v3551, 0.5
      %v3636 = vmul.f32 %v3553, 0.5
      %v3637 = vmul.f32 %v3557, 0.5
      %v3638 = vmul.f32 %v3559, 0.5
      %v3639 = vmul.f32 %v3561, 0.5
      %v3640 = vmul.f32 %v3563, 0.5
      %v3641 = vmul.f32 %v3567, 0.5
      %v3642 = vmul.f32 %v3569, 0.5
      %v3643 = vmul.f32 %v3571, 0.5
      %v3644 = vmul.f32 %v3573, 0.5
      %v3645 = vmul.f32 %v3577, 0.5
      %v3646 = vmul.f32 %v3579, 0.5
      %v3647 = vmul.f32 %v3581, 0.5
      %v3648 = vmul.f32 %v3583, 0.5
      %v3649 = vtanh.pop %v3585
      %v3650 = vtanh.pop %v3586
      %v3651 = vtanh.pop %v3587
      %v3652 = vtanh.pop %v3588
      %v3653 = vtanh.pop %v3589
      %v3654 = vtanh.pop %v3590
      %v3655 = vtanh.pop %v3591
      %v3656 = vtanh.pop %v3592
      %v3657 = vtanh.pop %v3593
      %v3658 = vtanh.pop %v3594
      %v3659 = vtanh.pop %v3595
      %v3660 = vtanh.pop %v3596
      %v3661 = vtanh.pop %v3597
      %v3662 = vtanh.pop %v3598
      %v3663 = vtanh.pop %v3599
      %v3664 = vtanh.pop %v3600
      %v3665 = vtanh.pop %v3601
      %v3666 = vtanh.pop %v3602
      %v3667 = vtanh.pop %v3603
      %v3668 = vtanh.pop %v3604
      %v3669 = vtanh.pop %v3605
      %v3670 = vtanh.pop %v3606
      %v3671 = vtanh.pop %v3607
      %v3672 = vtanh.pop %v3608
      %v3673 = vtanh.pop %v3609
      %v3674 = vtanh.pop %v3610
      %v3675 = vtanh.pop %v3611
      %v3676 = vtanh.pop %v3612
      %v3677 = vtanh.pop %v3613
      %v3678 = vtanh.pop %v3614
      %v3679 = vtanh.pop %v3615
      %v3680 = vtanh.pop %v3616
      %v3681 = vtanh.pop %v3617
      %v3682 = vtanh.pop %v3618
      %v3683 = vtanh.pop %v3619
      %v3684 = vtanh.pop %v3620
      %v3685 = vtanh.pop %v3621
      %v3686 = vtanh.pop %v3622
      %v3687 = vtanh.pop %v3623
      %v3688 = vtanh.pop %v3624
      %v3689 = vtanh.pop %v3625
      %v3690 = vtanh.pop %v3626
      %v3691 = vtanh.pop %v3627
      %v3692 = vtanh.pop %v3628
      %v3693 = vtanh.pop %v3629
      %v3694 = vtanh.pop %v3630
      %v3695 = vtanh.pop %v3631
      %v3696 = vtanh.pop %v3632
      %v3697 = vtanh.pop %v3633
      %v3698 = vtanh.pop %v3634
      %v3699 = vtanh.pop %v3635
      %v3700 = vtanh.pop %v3636
      %v3701 = vtanh.pop %v3637
      %v3702 = vtanh.pop %v3638
      %v3703 = vtanh.pop %v3639
      %v3704 = vtanh.pop %v3640
      %v3705 = vtanh.pop %v3641
      %v3706 = vtanh.pop %v3642
      %v3707 = vtanh.pop %v3643
      %v3708 = vtanh.pop %v3644
      %v3709 = vtanh.pop %v3645
      %v3710 = vtanh.pop %v3646
      %v3711 = vtanh.pop %v3647
      %v3712 = vtanh.pop %v3648
      %v3713 = vmul.f32 %v3649, 0.5
      %v3714 = vmul.f32 %v3650, 0.5
      %v3715 = vmul.f32 %v3651, 0.5
      %v3716 = vmul.f32 %v3652, 0.5
      %v3717 = vmul.f32 %v3653, 0.5
      %v3718 = vmul.f32 %v3654, 0.5
      %v3719 = vmul.f32 %v3655, 0.5
      %v3720 = vmul.f32 %v3656, 0.5
      %v3721 = vmul.f32 %v3657, 0.5
      %v3722 = vmul.f32 %v3658, 0.5
      %v3723 = vmul.f32 %v3659, 0.5
      %v3724 = vmul.f32 %v3660, 0.5
      %v3725 = vmul.f32 %v3661, 0.5
      %v3726 = vmul.f32 %v3662, 0.5
      %v3727 = vmul.f32 %v3663, 0.5
      %v3728 = vmul.f32 %v3664, 0.5
      %v3729 = vmul.f32 %v3665, 0.5
      %v3730 = vmul.f32 %v3666, 0.5
      %v3731 = vmul.f32 %v3667, 0.5
      %v3732 = vmul.f32 %v3668, 0.5
      %v3733 = vmul.f32 %v3669, 0.5
      %v3734 = vmul.f32 %v3670, 0.5
      %v3735 = vmul.f32 %v3671, 0.5
      %v3736 = vmul.f32 %v3672, 0.5
      %v3737 = vmul.f32 %v3673, 0.5
      %v3738 = vmul.f32 %v3674, 0.5
      %v3739 = vmul.f32 %v3675, 0.5
      %v3740 = vmul.f32 %v3676, 0.5
      %v3741 = vmul.f32 %v3677, 0.5
      %v3742 = vmul.f32 %v3678, 0.5
      %v3743 = vmul.f32 %v3679, 0.5
      %v3744 = vmul.f32 %v3680, 0.5
      %v3745 = vmul.f32 %v3681, 0.5
      %v3746 = vmul.f32 %v3682, 0.5
      %v3747 = vmul.f32 %v3683, 0.5
      %v3748 = vmul.f32 %v3684, 0.5
      %v3749 = vmul.f32 %v3685, 0.5
      %v3750 = vmul.f32 %v3686, 0.5
      %v3751 = vmul.f32 %v3687, 0.5
      %v3752 = vmul.f32 %v3688, 0.5
      %v3753 = vmul.f32 %v3689, 0.5
      %v3754 = vmul.f32 %v3690, 0.5
      %v3755 = vmul.f32 %v3691, 0.5
      %v3756 = vmul.f32 %v3692, 0.5
      %v3757 = vmul.f32 %v3693, 0.5
      %v3758 = vmul.f32 %v3694, 0.5
      %v3759 = vmul.f32 %v3695, 0.5
      %v3760 = vmul.f32 %v3696, 0.5
      %v3761 = vmul.f32 %v3697, 0.5
      %v3762 = vmul.f32 %v3698, 0.5
      %v3763 = vmul.f32 %v3699, 0.5
      %v3764 = vmul.f32 %v3700, 0.5
      %v3765 = vmul.f32 %v3701, 0.5
      %v3766 = vmul.f32 %v3702, 0.5
      %v3767 = vmul.f32 %v3703, 0.5
      %v3768 = vmul.f32 %v3704, 0.5
      %v3769 = vmul.f32 %v3705, 0.5
      %v3770 = vmul.f32 %v3706, 0.5
      %v3771 = vmul.f32 %v3707, 0.5
      %v3772 = vmul.f32 %v3708, 0.5
      %v3773 = vmul.f32 %v3709, 0.5
      %v3774 = vmul.f32 %v3710, 0.5
      %v3775 = vmul.f32 %v3711, 0.5
      %v3776 = vmul.f32 %v3712, 0.5
      %v3777 = vadd.f32 %v3713, 0.5
      %v3778 = vadd.f32 %v3714, 0.5
      %v3779 = vadd.f32 %v3715, 0.5
      %v3780 = vadd.f32 %v3716, 0.5
      %v3781 = vadd.f32 %v3717, 0.5
      %v3782 = vadd.f32 %v3718, 0.5
      %v3783 = vadd.f32 %v3719, 0.5
      %v3784 = vadd.f32 %v3720, 0.5
      %v3785 = vadd.f32 %v3721, 0.5
      %v3786 = vadd.f32 %v3722, 0.5
      %v3787 = vadd.f32 %v3723, 0.5
      %v3788 = vadd.f32 %v3724, 0.5
      %v3789 = vadd.f32 %v3725, 0.5
      %v3790 = vadd.f32 %v3726, 0.5
      %v3791 = vadd.f32 %v3727, 0.5
      %v3792 = vadd.f32 %v3728, 0.5
      %v3793 = vadd.f32 %v3729, 0.5
      %v3794 = vadd.f32 %v3730, 0.5
      %v3795 = vadd.f32 %v3731, 0.5
      %v3796 = vadd.f32 %v3732, 0.5
      %v3797 = vadd.f32 %v3733, 0.5
      %v3798 = vadd.f32 %v3734, 0.5
      %v3799 = vadd.f32 %v3735, 0.5
      %v3800 = vadd.f32 %v3736, 0.5
      %v3801 = vadd.f32 %v3737, 0.5
      %v3802 = vadd.f32 %v3738, 0.5
      %v3803 = vadd.f32 %v3739, 0.5
      %v3804 = vadd.f32 %v3740, 0.5
      %v3805 = vadd.f32 %v3741, 0.5
      %v3806 = vadd.f32 %v3742, 0.5
      %v3807 = vadd.f32 %v3743, 0.5
      %v3808 = vadd.f32 %v3744, 0.5
      %v3809 = vadd.f32 %v3745, 0.5
      %v3810 = vadd.f32 %v3746, 0.5
      %v3811 = vadd.f32 %v3747, 0.5
      %v3812 = vadd.f32 %v3748, 0.5
      %v3813 = vadd.f32 %v3749, 0.5
      %v3814 = vadd.f32 %v3750, 0.5
      %v3815 = vadd.f32 %v3751, 0.5
      %v3816 = vadd.f32 %v3752, 0.5
      %v3817 = vadd.f32 %v3753, 0.5
      %v3818 = vadd.f32 %v3754, 0.5
      %v3819 = vadd.f32 %v3755, 0.5
      %v3820 = vadd.f32 %v3756, 0.5
      %v3821 = vadd.f32 %v3757, 0.5
      %v3822 = vadd.f32 %v3758, 0.5
      %v3823 = vadd.f32 %v3759, 0.5
      %v3824 = vadd.f32 %v3760, 0.5
      %v3825 = vadd.f32 %v3761, 0.5
      %v3826 = vadd.f32 %v3762, 0.5
      %v3827 = vadd.f32 %v3763, 0.5
      %v3828 = vadd.f32 %v3764, 0.5
      %v3829 = vadd.f32 %v3765, 0.5
      %v3830 = vadd.f32 %v3766, 0.5
      %v3831 = vadd.f32 %v3767, 0.5
      %v3832 = vadd.f32 %v3768, 0.5
      %v3833 = vadd.f32 %v3769, 0.5
      %v3834 = vadd.f32 %v3770, 0.5
      %v3835 = vadd.f32 %v3771, 0.5
      %v3836 = vadd.f32 %v3772, 0.5
      %v3837 = vadd.f32 %v3773, 0.5
      %v3838 = vadd.f32 %v3774, 0.5
      %v3839 = vadd.f32 %v3775, 0.5
      %v3840 = vadd.f32 %v3776, 0.5
      %v3841 = vmul.f32 %v3427, %v3777
      %v3842 = vmul.f32 %v3429, %v3778
      %v3843 = vmul.f32 %v3431, %v3779
      %v3844 = vmul.f32 %v3433, %v3780
      %v3845 = vmul.f32 %v3437, %v3781
      %v3846 = vmul.f32 %v3439, %v3782
      %v3847 = vmul.f32 %v3441, %v3783
      %v3848 = vmul.f32 %v3443, %v3784
      %v3849 = vmul.f32 %v3447, %v3785
      %v3850 = vmul.f32 %v3449, %v3786
      %v3851 = vmul.f32 %v3451, %v3787
      %v3852 = vmul.f32 %v3453, %v3788
      %v3853 = vmul.f32 %v3457, %v3789
      %v3854 = vmul.f32 %v3459, %v3790
      %v3855 = vmul.f32 %v3461, %v3791
      %v3856 = vmul.f32 %v3463, %v3792
      %v3857 = vmul.f32 %v3467, %v3793
      %v3858 = vmul.f32 %v3469, %v3794
      %v3859 = vmul.f32 %v3471, %v3795
      %v3860 = vmul.f32 %v3473, %v3796
      %v3861 = vmul.f32 %v3477, %v3797
      %v3862 = vmul.f32 %v3479, %v3798
      %v3863 = vmul.f32 %v3481, %v3799
      %v3864 = vmul.f32 %v3483, %v3800
      %v3865 = vmul.f32 %v3487, %v3801
      %v3866 = vmul.f32 %v3489, %v3802
      %v3867 = vmul.f32 %v3491, %v3803
      %v3868 = vmul.f32 %v3493, %v3804
      %v3869 = vmul.f32 %v3497, %v3805
      %v3870 = vmul.f32 %v3499, %v3806
      %v3871 = vmul.f32 %v3501, %v3807
      %v3872 = vmul.f32 %v3503, %v3808
      %v3873 = vmul.f32 %v3507, %v3809
      %v3874 = vmul.f32 %v3509, %v3810
      %v3875 = vmul.f32 %v3511, %v3811
      %v3876 = vmul.f32 %v3513, %v3812
      %v3877 = vmul.f32 %v3517, %v3813
      %v3878 = vmul.f32 %v3519, %v3814
      %v3879 = vmul.f32 %v3521, %v3815
      %v3880 = vmul.f32 %v3523, %v3816
      %v3881 = vmul.f32 %v3527, %v3817
      %v3882 = vmul.f32 %v3529, %v3818
      %v3883 = vmul.f32 %v3531, %v3819
      %v3884 = vmul.f32 %v3533, %v3820
      %v3885 = vmul.f32 %v3537, %v3821
      %v3886 = vmul.f32 %v3539, %v3822
      %v3887 = vmul.f32 %v3541, %v3823
      %v3888 = vmul.f32 %v3543, %v3824
      %v3889 = vmul.f32 %v3547, %v3825
      %v3890 = vmul.f32 %v3549, %v3826
      %v3891 = vmul.f32 %v3551, %v3827
      %v3892 = vmul.f32 %v3553, %v3828
      %v3893 = vmul.f32 %v3557, %v3829
      %v3894 = vmul.f32 %v3559, %v3830
      %v3895 = vmul.f32 %v3561, %v3831
      %v3896 = vmul.f32 %v3563, %v3832
      %v3897 = vmul.f32 %v3567, %v3833
      %v3898 = vmul.f32 %v3569, %v3834
      %v3899 = vmul.f32 %v3571, %v3835
      %v3900 = vmul.f32 %v3573, %v3836
      %v3901 = vmul.f32 %v3577, %v3837
      %v3902 = vmul.f32 %v3579, %v3838
      %v3903 = vmul.f32 %v3581, %v3839
      %v3904 = vmul.f32 %v3583, %v3840
      %v3905 = vld [vmem:[#allocation2 + $0x40] sm:$0xff]
      %v3906 = vld [vmem:[#allocation2 + $0x48] sm:$0xff]
      %v3907 = vadd.f32 %v3841, %v3843
      %v3908 = vadd.f32 %v3907, %v3845
      %v3909 = vadd.f32 %v3908, %v3847
      %v3910 = vadd.f32 %v3909, %v3849
      %v3911 = vadd.f32 %v3910, %v3851
      %v3912 = vadd.f32 %v3911, %v3853
      %v3913 = vadd.f32 %v3912, %v3855
      %v3914 = vadd.f32 %v3913, %v3857
      %v3915 = vadd.f32 %v3914, %v3859
      %v3916 = vadd.f32 %v3915, %v3861
      %v3917 = vadd.f32 %v3916, %v3863
      %v3918 = vadd.f32 %v3917, %v3865
      %v3919 = vadd.f32 %v3918, %v3867
      %v3920 = vadd.f32 %v3919, %v3869
      %v3921 = vadd.f32 %v3920, %v3871
      %v3922 = vadd.f32 %v3921, %v3873
      %v3923 = vadd.f32 %v3922, %v3875
      %v3924 = vadd.f32 %v3923, %v3877
      %v3925 = vadd.f32 %v3924, %v3879
      %v3926 = vadd.f32 %v3925, %v3881
      %v3927 = vadd.f32 %v3926, %v3883
      %v3928 = vadd.f32 %v3927, %v3885
      %v3929 = vadd.f32 %v3928, %v3887
      %v3930 = vadd.f32 %v3929, %v3889
      %v3931 = vadd.f32 %v3930, %v3891
      %v3932 = vadd.f32 %v3931, %v3893
      %v3933 = vadd.f32 %v3932, %v3895
      %v3934 = vadd.f32 %v3933, %v3897
      %v3935 = vadd.f32 %v3934, %v3899
      %v3936 = vadd.f32 %v3935, %v3901
      %v3937 = vadd.f32 %v3936, %v3903
      %v3938 = vadd.f32 %v3842, %v3844
      %v3939 = vadd.f32 %v3938, %v3846
      %v3940 = vadd.f32 %v3939, %v3848
      %v3941 = vadd.f32 %v3940, %v3850
      %v3942 = vadd.f32 %v3941, %v3852
      %v3943 = vadd.f32 %v3942, %v3854
      %v3944 = vadd.f32 %v3943, %v3856
      %v3945 = vadd.f32 %v3944, %v3858
      %v3946 = vadd.f32 %v3945, %v3860
      %v3947 = vadd.f32 %v3946, %v3862
      %v3948 = vadd.f32 %v3947, %v3864
      %v3949 = vadd.f32 %v3948, %v3866
      %v3950 = vadd.f32 %v3949, %v3868
      %v3951 = vadd.f32 %v3950, %v3870
      %v3952 = vadd.f32 %v3951, %v3872
      %v3953 = vadd.f32 %v3952, %v3874
      %v3954 = vadd.f32 %v3953, %v3876
      %v3955 = vadd.f32 %v3954, %v3878
      %v3956 = vadd.f32 %v3955, %v3880
      %v3957 = vadd.f32 %v3956, %v3882
      %v3958 = vadd.f32 %v3957, %v3884
      %v3959 = vadd.f32 %v3958, %v3886
      %v3960 = vadd.f32 %v3959, %v3888
      %v3961 = vadd.f32 %v3960, %v3890
      %v3962 = vadd.f32 %v3961, %v3892
      %v3963 = vadd.f32 %v3962, %v3894
      %v3964 = vadd.f32 %v3963, %v3896
      %v3965 = vadd.f32 %v3964, %v3898
      %v3966 = vadd.f32 %v3965, %v3900
      %v3967 = vadd.f32 %v3966, %v3902
      %v3968 = vadd.f32 %v3967, %v3904
      %v3969 = vadd.f32 %v3905, %v3937
      %v3970 = vadd.f32 %v3906, %v3968
      %3971 = vst [vmem:[#allocation2 + $0x40] sm:$0xff] %v3969
      %3972 = vst [vmem:[#allocation2 + $0x48] sm:$0xff] %v3970
      // Predicated region
      $region53: #{a_call__.1} parent=47 // pred_check
        %p3973 = pneg %p306
      $region54: #{a_call__.1} parent=47 // pred_check_branch
        %3975 = sbr.rel (%p3973) target = $region56
      $region55: #{a_call__.1} parent=47 // pred_region
        %v3976 = vld [vmem:[#allocation2] sm:$0xff]
        %v3977 = vld [vmem:[#allocation2 + $0x8] sm:$0xff]
        %v3978 = vld [vmem:[#allocation2 + $0x10] sm:$0xff]
        %v3979 = vld [vmem:[#allocation2 + $0x18] sm:$0xff]
        %v3980 = vld [vmem:[#allocation2 + $0x20] sm:$0xff]
        %v3981 = vld [vmem:[#allocation2 + $0x28] sm:$0xff]
        %v3982 = vld [vmem:[#allocation2 + $0x30] sm:$0xff]
        %v3983 = vld [vmem:[#allocation2 + $0x38] sm:$0xff]
        %v3984 = vld [vmem:[#allocation2 + $0x40] sm:$0xff]
        %v3985 = vld [vmem:[#allocation2 + $0x48] sm:$0xff]
        %v3986 = vrot.slane %v3976, 4
        %v3987 = vadd.f32 %v3976, %v3986
        %v3988 = vrot.slane %v3987, 2
        %v3989 = vadd.f32 %v3987, %v3988
        %v3990 = vrot.slane %v3989, 1
        %v3991 = vadd.f32 %v3989, %v3990
        %v3992 = vrot.slane %v3977, 4
        %v3993 = vadd.f32 %v3977, %v3992
        %v3994 = vrot.slane %v3993, 2
        %v3995 = vadd.f32 %v3993, %v3994
        %v3996 = vrot.slane %v3995, 1
        %v3997 = vadd.f32 %v3995, %v3996
        %v3998 = vrot.slane %v3978, 4
        %v3999 = vadd.f32 %v3978, %v3998
        %v4000 = vrot.slane %v3999, 2
        %v4001 = vadd.f32 %v3999, %v4000
        %v4002 = vrot.slane %v4001, 1
        %v4003 = vadd.f32 %v4001, %v4002
        %v4004 = vrot.slane %v3979, 4
        %v4005 = vadd.f32 %v3979, %v4004
        %v4006 = vrot.slane %v4005, 2
        %v4007 = vadd.f32 %v4005, %v4006
        %v4008 = vrot.slane %v4007, 1
        %v4009 = vadd.f32 %v4007, %v4008
        %v4010 = vrot.slane %v3980, 4
        %v4011 = vadd.f32 %v3980, %v4010
        %v4012 = vrot.slane %v4011, 2
        %v4013 = vadd.f32 %v4011, %v4012
        %v4014 = vrot.slane %v4013, 1
        %v4015 = vadd.f32 %v4013, %v4014
        %v4016 = vrot.slane %v3981, 4
        %v4017 = vadd.f32 %v3981, %v4016
        %v4018 = vrot.slane %v4017, 2
        %v4019 = vadd.f32 %v4017, %v4018
        %v4020 = vrot.slane %v4019, 1
        %v4021 = vadd.f32 %v4019, %v4020
        %v4022 = vrot.slane %v3982, 4
        %v4023 = vadd.f32 %v3982, %v4022
        %v4024 = vrot.slane %v4023, 2
        %v4025 = vadd.f32 %v4023, %v4024
        %v4026 = vrot.slane %v4025, 1
        %v4027 = vadd.f32 %v4025, %v4026
        %v4028 = vrot.slane %v3983, 4
        %v4029 = vadd.f32 %v3983, %v4028
        %v4030 = vrot.slane %v4029, 2
        %v4031 = vadd.f32 %v4029, %v4030
        %v4032 = vrot.slane %v4031, 1
        %v4033 = vadd.f32 %v4031, %v4032
        %v4034 = vrot.slane %v3984, 4
        %v4035 = vadd.f32 %v3984, %v4034
        %v4036 = vrot.slane %v4035, 2
        %v4037 = vadd.f32 %v4035, %v4036
        %v4038 = vrot.slane %v4037, 1
        %v4039 = vadd.f32 %v4037, %v4038
        %v4040 = vrot.slane %v3985, 4
        %v4041 = vadd.f32 %v3985, %v4040
        %v4042 = vrot.slane %v4041, 2
        %v4043 = vadd.f32 %v4041, %v4042
        %v4044 = vrot.slane %v4043, 1
        %v4045 = vadd.f32 %v4043, %v4044
        %v4046 = vmul.f32 %v3991, 0.00390625
        %v4047 = vmul.f32 %v3997, 0.00390625
        %v4048 = vmul.f32 %v4003, 0.00390625
        %v4049 = vmul.f32 %v4009, 0.00390625
        %v4050 = vmul.f32 %v4015, 0.00390625
        %v4051 = vmul.f32 %v4021, 0.00390625
        %v4052 = vmul.f32 %v4027, 0.00390625
        %v4053 = vmul.f32 %v4033, 0.00390625
        %v4054 = vmul.f32 %v4039, 0.00390625
        %v4055 = vmul.f32 %v4045, 0.00390625
        %v4056 = vpack.c.bf16 %v4046, %v4046
        %v4057 = vpack.c.bf16 %v4047, %v4047
        %v4058 = vpack.c.bf16 %v4048, %v4048
        %v4059 = vpack.c.bf16 %v4049, %v4049
        %v4060 = vpack.c.bf16 %v4050, %v4050
        %v4061 = vpack.c.bf16 %v4051, %v4051
        %v4062 = vpack.c.bf16 %v4052, %v4052
        %v4063 = vpack.c.bf16 %v4053, %v4053
        %v4064 = vpack.c.bf16 %v4054, %v4054
        %v4065 = vpack.c.bf16 %v4055, %v4055
        %v4066 = vld [vmem:[%s5] sm:$0xf]
        %v4067 = vld [vmem:[%s5 + $0x4] sm:$0xf]
        %v4068 = vld [vmem:[%s5 + $0x8] sm:$0xf]
        %v4069 = vld [vmem:[%s5 + $0xc] sm:$0xf]
        %v4070 = vld [vmem:[%s5 + $0x10] sm:$0xf]
        %v4071 = vld [vmem:[%s5 + $0x14] sm:$0xf]
        %v4072 = vld [vmem:[%s5 + $0x18] sm:$0xf]
        %v4073 = vld [vmem:[%s5 + $0x1c] sm:$0xf]
        %v4074 = vld [vmem:[%s5 + $0x20] sm:$0xf]
        %v4075 = vld [vmem:[%s5 + $0x24] sm:$0xf]
        %v4076 = vld [vmem:[%s5 + $0x28] sm:$0xf]
        %v4077 = vld [vmem:[%s5 + $0x2c] sm:$0xf]
        %v4078 = vld [vmem:[%s5 + $0x30] sm:$0xf]
        %v4079 = vld [vmem:[%s5 + $0x34] sm:$0xf]
        %v4080 = vld [vmem:[%s5 + $0x38] sm:$0xf]
        %v4081 = vld [vmem:[%s5 + $0x3c] sm:$0xf]
        %v4082 = vld [vmem:[%s5 + $0x40] sm:$0xf]
        %v4083 = vld [vmem:[%s5 + $0x44] sm:$0xf]
        %v4084 = vld [vmem:[%s5 + $0x48] sm:$0xf]
        %v4085 = vld [vmem:[%s5 + $0x4c] sm:$0xf]
        %v4086 = vld [vmem:[%s5 + $0x50] sm:$0xf]
        %v4087 = vld [vmem:[%s5 + $0x54] sm:$0xf]
        %v4088 = vld [vmem:[%s5 + $0x58] sm:$0xf]
        %v4089 = vld [vmem:[%s5 + $0x5c] sm:$0xf]
        %v4090 = vld [vmem:[%s5 + $0x60] sm:$0xf]
        %v4091 = vld [vmem:[%s5 + $0x64] sm:$0xf]
        %v4092 = vld [vmem:[%s5 + $0x68] sm:$0xf]
        %v4093 = vld [vmem:[%s5 + $0x6c] sm:$0xf]
        %v4094 = vld [vmem:[%s5 + $0x70] sm:$0xf]
        %v4095 = vld [vmem:[%s5 + $0x74] sm:$0xf]
        %v4096 = vld [vmem:[%s5 + $0x78] sm:$0xf]
        %v4097 = vld [vmem:[%s5 + $0x7c] sm:$0xf]
        %v4098 = vld [vmem:[%s5 + $0x80] sm:$0xf]
        %v4099 = vld [vmem:[%s5 + $0x84] sm:$0xf]
        %v4100 = vld [vmem:[%s5 + $0x88] sm:$0xf]
        %v4101 = vld [vmem:[%s5 + $0x8c] sm:$0xf]
        %v4102 = vld [vmem:[%s5 + $0x90] sm:$0xf]
        %v4103 = vld [vmem:[%s5 + $0x94] sm:$0xf]
        %v4104 = vld [vmem:[%s5 + $0x98] sm:$0xf]
        %v4105 = vld [vmem:[%s5 + $0x9c] sm:$0xf]
        %v4106 = vld [vmem:[%s5 + $0xa0] sm:$0xf]
        %v4107 = vld [vmem:[%s5 + $0xa4] sm:$0xf]
        %v4108 = vld [vmem:[%s5 + $0xa8] sm:$0xf]
        %v4109 = vld [vmem:[%s5 + $0xac] sm:$0xf]
        %v4110 = vld [vmem:[%s5 + $0xb0] sm:$0xf]
        %v4111 = vld [vmem:[%s5 + $0xb4] sm:$0xf]
        %v4112 = vld [vmem:[%s5 + $0xb8] sm:$0xf]
        %v4113 = vld [vmem:[%s5 + $0xbc] sm:$0xf]
        %v4114 = vld [vmem:[%s5 + $0xc0] sm:$0xf]
        %v4115 = vld [vmem:[%s5 + $0xc4] sm:$0xf]
        %v4116 = vld [vmem:[%s5 + $0xc8] sm:$0xf]
        %v4117 = vld [vmem:[%s5 + $0xcc] sm:$0xf]
        %v4118 = vld [vmem:[%s5 + $0xd0] sm:$0xf]
        %v4119 = vld [vmem:[%s5 + $0xd4] sm:$0xf]
        %v4120 = vld [vmem:[%s5 + $0xd8] sm:$0xf]
        %v4121 = vld [vmem:[%s5 + $0xdc] sm:$0xf]
        %v4122 = vld [vmem:[%s5 + $0xe0] sm:$0xf]
        %v4123 = vld [vmem:[%s5 + $0xe4] sm:$0xf]
        %v4124 = vld [vmem:[%s5 + $0xe8] sm:$0xf]
        %v4125 = vld [vmem:[%s5 + $0xec] sm:$0xf]
        %v4126 = vld [vmem:[%s5 + $0xf0] sm:$0xf]
        %v4127 = vld [vmem:[%s5 + $0xf4] sm:$0xf]
        %v4128 = vld [vmem:[%s5 + $0xf8] sm:$0xf]
        %v4129 = vld [vmem:[%s5 + $0xfc] sm:$0xf]
        %v4130 = vld [vmem:[%s5 + $0x100] sm:$0xf]
        %v4131 = vld [vmem:[%s5 + $0x104] sm:$0xf]
        %v4132 = vld [vmem:[%s5 + $0x108] sm:$0xf]
        %v4133 = vld [vmem:[%s5 + $0x10c] sm:$0xf]
        %v4134 = vld [vmem:[%s5 + $0x110] sm:$0xf]
        %v4135 = vld [vmem:[%s5 + $0x114] sm:$0xf]
        %v4136 = vld [vmem:[%s5 + $0x118] sm:$0xf]
        %v4137 = vld [vmem:[%s5 + $0x11c] sm:$0xf]
        %v4138 = vld [vmem:[%s5 + $0x120] sm:$0xf]
        %v4139 = vld [vmem:[%s5 + $0x124] sm:$0xf]
        %v4140 = vld [vmem:[%s5 + $0x128] sm:$0xf]
        %v4141 = vld [vmem:[%s5 + $0x12c] sm:$0xf]
        %v4142 = vld [vmem:[%s5 + $0x130] sm:$0xf]
        %v4143 = vld [vmem:[%s5 + $0x134] sm:$0xf]
        %v4144 = vld [vmem:[%s5 + $0x138] sm:$0xf]
        %v4145 = vld [vmem:[%s5 + $0x13c] sm:$0xf]
        %v4146 = vld [vmem:[%s5 + $0x140] sm:$0xf]
        %v4147 = vld [vmem:[%s5 + $0x144] sm:$0xf]
        %v4148 = vld [vmem:[%s5 + $0x148] sm:$0xf]
        %v4149 = vld [vmem:[%s5 + $0x14c] sm:$0xf]
        %v4150 = vld [vmem:[%s5 + $0x150] sm:$0xf]
        %v4151 = vld [vmem:[%s5 + $0x154] sm:$0xf]
        %v4152 = vld [vmem:[%s5 + $0x158] sm:$0xf]
        %v4153 = vld [vmem:[%s5 + $0x15c] sm:$0xf]
        %v4154 = vld [vmem:[%s5 + $0x160] sm:$0xf]
        %v4155 = vld [vmem:[%s5 + $0x164] sm:$0xf]
        %v4156 = vld [vmem:[%s5 + $0x168] sm:$0xf]
        %v4157 = vld [vmem:[%s5 + $0x16c] sm:$0xf]
        %v4158 = vld [vmem:[%s5 + $0x170] sm:$0xf]
        %v4159 = vld [vmem:[%s5 + $0x174] sm:$0xf]
        %v4160 = vld [vmem:[%s5 + $0x178] sm:$0xf]
        %v4161 = vld [vmem:[%s5 + $0x17c] sm:$0xf]
        %v4162 = vld [vmem:[%s5 + $0x180] sm:$0xf]
        %v4163 = vld [vmem:[%s5 + $0x184] sm:$0xf]
        %v4164 = vld [vmem:[%s5 + $0x188] sm:$0xf]
        %v4165 = vld [vmem:[%s5 + $0x18c] sm:$0xf]
        %v4166 = vld [vmem:[%s5 + $0x190] sm:$0xf]
        %v4167 = vld [vmem:[%s5 + $0x194] sm:$0xf]
        %v4168 = vld [vmem:[%s5 + $0x198] sm:$0xf]
        %v4169 = vld [vmem:[%s5 + $0x19c] sm:$0xf]
        %v4170 = vld [vmem:[%s5 + $0x1a0] sm:$0xf]
        %v4171 = vld [vmem:[%s5 + $0x1a4] sm:$0xf]
        %v4172 = vld [vmem:[%s5 + $0x1a8] sm:$0xf]
        %v4173 = vld [vmem:[%s5 + $0x1ac] sm:$0xf]
        %v4174 = vld [vmem:[%s5 + $0x1b0] sm:$0xf]
        %v4175 = vld [vmem:[%s5 + $0x1b4] sm:$0xf]
        %v4176 = vld [vmem:[%s5 + $0x1b8] sm:$0xf]
        %v4177 = vld [vmem:[%s5 + $0x1bc] sm:$0xf]
        %v4178 = vld [vmem:[%s5 + $0x1c0] sm:$0xf]
        %v4179 = vld [vmem:[%s5 + $0x1c4] sm:$0xf]
        %v4180 = vld [vmem:[%s5 + $0x1c8] sm:$0xf]
        %v4181 = vld [vmem:[%s5 + $0x1cc] sm:$0xf]
        %v4182 = vld [vmem:[%s5 + $0x1d0] sm:$0xf]
        %v4183 = vld [vmem:[%s5 + $0x1d4] sm:$0xf]
        %v4184 = vld [vmem:[%s5 + $0x1d8] sm:$0xf]
        %v4185 = vld [vmem:[%s5 + $0x1dc] sm:$0xf]
        %v4186 = vld [vmem:[%s5 + $0x1e0] sm:$0xf]
        %v4187 = vld [vmem:[%s5 + $0x1e4] sm:$0xf]
        %v4188 = vld [vmem:[%s5 + $0x1e8] sm:$0xf]
        %v4189 = vld [vmem:[%s5 + $0x1ec] sm:$0xf]
        %v4190 = vld [vmem:[%s5 + $0x1f0] sm:$0xf]
        %v4191 = vld [vmem:[%s5 + $0x1f4] sm:$0xf]
        %v4192 = vld [vmem:[%s5 + $0x1f8] sm:$0xf]
        %v4193 = vld [vmem:[%s5 + $0x1fc] sm:$0xf]
        %v4194 = vld [vmem:[%s5 + $0x200] sm:$0xf]
        %v4195 = vld [vmem:[%s5 + $0x204] sm:$0xf]
        %v4196 = vld [vmem:[%s5 + $0x208] sm:$0xf]
        %v4197 = vld [vmem:[%s5 + $0x20c] sm:$0xf]
        %v4198 = vld [vmem:[%s5 + $0x210] sm:$0xf]
        %v4199 = vld [vmem:[%s5 + $0x214] sm:$0xf]
        %v4200 = vld [vmem:[%s5 + $0x218] sm:$0xf]
        %v4201 = vld [vmem:[%s5 + $0x21c] sm:$0xf]
        %v4202 = vld [vmem:[%s5 + $0x220] sm:$0xf]
        %v4203 = vld [vmem:[%s5 + $0x224] sm:$0xf]
        %v4204 = vld [vmem:[%s5 + $0x228] sm:$0xf]
        %v4205 = vld [vmem:[%s5 + $0x22c] sm:$0xf]
        %v4206 = vld [vmem:[%s5 + $0x230] sm:$0xf]
        %v4207 = vld [vmem:[%s5 + $0x234] sm:$0xf]
        %v4208 = vld [vmem:[%s5 + $0x238] sm:$0xf]
        %v4209 = vld [vmem:[%s5 + $0x23c] sm:$0xf]
        %v4210 = vld [vmem:[%s5 + $0x240] sm:$0xf]
        %v4211 = vld [vmem:[%s5 + $0x244] sm:$0xf]
        %v4212 = vld [vmem:[%s5 + $0x248] sm:$0xf]
        %v4213 = vld [vmem:[%s5 + $0x24c] sm:$0xf]
        %v4214 = vld [vmem:[%s5 + $0x250] sm:$0xf]
        %v4215 = vld [vmem:[%s5 + $0x254] sm:$0xf]
        %v4216 = vld [vmem:[%s5 + $0x258] sm:$0xf]
        %v4217 = vld [vmem:[%s5 + $0x25c] sm:$0xf]
        %v4218 = vld [vmem:[%s5 + $0x260] sm:$0xf]
        %v4219 = vld [vmem:[%s5 + $0x264] sm:$0xf]
        %v4220 = vld [vmem:[%s5 + $0x268] sm:$0xf]
        %v4221 = vld [vmem:[%s5 + $0x26c] sm:$0xf]
        %v4222 = vld [vmem:[%s5 + $0x270] sm:$0xf]
        %v4223 = vld [vmem:[%s5 + $0x274] sm:$0xf]
        %v4224 = vld [vmem:[%s5 + $0x278] sm:$0xf]
        %v4225 = vld [vmem:[%s5 + $0x27c] sm:$0xf]
        %v4226 = vld [vmem:[%s6] sm:$0x1]
        %v4387 = vunpack.c.l.b16 %v4066
        %v4388 = vunpack.c.l.b16 %v4067
        %v4389 = vunpack.c.l.b16 %v4068
        %v4390 = vunpack.c.l.b16 %v4069
        %v4391 = vunpack.c.l.b16 %v4070
        %v4392 = vunpack.c.l.b16 %v4071
        %v4393 = vunpack.c.l.b16 %v4072
        %v4394 = vunpack.c.l.b16 %v4073
        %v4395 = vunpack.c.l.b16 %v4074
        %v4396 = vunpack.c.l.b16 %v4075
        %v4397 = vunpack.c.l.b16 %v4076
        %v4398 = vunpack.c.l.b16 %v4077
        %v4399 = vunpack.c.l.b16 %v4078
        %v4400 = vunpack.c.l.b16 %v4079
        %v4401 = vunpack.c.l.b16 %v4080
        %v4402 = vunpack.c.l.b16 %v4081
        %v4403 = vunpack.c.l.b16 %v4082
        %v4404 = vunpack.c.l.b16 %v4083
        %v4405 = vunpack.c.l.b16 %v4084
        %v4406 = vunpack.c.l.b16 %v4085
        %v4407 = vunpack.c.l.b16 %v4086
        %v4408 = vunpack.c.l.b16 %v4087
        %v4409 = vunpack.c.l.b16 %v4088
        %v4410 = vunpack.c.l.b16 %v4089
        %v4411 = vunpack.c.l.b16 %v4090
        %v4412 = vunpack.c.l.b16 %v4091
        %v4413 = vunpack.c.l.b16 %v4092
        %v4414 = vunpack.c.l.b16 %v4093
        %v4415 = vunpack.c.l.b16 %v4094
        %v4416 = vunpack.c.l.b16 %v4095
        %v4417 = vunpack.c.l.b16 %v4096
        %v4418 = vunpack.c.l.b16 %v4097
        %v4419 = vunpack.c.l.b16 %v4098
        %v4420 = vunpack.c.l.b16 %v4099
        %v4421 = vunpack.c.l.b16 %v4100
        %v4422 = vunpack.c.l.b16 %v4101
        %v4423 = vunpack.c.l.b16 %v4102
        %v4424 = vunpack.c.l.b16 %v4103
        %v4425 = vunpack.c.l.b16 %v4104
        %v4426 = vunpack.c.l.b16 %v4105
        %v4427 = vunpack.c.l.b16 %v4106
        %v4428 = vunpack.c.l.b16 %v4107
        %v4429 = vunpack.c.l.b16 %v4108
        %v4430 = vunpack.c.l.b16 %v4109
        %v4431 = vunpack.c.l.b16 %v4110
        %v4432 = vunpack.c.l.b16 %v4111
        %v4433 = vunpack.c.l.b16 %v4112
        %v4434 = vunpack.c.l.b16 %v4113
        %v4435 = vunpack.c.l.b16 %v4114
        %v4436 = vunpack.c.l.b16 %v4115
        %v4437 = vunpack.c.l.b16 %v4116
        %v4438 = vunpack.c.l.b16 %v4117
        %v4439 = vunpack.c.l.b16 %v4118
        %v4440 = vunpack.c.l.b16 %v4119
        %v4441 = vunpack.c.l.b16 %v4120
        %v4442 = vunpack.c.l.b16 %v4121
        %v4443 = vunpack.c.l.b16 %v4122
        %v4444 = vunpack.c.l.b16 %v4123
        %v4445 = vunpack.c.l.b16 %v4124
        %v4446 = vunpack.c.l.b16 %v4125
        %v4447 = vunpack.c.l.b16 %v4126
        %v4448 = vunpack.c.l.b16 %v4127
        %v4449 = vunpack.c.l.b16 %v4128
        %v4450 = vunpack.c.l.b16 %v4129
        %v4451 = vunpack.c.l.b16 %v4130
        %v4452 = vunpack.c.l.b16 %v4131
        %v4453 = vunpack.c.l.b16 %v4132
        %v4454 = vunpack.c.l.b16 %v4133
        %v4455 = vunpack.c.l.b16 %v4134
        %v4456 = vunpack.c.l.b16 %v4135
        %v4457 = vunpack.c.l.b16 %v4136
        %v4458 = vunpack.c.l.b16 %v4137
        %v4459 = vunpack.c.l.b16 %v4138
        %v4460 = vunpack.c.l.b16 %v4139
        %v4461 = vunpack.c.l.b16 %v4140
        %v4462 = vunpack.c.l.b16 %v4141
        %v4463 = vunpack.c.l.b16 %v4142
        %v4464 = vunpack.c.l.b16 %v4143
        %v4465 = vunpack.c.l.b16 %v4144
        %v4466 = vunpack.c.l.b16 %v4145
        %v4467 = vunpack.c.l.b16 %v4146
        %v4468 = vunpack.c.l.b16 %v4147
        %v4469 = vunpack.c.l.b16 %v4148
        %v4470 = vunpack.c.l.b16 %v4149
        %v4471 = vunpack.c.l.b16 %v4150
        %v4472 = vunpack.c.l.b16 %v4151
        %v4473 = vunpack.c.l.b16 %v4152
        %v4474 = vunpack.c.l.b16 %v4153
        %v4475 = vunpack.c.l.b16 %v4154
        %v4476 = vunpack.c.l.b16 %v4155
        %v4477 = vunpack.c.l.b16 %v4156
        %v4478 = vunpack.c.l.b16 %v4157
        %v4479 = vunpack.c.l.b16 %v4158
        %v4480 = vunpack.c.l.b16 %v4159
        %v4481 = vunpack.c.l.b16 %v4160
        %v4482 = vunpack.c.l.b16 %v4161
        %v4483 = vunpack.c.l.b16 %v4162
        %v4484 = vunpack.c.l.b16 %v4163
        %v4485 = vunpack.c.l.b16 %v4164
        %v4486 = vunpack.c.l.b16 %v4165
        %v4487 = vunpack.c.l.b16 %v4166
        %v4488 = vunpack.c.l.b16 %v4167
        %v4489 = vunpack.c.l.b16 %v4168
        %v4490 = vunpack.c.l.b16 %v4169
        %v4491 = vunpack.c.l.b16 %v4170
        %v4492 = vunpack.c.l.b16 %v4171
        %v4493 = vunpack.c.l.b16 %v4172
        %v4494 = vunpack.c.l.b16 %v4173
        %v4495 = vunpack.c.l.b16 %v4174
        %v4496 = vunpack.c.l.b16 %v4175
        %v4497 = vunpack.c.l.b16 %v4176
        %v4498 = vunpack.c.l.b16 %v4177
        %v4499 = vunpack.c.l.b16 %v4178
        %v4500 = vunpack.c.l.b16 %v4179
        %v4501 = vunpack.c.l.b16 %v4180
        %v4502 = vunpack.c.l.b16 %v4181
        %v4503 = vunpack.c.l.b16 %v4182
        %v4504 = vunpack.c.l.b16 %v4183
        %v4505 = vunpack.c.l.b16 %v4184
        %v4506 = vunpack.c.l.b16 %v4185
        %v4507 = vunpack.c.l.b16 %v4186
        %v4508 = vunpack.c.l.b16 %v4187
        %v4509 = vunpack.c.l.b16 %v4188
        %v4510 = vunpack.c.l.b16 %v4189
        %v4511 = vunpack.c.l.b16 %v4190
        %v4512 = vunpack.c.l.b16 %v4191
        %v4513 = vunpack.c.l.b16 %v4192
        %v4514 = vunpack.c.l.b16 %v4193
        %v4515 = vunpack.c.l.b16 %v4194
        %v4516 = vunpack.c.l.b16 %v4195
        %v4517 = vunpack.c.l.b16 %v4196
        %v4518 = vunpack.c.l.b16 %v4197
        %v4519 = vunpack.c.l.b16 %v4198
        %v4520 = vunpack.c.l.b16 %v4199
        %v4521 = vunpack.c.l.b16 %v4200
        %v4522 = vunpack.c.l.b16 %v4201
        %v4523 = vunpack.c.l.b16 %v4202
        %v4524 = vunpack.c.l.b16 %v4203
        %v4525 = vunpack.c.l.b16 %v4204
        %v4526 = vunpack.c.l.b16 %v4205
        %v4527 = vunpack.c.l.b16 %v4206
        %v4528 = vunpack.c.l.b16 %v4207
        %v4529 = vunpack.c.l.b16 %v4208
        %v4530 = vunpack.c.l.b16 %v4209
        %v4531 = vunpack.c.l.b16 %v4210
        %v4532 = vunpack.c.l.b16 %v4211
        %v4533 = vunpack.c.l.b16 %v4212
        %v4534 = vunpack.c.l.b16 %v4213
        %v4535 = vunpack.c.l.b16 %v4214
        %v4536 = vunpack.c.l.b16 %v4215
        %v4537 = vunpack.c.l.b16 %v4216
        %v4538 = vunpack.c.l.b16 %v4217
        %v4539 = vunpack.c.l.b16 %v4218
        %v4540 = vunpack.c.l.b16 %v4219
        %v4541 = vunpack.c.l.b16 %v4220
        %v4542 = vunpack.c.l.b16 %v4221
        %v4543 = vunpack.c.l.b16 %v4222
        %v4544 = vunpack.c.l.b16 %v4223
        %v4545 = vunpack.c.l.b16 %v4224
        %v4546 = vunpack.c.l.b16 %v4225
        %v4547 = vpack.c.b16 %v4388, %v4387
        %v4548 = vpack.c.b16 %v4390, %v4389
        %v4549 = vpack.c.b16 %v4392, %v4391
        %v4550 = vpack.c.b16 %v4394, %v4393
        %v4551 = vpack.c.b16 %v4396, %v4395
        %v4552 = vpack.c.b16 %v4398, %v4397
        %v4553 = vpack.c.b16 %v4400, %v4399
        %v4554 = vpack.c.b16 %v4402, %v4401
        %v4555 = vpack.c.b16 %v4404, %v4403
        %v4556 = vpack.c.b16 %v4406, %v4405
        %v4557 = vpack.c.b16 %v4408, %v4407
        %v4558 = vpack.c.b16 %v4410, %v4409
        %v4559 = vpack.c.b16 %v4412, %v4411
        %v4560 = vpack.c.b16 %v4414, %v4413
        %v4561 = vpack.c.b16 %v4416, %v4415
        %v4562 = vpack.c.b16 %v4418, %v4417
        %v4563 = vpack.c.b16 %v4420, %v4419
        %v4564 = vpack.c.b16 %v4422, %v4421
        %v4565 = vpack.c.b16 %v4424, %v4423
        %v4566 = vpack.c.b16 %v4426, %v4425
        %v4567 = vpack.c.b16 %v4428, %v4427
        %v4568 = vpack.c.b16 %v4430, %v4429
        %v4569 = vpack.c.b16 %v4432, %v4431
        %v4570 = vpack.c.b16 %v4434, %v4433
        %v4571 = vpack.c.b16 %v4436, %v4435
        %v4572 = vpack.c.b16 %v4438, %v4437
        %v4573 = vpack.c.b16 %v4440, %v4439
        %v4574 = vpack.c.b16 %v4442, %v4441
        %v4575 = vpack.c.b16 %v4444, %v4443
        %v4576 = vpack.c.b16 %v4446, %v4445
        %v4577 = vpack.c.b16 %v4448, %v4447
        %v4578 = vpack.c.b16 %v4450, %v4449
        %v4579 = vpack.c.b16 %v4452, %v4451
        %v4580 = vpack.c.b16 %v4454, %v4453
        %v4581 = vpack.c.b16 %v4456, %v4455
        %v4582 = vpack.c.b16 %v4458, %v4457
        %v4583 = vpack.c.b16 %v4460, %v4459
        %v4584 = vpack.c.b16 %v4462, %v4461
        %v4585 = vpack.c.b16 %v4464, %v4463
        %v4586 = vpack.c.b16 %v4466, %v4465
        %v4587 = vpack.c.b16 %v4468, %v4467
        %v4588 = vpack.c.b16 %v4470, %v4469
        %v4589 = vpack.c.b16 %v4472, %v4471
        %v4590 = vpack.c.b16 %v4474, %v4473
        %v4591 = vpack.c.b16 %v4476, %v4475
        %v4592 = vpack.c.b16 %v4478, %v4477
        %v4593 = vpack.c.b16 %v4480, %v4479
        %v4594 = vpack.c.b16 %v4482, %v4481
        %v4595 = vpack.c.b16 %v4484, %v4483
        %v4596 = vpack.c.b16 %v4486, %v4485
        %v4597 = vpack.c.b16 %v4488, %v4487
        %v4598 = vpack.c.b16 %v4490, %v4489
        %v4599 = vpack.c.b16 %v4492, %v4491
        %v4600 = vpack.c.b16 %v4494, %v4493
        %v4601 = vpack.c.b16 %v4496, %v4495
        %v4602 = vpack.c.b16 %v4498, %v4497
        %v4603 = vpack.c.b16 %v4500, %v4499
        %v4604 = vpack.c.b16 %v4502, %v4501
        %v4605 = vpack.c.b16 %v4504, %v4503
        %v4606 = vpack.c.b16 %v4506, %v4505
        %v4607 = vpack.c.b16 %v4508, %v4507
        %v4608 = vpack.c.b16 %v4510, %v4509
        %v4609 = vpack.c.b16 %v4512, %v4511
        %v4610 = vpack.c.b16 %v4514, %v4513
        %v4611 = vpack.c.b16 %v4516, %v4515
        %v4612 = vpack.c.b16 %v4518, %v4517
        %v4613 = vpack.c.b16 %v4520, %v4519
        %v4614 = vpack.c.b16 %v4522, %v4521
        %v4615 = vpack.c.b16 %v4524, %v4523
        %v4616 = vpack.c.b16 %v4526, %v4525
        %v4617 = vpack.c.b16 %v4528, %v4527
        %v4618 = vpack.c.b16 %v4530, %v4529
        %v4619 = vpack.c.b16 %v4532, %v4531
        %v4620 = vpack.c.b16 %v4534, %v4533
        %v4621 = vpack.c.b16 %v4536, %v4535
        %v4622 = vpack.c.b16 %v4538, %v4537
        %v4623 = vpack.c.b16 %v4540, %v4539
        %v4624 = vpack.c.b16 %v4542, %v4541
        %v4625 = vpack.c.b16 %v4544, %v4543
        %v4626 = vpack.c.b16 %v4546, %v4545
        %4707 = vmatprep.subr.bf16.mxu0 0
        %4708 = vmatpush1.bf16.msra.mxu0 %v4554
        %4709 = vmatprep.subr.bf16.mxu0 0
        %4710 = vmatpush1.bf16.msra.mxu0 %v4553
        %4711 = vmatprep.subr.bf16.mxu0 0
        %4712 = vmatpush1.bf16.msra.mxu0 %v4552
        %4713 = vmatprep.subr.bf16.mxu0 0
        %4714 = vmatpush1.bf16.msra.mxu0 %v4551
        %4715 = vmatprep.subr.bf16.mxu0 0
        %4716 = vmatpush1.bf16.msra.mxu0 %v4550
        %4717 = vmatprep.subr.bf16.mxu0 0
        %4718 = vmatpush1.bf16.msra.mxu0 %v4549
        %4719 = vmatprep.subr.bf16.mxu0 0
        %4720 = vmatpush1.bf16.msra.mxu0 %v4548
        %4721 = vmatprep.subr.bf16.mxu0 0
        %4722 = vmatpush1.bf16.msra.mxu0 %v4547
        %4723 = vmatprep.subr.bf16.mxu0 0
        %4724 = vmatpush2.bf16.msra.mxu0 %v4562
        %4725 = vmatprep.subr.bf16.mxu0 0
        %4726 = vmatpush2.bf16.msra.mxu0 %v4561
        %4727 = vmatprep.subr.bf16.mxu0 0
        %4728 = vmatpush2.bf16.msra.mxu0 %v4560
        %4729 = vmatprep.subr.bf16.mxu0 0
        %4730 = vmatpush2.bf16.msra.mxu0 %v4559
        %4731 = vmatprep.subr.bf16.mxu0 0
        %4732 = vmatpush2.bf16.msra.mxu0 %v4558
        %4733 = vmatprep.subr.bf16.mxu0 0
        %4734 = vmatpush2.bf16.msra.mxu0 %v4557
        %4735 = vmatprep.subr.bf16.mxu0 0
        %4736 = vmatpush2.bf16.msra.mxu0 %v4556
        %4737 = vmatprep.subr.bf16.mxu0 0
        %4738 = vmatpush2.bf16.msra.mxu0 %v4555
        %4739 = vmatprep.mubr.bf16.mxu0 %v4057
        %4740 = vmatmul.mubr.bf16.gmra.mxu0 %v4056
        %v4741 = vpop.f32.mrf.mxu0
        %v4742 = vadd.f32 %v4226, %v4741
        %v4743 = vpop.f32.mrf.mxu0
        %v4744 = vpop.f32.mrf.mxu0
        %v4745 = vpop.f32.mrf.mxu0
        %4746 = vdwg.mxu0
        %4747 = vmatprep.subr.bf16.mxu0 0
        %4748 = vmatpush1.bf16.msra.mxu0 %v4570
        %4749 = vmatprep.subr.bf16.mxu0 0
        %4750 = vmatpush1.bf16.msra.mxu0 %v4569
        %4751 = vmatprep.subr.bf16.mxu0 0
        %4752 = vmatpush1.bf16.msra.mxu0 %v4568
        %4753 = vmatprep.subr.bf16.mxu0 0
        %4754 = vmatpush1.bf16.msra.mxu0 %v4567
        %4755 = vmatprep.subr.bf16.mxu0 0
        %4756 = vmatpush1.bf16.msra.mxu0 %v4566
        %4757 = vmatprep.subr.bf16.mxu0 0
        %4758 = vmatpush1.bf16.msra.mxu0 %v4565
        %4759 = vmatprep.subr.bf16.mxu0 0
        %4760 = vmatpush1.bf16.msra.mxu0 %v4564
        %4761 = vmatprep.subr.bf16.mxu0 0
        %4762 = vmatpush1.bf16.msra.mxu0 %v4563
        %4763 = vmatprep.subr.bf16.mxu0 0
        %4764 = vmatpush2.bf16.msra.mxu0 %v4578
        %4765 = vmatprep.subr.bf16.mxu0 0
        %4766 = vmatpush2.bf16.msra.mxu0 %v4577
        %4767 = vmatprep.subr.bf16.mxu0 0
        %4768 = vmatpush2.bf16.msra.mxu0 %v4576
        %4769 = vmatprep.subr.bf16.mxu0 0
        %4770 = vmatpush2.bf16.msra.mxu0 %v4575
        %4771 = vmatprep.subr.bf16.mxu0 0
        %4772 = vmatpush2.bf16.msra.mxu0 %v4574
        %4773 = vmatprep.subr.bf16.mxu0 0
        %4774 = vmatpush2.bf16.msra.mxu0 %v4573
        %4775 = vmatprep.subr.bf16.mxu0 0
        %4776 = vmatpush2.bf16.msra.mxu0 %v4572
        %4777 = vmatprep.subr.bf16.mxu0 0
        %4778 = vmatpush2.bf16.msra.mxu0 %v4571
        %4779 = vmatprep.mubr.bf16.mxu0 %v4059
        %4780 = vmatmul.mubr.bf16.gmra.mxu0 %v4058
        %v4781 = vpop.f32.mrf.mxu0
        %v4782 = vadd.f32 %v4742, %v4781
        %v4783 = vpop.f32.mrf.mxu0
        %v4784 = vpop.f32.mrf.mxu0
        %v4785 = vpop.f32.mrf.mxu0
        %4786 = vdwg.mxu0
        %4787 = vmatprep.subr.bf16.mxu0 0
        %4788 = vmatpush1.bf16.msra.mxu0 %v4586
        %4789 = vmatprep.subr.bf16.mxu0 0
        %4790 = vmatpush1.bf16.msra.mxu0 %v4585
        %4791 = vmatprep.subr.bf16.mxu0 0
        %4792 = vmatpush1.bf16.msra.mxu0 %v4584
        %4793 = vmatprep.subr.bf16.mxu0 0
        %4794 = vmatpush1.bf16.msra.mxu0 %v4583
        %4795 = vmatprep.subr.bf16.mxu0 0
        %4796 = vmatpush1.bf16.msra.mxu0 %v4582
        %4797 = vmatprep.subr.bf16.mxu0 0
        %4798 = vmatpush1.bf16.msra.mxu0 %v4581
        %4799 = vmatprep.subr.bf16.mxu0 0
        %4800 = vmatpush1.bf16.msra.mxu0 %v4580
        %4801 = vmatprep.subr.bf16.mxu0 0
        %4802 = vmatpush1.bf16.msra.mxu0 %v4579
        %4803 = vmatprep.subr.bf16.mxu0 0
        %4804 = vmatpush2.bf16.msra.mxu0 %v4594
        %4805 = vmatprep.subr.bf16.mxu0 0
        %4806 = vmatpush2.bf16.msra.mxu0 %v4593
        %4807 = vmatprep.subr.bf16.mxu0 0
        %4808 = vmatpush2.bf16.msra.mxu0 %v4592
        %4809 = vmatprep.subr.bf16.mxu0 0
        %4810 = vmatpush2.bf16.msra.mxu0 %v4591
        %4811 = vmatprep.subr.bf16.mxu0 0
        %4812 = vmatpush2.bf16.msra.mxu0 %v4590
        %4813 = vmatprep.subr.bf16.mxu0 0
        %4814 = vmatpush2.bf16.msra.mxu0 %v4589
        %4815 = vmatprep.subr.bf16.mxu0 0
        %4816 = vmatpush2.bf16.msra.mxu0 %v4588
        %4817 = vmatprep.subr.bf16.mxu0 0
        %4818 = vmatpush2.bf16.msra.mxu0 %v4587
        %4819 = vmatprep.mubr.bf16.mxu0 %v4061
        %4820 = vmatmul.mubr.bf16.gmra.mxu0 %v4060
        %v4821 = vpop.f32.mrf.mxu0
        %v4822 = vadd.f32 %v4782, %v4821
        %v4823 = vpop.f32.mrf.mxu0
        %v4824 = vpop.f32.mrf.mxu0
        %v4825 = vpop.f32.mrf.mxu0
        %4826 = vdwg.mxu0
        %4827 = vmatprep.subr.bf16.mxu0 0
        %4828 = vmatpush1.bf16.msra.mxu0 %v4602
        %4829 = vmatprep.subr.bf16.mxu0 0
        %4830 = vmatpush1.bf16.msra.mxu0 %v4601
        %4831 = vmatprep.subr.bf16.mxu0 0
        %4832 = vmatpush1.bf16.msra.mxu0 %v4600
        %4833 = vmatprep.subr.bf16.mxu0 0
        %4834 = vmatpush1.bf16.msra.mxu0 %v4599
        %4835 = vmatprep.subr.bf16.mxu0 0
        %4836 = vmatpush1.bf16.msra.mxu0 %v4598
        %4837 = vmatprep.subr.bf16.mxu0 0
        %4838 = vmatpush1.bf16.msra.mxu0 %v4597
        %4839 = vmatprep.subr.bf16.mxu0 0
        %4840 = vmatpush1.bf16.msra.mxu0 %v4596
        %4841 = vmatprep.subr.bf16.mxu0 0
        %4842 = vmatpush1.bf16.msra.mxu0 %v4595
        %4843 = vmatprep.subr.bf16.mxu0 0
        %4844 = vmatpush2.bf16.msra.mxu0 %v4610
        %4845 = vmatprep.subr.bf16.mxu0 0
        %4846 = vmatpush2.bf16.msra.mxu0 %v4609
        %4847 = vmatprep.subr.bf16.mxu0 0
        %4848 = vmatpush2.bf16.msra.mxu0 %v4608
        %4849 = vmatprep.subr.bf16.mxu0 0
        %4850 = vmatpush2.bf16.msra.mxu0 %v4607
        %4851 = vmatprep.subr.bf16.mxu0 0
        %4852 = vmatpush2.bf16.msra.mxu0 %v4606
        %4853 = vmatprep.subr.bf16.mxu0 0
        %4854 = vmatpush2.bf16.msra.mxu0 %v4605
        %4855 = vmatprep.subr.bf16.mxu0 0
        %4856 = vmatpush2.bf16.msra.mxu0 %v4604
        %4857 = vmatprep.subr.bf16.mxu0 0
        %4858 = vmatpush2.bf16.msra.mxu0 %v4603
        %4859 = vmatprep.mubr.bf16.mxu0 %v4063
        %4860 = vmatmul.mubr.bf16.gmra.mxu0 %v4062
        %v4861 = vpop.f32.mrf.mxu0
        %v4862 = vadd.f32 %v4822, %v4861
        %v4863 = vpop.f32.mrf.mxu0
        %v4864 = vpop.f32.mrf.mxu0
        %v4865 = vpop.f32.mrf.mxu0
        %4866 = vdwg.mxu0
        %4867 = vmatprep.subr.bf16.mxu0 0
        %4868 = vmatpush1.bf16.msra.mxu0 %v4618
        %4869 = vmatprep.subr.bf16.mxu0 0
        %4870 = vmatpush1.bf16.msra.mxu0 %v4617
        %4871 = vmatprep.subr.bf16.mxu0 0
        %4872 = vmatpush1.bf16.msra.mxu0 %v4616
        %4873 = vmatprep.subr.bf16.mxu0 0
        %4874 = vmatpush1.bf16.msra.mxu0 %v4615
        %4875 = vmatprep.subr.bf16.mxu0 0
        %4876 = vmatpush1.bf16.msra.mxu0 %v4614
        %4877 = vmatprep.subr.bf16.mxu0 0
        %4878 = vmatpush1.bf16.msra.mxu0 %v4613
        %4879 = vmatprep.subr.bf16.mxu0 0
        %4880 = vmatpush1.bf16.msra.mxu0 %v4612
        %4881 = vmatprep.subr.bf16.mxu0 0
        %4882 = vmatpush1.bf16.msra.mxu0 %v4611
        %4883 = vmatprep.subr.bf16.mxu0 0
        %4884 = vmatpush2.bf16.msra.mxu0 %v4626
        %4885 = vmatprep.subr.bf16.mxu0 0
        %4886 = vmatpush2.bf16.msra.mxu0 %v4625
        %4887 = vmatprep.subr.bf16.mxu0 0
        %4888 = vmatpush2.bf16.msra.mxu0 %v4624
        %4889 = vmatprep.subr.bf16.mxu0 0
        %4890 = vmatpush2.bf16.msra.mxu0 %v4623
        %4891 = vmatprep.subr.bf16.mxu0 0
        %4892 = vmatpush2.bf16.msra.mxu0 %v4622
        %4893 = vmatprep.subr.bf16.mxu0 0
        %4894 = vmatpush2.bf16.msra.mxu0 %v4621
        %4895 = vmatprep.subr.bf16.mxu0 0
        %4896 = vmatpush2.bf16.msra.mxu0 %v4620
        %4897 = vmatprep.subr.bf16.mxu0 0
        %4898 = vmatpush2.bf16.msra.mxu0 %v4619
        %4899 = vmatprep.mubr.bf16.mxu0 %v4065
        %4900 = vmatmul.mubr.bf16.gmra.mxu0 %v4064
        %v4901 = vpop.f32.mrf.mxu0
        %v4902 = vadd.f32 %v4862, %v4901
        %v4903 = vpop.f32.mrf.mxu0
        %v4904 = vpop.f32.mrf.mxu0
        %v4905 = vpop.f32.mrf.mxu0
        %4906 = vdwg.mxu0
        %v4907 = vlaneseq
        %v4908 = vshrl.u32 %v4907, 7
        %v4909 = vsub.s32 0, %v4908
        %v4910 = vrot.slane %v4902, %v4909
        %4911 = vst [vmem:[%s304] sm:$0xff] %v4910
      $region56: #{a_call__.1} parent=47 // pred_fallthru
        _
      %p4912 = scmp.lt.s32.totalorder %s22, 1
      %s4913 = scalar_select %p4912, %s22, 1
      %s4914 = smul.addr %s4913, 8
      %s4915 = scalar_lea.vmem %s7, %s4914
      // Predicated region
      $region57: #{a_call__.1} parent=47 // pred_check
        %p4916 = pneg %p202
      $region58: #{a_call__.1} parent=47 // pred_check_branch
        %4918 = sbr.rel (%p4916) target = $region60
      $region59: #{a_call__.1} parent=47 // pred_region
        _
      $region60: #{a_call__.1} parent=47 // pred_fallthru
        _
    $region48: #{a_call__.1} parent=5 // pred_fallthru
      _
    %p4919 = scmp.le.s32.totalorder 2, %s13
    // Predicated region
    $region61: #{a_call__.1} parent=5 // pred_check
      %p4920 = pneg %p4919
    $region62: #{a_call__.1} parent=5 // pred_check_branch
      %4922 = sbr.rel (%p4920) target = $region64
    $region63: #{a_call__.1} parent=5 // pred_region
      %s4923 = ssub.s32 %s13, 2
      // Predicated region
      $region65: #{a_call__.1} parent=63 // pred_check
        %p4924 = pneg %p208
      $region66: #{a_call__.1} parent=63 // pred_check_branch
        %4926 = sbr.rel (%p4924) target = $region68
      $region67: #{a_call__.1} parent=63 // pred_region
        %p4927 = scmp.lt.s32.totalorder %s24, 1
        %s4928 = scalar_select %p4927, %s24, 1
        %s4929 = smul.addr %s4928, 8
        %s4930 = scalar_lea.vmem %s7, %s4929
      $region68: #{a_call__.1} parent=63 // pred_fallthru
        _
    $region64: #{a_call__.1} parent=5 // pred_fallthru
      _
  $region6: #{a_call__.1} parent=0 // loop_footer
    %s17 = sadd.s32 1, %s13
  $region7: #{a_call__.1} parent=0 // loop_footer_branch
    %12 = sbr.rel target = $region3
  $region8: #{a_call__.1} parent=0 // loop_exit
    _

</llo_original>
